<compile_context>
chip_gen: v6e
topology: v6e:2x2x1
jax: 0.10.0
libtpu: 0.0.40
codegen_flags: <defaults>
</compile_context>

<pallas_src>
import functools

import jax
import jax.numpy as jnp
from jax.experimental import pallas as pl
from jax.experimental.pallas import tpu as pltpu

# --- model hyper-parameters (small, consistent with the module) ---------------
D_MODEL = 32
NUM_HEADS = 4
HEAD_DIM = D_MODEL // NUM_HEADS
DIM_FF = 64
NUM_LAYERS = 2
LN_EPS = 1e-5

SEQ = 8
BATCH = 2

NEG_INF = -1e30


# --- in-kernel helpers ---------------------------------------------------------
def _layer_norm(x, w, b):
    # x: (N, D) f32 ; w, b: (1, D)
    mean = jnp.mean(x, axis=-1, keepdims=True)
    xc = x - mean
    var = jnp.mean(xc * xc, axis=-1, keepdims=True)
    inv = jax.lax.rsqrt(var + LN_EPS)
    return xc * inv * w + b


# --- the fused encoder kernel --------------------------------------------------
def _encoder_kernel(x_ref, pos_ref,
                    wqkv_ref, bqkv_ref, wo_ref, bo_ref,
                    ln1w_ref, ln1b_ref,
                    w1_ref, b1_ref, w2_ref, b2_ref,
                    ln2w_ref, ln2b_ref,
                    fnw_ref, fnb_ref,
                    out_ref,
                    attn_scratch,
                    *, num_layers, batch, seq, num_heads, head_dim,
                    has_final_norm):
    d_model = num_heads * head_dim
    n_rows = batch * seq                    # seq-major rows: row r -> batch r % batch

    x = x_ref[...].astype(jnp.float32)      # (N, D)
    p = pos_ref[...].astype(jnp.float32)    # (N, D)

    # Cross-batch additive mask, built once: 0 where rows i,j belong to the same
    # batch element, -1e30 otherwise (so softmax is exactly per-batch).
    row_b = jax.lax.broadcasted_iota(jnp.int32, (n_rows, n_rows), 0) % batch
    col_b = jax.lax.broadcasted_iota(jnp.int32, (n_rows, n_rows), 1) % batch
    attn_mask = jnp.where(row_b == col_b, 0.0, NEG_INF).astype(jnp.float32)

    for l in range(num_layers):             # static unroll over layers
        qk_in = x + p                       # with_pos_embed(src, pos)

        # Fused Q/K/V projection: one MXU pass, [[src+pos]; [src]] @ [wq|wk|wv].
        # NOTE: 1/sqrt(head_dim) is already folded into the wq/bq columns.
        xin = jnp.concatenate([qk_in, x], axis=0)                       # (2N, D)
        qkv = jnp.dot(xin, wqkv_ref[l],
                      preferred_element_type=jnp.float32) + bqkv_ref[l]  # (2N, 3D)
        q = qkv[:n_rows, :d_model]                 # (N, D), pre-scaled
        k = qkv[:n_rows, d_model:2 * d_model]      # (N, D)
        v = qkv[n_rows:, 2 * d_model:]             # (N, D)

        # Attention: per head, ONE (N,N) masked score matmul covering both batch
        # elements; head outputs written into the VMEM scratch slab (no concats).
        for h in range(num_heads):
            cs = slice(h * head_dim, (h + 1) * head_dim)
            qh, kh, vh = q[:, cs], k[:, cs], v[:, cs]
            # QK^T without materializing a transpose (contract last dims).
            s = jax.lax.dot_general(qh, kh, (((1,), (1,)), ((), ())),
                                    preferred_element_type=jnp.float32)  # (N, N)
            s = s + attn_mask
            s = s - jnp.max(s, axis=-1, keepdims=True)
            e = jnp.exp(s)
            pr = e * pl.reciprocal(jnp.sum(e, axis=-1, keepdims=True), approx=True)
            attn_scratch[:, cs] = jnp.dot(pr, vh,
                                          preferred_element_type=jnp.float32)

        attn = jnp.dot(attn_scratch[...], wo_ref[l],
                       preferred_element_type=jnp.float32) + bo_ref[l]

        # residual + norm1
        x = _layer_norm(x + attn, ln1w_ref[l], ln1b_ref[l])

        # feed-forward (batched over all rows)
        h1 = jnp.dot(x, w1_ref[l], preferred_element_type=jnp.float32) + b1_ref[l]
        h1 = jnp.maximum(h1, 0.0)                                       # ReLU
        ff = jnp.dot(h1, w2_ref[l], preferred_element_type=jnp.float32) + b2_ref[l]

        # residual + norm2
        x = _layer_norm(x + ff, ln2w_ref[l], ln2b_ref[l])

    if has_final_norm:                      # static Python flag
        x = _layer_norm(x, fnw_ref[...], fnb_ref[...])

    out_ref[...] = x.astype(out_ref.dtype)


# --- pallas_call wrapper --------------------------------------------------------
def _full_spec(shape):
    nd = len(shape)
    return pl.BlockSpec(shape, lambda i, _nd=nd: (0,) * _nd)


def _stack_layer_params(layer_params):
    """Stack per-layer params along a leading layer axis; fuse wq|wk|wv into one
    (D, 3D) weight per layer and fold the attention scale into the q columns."""
    scale = jnp.float32(1.0 / (HEAD_DIM ** 0.5))

    def st(name):
        return jnp.stack([p[name] for p in layer_params], axis=0)

    wqkv = jnp.concatenate([st("wq") * scale, st("wk"), st("wv")], axis=-1)  # (L, D, 3D)
    bqkv = jnp.concatenate([st("bq") * scale, st("bk"), st("bv")], axis=-1)  # (L, 1, 3D)
    return [
        wqkv, bqkv,
        st("wo"), st("bo"),
        st("ln1_w"), st("ln1_b"),
        st("w1"), st("b1"),
        st("w2"), st("b2"),
        st("ln2_w"), st("ln2_b"),
    ]


def transformer_encoder(src_sbd, pos_sbd, layer_params, final_norm_params=None):
    """src_sbd, pos_sbd: (S, B, D) seq-first, as in PyTorch DETR."""
    S, B, D = src_sbd.shape
    # Pure metadata reshape (no transpose, no HBM round-trip): seq-major rows,
    # row r corresponds to (s = r // B, b = r % B). The in-kernel cross-batch
    # mask accounts for this interleave.
    x2 = src_sbd.reshape(S * B, D)
    p2 = pos_sbd.reshape(S * B, D)

    stacked = _stack_layer_params(layer_params)
    if final_norm_params is not None:
        fnw, fnb = final_norm_params
        has_final_norm = True
    else:
        fnw = jnp.ones((1, D), jnp.float32)
        fnb = jnp.zeros((1, D), jnp.float32)
        has_final_norm = False

    operands = [x2, p2] + stacked + [fnw, fnb]
    in_specs = [_full_spec(op.shape) for op in operands]

    kernel = functools.partial(
        _encoder_kernel,
        num_layers=len(layer_params), batch=B, seq=S,
        num_heads=NUM_HEADS, head_dim=HEAD_DIM,
        has_final_norm=has_final_norm)

    out2 = pl.pallas_call(
        kernel,
        out_shape=jax.ShapeDtypeStruct((S * B, D), src_sbd.dtype),
        grid_spec=pltpu.PrefetchScalarGridSpec(
            num_scalar_prefetch=0,
            grid=(1,),                      # whole problem in one grid step
            in_specs=in_specs,
            out_specs=_full_spec((S * B, D)),
            scratch_shapes=[pltpu.VMEM((S * B, D), jnp.float32)],  # head-output slab
        ),
        compiler_params=pltpu.CompilerParams(dimension_semantics=("arbitrary",)),
    )(*operands)

    return out2.reshape(S, B, D)            # free reshape back to (S, B, D)


# --- deterministic parameter init ------------------------------------------------
def init_params(key):
    layer_params = []
    for _ in range(NUM_LAYERS):
        key, *ks = jax.random.split(key, 8)
        rnd = lambda k, shape: (jax.random.normal(k, shape, jnp.float32) * 0.02)
        layer_params.append(dict(
            wq=rnd(ks[0], (D_MODEL, D_MODEL)), bq=jnp.zeros((1, D_MODEL), jnp.float32),
            wk=rnd(ks[1], (D_MODEL, D_MODEL)), bk=jnp.zeros((1, D_MODEL), jnp.float32),
            wv=rnd(ks[2], (D_MODEL, D_MODEL)), bv=jnp.zeros((1, D_MODEL), jnp.float32),
            wo=rnd(ks[3], (D_MODEL, D_MODEL)), bo=jnp.zeros((1, D_MODEL), jnp.float32),
            ln1_w=jnp.ones((1, D_MODEL), jnp.float32),
            ln1_b=jnp.zeros((1, D_MODEL), jnp.float32),
            w1=rnd(ks[4], (D_MODEL, DIM_FF)), b1=jnp.zeros((1, DIM_FF), jnp.float32),
            w2=rnd(ks[5], (DIM_FF, D_MODEL)), b2=jnp.zeros((1, D_MODEL), jnp.float32),
            ln2_w=jnp.ones((1, D_MODEL), jnp.float32),
            ln2_b=jnp.zeros((1, D_MODEL), jnp.float32),
        ))
    key, kf = jax.random.split(key)
    final_norm = (jnp.ones((1, D_MODEL), jnp.float32),
                  jnp.zeros((1, D_MODEL), jnp.float32))
    return layer_params, final_norm


# --- pure-JAX reference for a correctness check ----------------------------------
def _ref_layer(x, pos, p):  # x, pos: (B, S, D)
    qk = x + pos
    q = qk @ p["wq"] + p["bq"][0]
    k = qk @ p["wk"] + p["bk"][0]
    v = x @ p["wv"] + p["bv"][0]
    B, S, _ = x.shape
    def split(t):
        return t.reshape(B, S, NUM_HEADS, HEAD_DIM).transpose(0, 2, 1, 3)
    qh, kh, vh = split(q), split(k), split(v)
    s = jnp.einsum("bhqd,bhkd->bhqk", qh, kh) / (HEAD_DIM ** 0.5)
    a = jax.nn.softmax(s, axis=-1)
    o = jnp.einsum("bhqk,bhkd->bhqd", a, vh).transpose(0, 2, 1, 3).reshape(B, S, D_MODEL)
    o = o @ p["wo"] + p["bo"][0]
    def ln(t, w, b):
        m = t.mean(-1, keepdims=True)
        var = ((t - m) ** 2).mean(-1, keepdims=True)
        return (t - m) * jax.lax.rsqrt(var + LN_EPS) * w[0] + b[0]
    x = ln(x + o, p["ln1_w"], p["ln1_b"])
    ff = jnp.maximum(x @ p["w1"] + p["b1"][0], 0.0) @ p["w2"] + p["b2"][0]
    return ln(x + ff, p["ln2_w"], p["ln2_b"])


def _ref_encoder(src_sbd, pos_sbd, layer_params, final_norm):
    x = jnp.transpose(src_sbd, (1, 0, 2))
    pos = jnp.transpose(pos_sbd, (1, 0, 2))
    for p in layer_params:
        x = _ref_layer(x, pos, p)
    w, b = final_norm
    m = x.mean(-1, keepdims=True)
    var = ((x - m) ** 2).mean(-1, keepdims=True)
    x = (x - m) * jax.lax.rsqrt(var + LN_EPS) * w[0] + b[0]
    return jnp.transpose(x, (1, 0, 2))


if __name__ == "__main__":
    key = jax.random.PRNGKey(0)
    kp, ksrc, kpos = jax.random.split(key, 3)
    layer_params, final_norm = init_params(kp)

    src = jax.random.normal(ksrc, (SEQ, BATCH, D_MODEL), jnp.float32)   # (S, B, D)
    pos = jax.random.normal(kpos, (SEQ, BATCH, D_MODEL), jnp.float32)

    encoder = jax.jit(transformer_encoder)
    out = encoder(src, pos, layer_params, final_norm)
    out = jax.block_until_ready(out)

    ref = _ref_encoder(src, pos, layer_params, final_norm)
    assert out.shape == (SEQ, BATCH, D_MODEL)
    # tolerance slightly loosened for the approx (EUP) reciprocal in the softmax
    assert jnp.allclose(out, ref, atol=5e-3, rtol=5e-3), "mismatch vs reference"

    print("KERNEL_OK")
</pallas_src>

<mosaic_0001>
module attributes {stable_mosaic.version = 11 : i64} {
  func.func @_encoder_kernel(%arg0: i32, %arg1: memref<16x32xf32, #tpu.memory_space<vmem>>, %arg2: memref<16x32xf32, #tpu.memory_space<vmem>>, %arg3: memref<2x32x96xf32, #tpu.memory_space<vmem>>, %arg4: memref<2x1x96xf32, #tpu.memory_space<vmem>>, %arg5: memref<2x32x32xf32, #tpu.memory_space<vmem>>, %arg6: memref<2x1x32xf32, #tpu.memory_space<vmem>>, %arg7: memref<2x1x32xf32, #tpu.memory_space<vmem>>, %arg8: memref<2x1x32xf32, #tpu.memory_space<vmem>>, %arg9: memref<2x32x64xf32, #tpu.memory_space<vmem>>, %arg10: memref<2x1x64xf32, #tpu.memory_space<vmem>>, %arg11: memref<2x64x32xf32, #tpu.memory_space<vmem>>, %arg12: memref<2x1x32xf32, #tpu.memory_space<vmem>>, %arg13: memref<2x1x32xf32, #tpu.memory_space<vmem>>, %arg14: memref<2x1x32xf32, #tpu.memory_space<vmem>>, %arg15: memref<1x32xf32, #tpu.memory_space<vmem>>, %arg16: memref<1x32xf32, #tpu.memory_space<vmem>>, %arg17: memref<16x32xf32, #tpu.memory_space<vmem>>, %arg18: memref<16x32xf32, #tpu.memory_space<vmem>>) attributes {dimension_semantics = [#tpu.dimension_semantics<arbitrary>], iteration_bounds = array<i64: 1>, scalar_prefetch = 0 : i64, scratch_operands = 1 : i64, tpu.core_type = #tpu.core_type<tc>, window_params = [{pipeline_mode = #tpu.pipeline_mode<synchronous>, transform_indices = @transform_0, window_bounds = array<i64: 16, 32>}, {pipeline_mode = #tpu.pipeline_mode<synchronous>, transform_indices = @transform_1, window_bounds = array<i64: 16, 32>}, {pipeline_mode = #tpu.pipeline_mode<synchronous>, transform_indices = @transform_2, window_bounds = array<i64: 2, 32, 96>}, {pipeline_mode = #tpu.pipeline_mode<synchronous>, transform_indices = @transform_3, window_bounds = array<i64: 2, 1, 96>}, {pipeline_mode = #tpu.pipeline_mode<synchronous>, transform_indices = @transform_4, window_bounds = array<i64: 2, 32, 32>}, {pipeline_mode = #tpu.pipeline_mode<synchronous>, transform_indices = @transform_5, window_bounds = array<i64: 2, 1, 32>}, {pipeline_mode = #tpu.pipeline_mode<synchronous>, transform_indices = @transform_6, window_bounds = array<i64: 2, 1, 32>}, {pipeline_mode = #tpu.pipeline_mode<synchronous>, transform_indices = @transform_7, window_bounds = array<i64: 2, 1, 32>}, {pipeline_mode = #tpu.pipeline_mode<synchronous>, transform_indices = @transform_8, window_bounds = array<i64: 2, 32, 64>}, {pipeline_mode = #tpu.pipeline_mode<synchronous>, transform_indices = @transform_9, window_bounds = array<i64: 2, 1, 64>}, {pipeline_mode = #tpu.pipeline_mode<synchronous>, transform_indices = @transform_10, window_bounds = array<i64: 2, 64, 32>}, {pipeline_mode = #tpu.pipeline_mode<synchronous>, transform_indices = @transform_11, window_bounds = array<i64: 2, 1, 32>}, {pipeline_mode = #tpu.pipeline_mode<synchronous>, transform_indices = @transform_12, window_bounds = array<i64: 2, 1, 32>}, {pipeline_mode = #tpu.pipeline_mode<synchronous>, transform_indices = @transform_13, window_bounds = array<i64: 2, 1, 32>}, {pipeline_mode = #tpu.pipeline_mode<synchronous>, transform_indices = @transform_14, window_bounds = array<i64: 1, 32>}, {pipeline_mode = #tpu.pipeline_mode<synchronous>, transform_indices = @transform_15, window_bounds = array<i64: 1, 32>}, {pipeline_mode = #tpu.pipeline_mode<synchronous>, transform_indices = @transform_16, window_bounds = array<i64: 16, 32>}]} {
    %c0 = arith.constant 0 : index
    %c0_0 = arith.constant 0 : index
    %0 = vector.load %arg1[%c0, %c0_0] : memref<16x32xf32, #tpu.memory_space<vmem>>, vector<16x32xf32>
    %c0_1 = arith.constant 0 : index
    %c0_2 = arith.constant 0 : index
    %1 = vector.load %arg2[%c0_1, %c0_2] : memref<16x32xf32, #tpu.memory_space<vmem>>, vector<16x32xf32>
    %2 = tpu.iota {dimensions = array<i32: 0>} : vector<16x16xi32>
    %c2_i32 = arith.constant 2 : i32
    %c0_i32 = arith.constant 0 : i32
    %3 = arith.cmpi eq, %c2_i32, %c0_i32 : i32
    %c1_i32 = arith.constant 1 : i32
    %4 = arith.select %3, %c1_i32, %c2_i32 : i32
    %5 = vector.broadcast %4 : i32 to vector<16x16xi32>
    %6 = arith.remsi %2, %5 : vector<16x16xi32>
    %c0_i32_3 = arith.constant 0 : i32
    %7 = vector.broadcast %c0_i32_3 : i32 to vector<16x16xi32>
    %8 = arith.cmpi ne, %6, %7 : vector<16x16xi32>
    %c0_i32_4 = arith.constant 0 : i32
    %9 = vector.broadcast %c0_i32_4 : i32 to vector<16x16xi32>
    %10 = arith.cmpi slt, %6, %9 : vector<16x16xi32>
    %c0_i32_5 = arith.constant 0 : i32
    %11 = arith.cmpi slt, %4, %c0_i32_5 : i32
    %12 = vector.broadcast %11 : i1 to vector<16x16xi1>
    %13 = vector.broadcast %12 : vector<16x16xi1> to vector<16x16xi1>
    %14 = arith.xori %10, %13 : vector<16x16xi1>
    %15 = arith.andi %14, %8 : vector<16x16xi1>
    %16 = vector.broadcast %4 : i32 to vector<16x16xi32>
    %17 = arith.addi %6, %16 : vector<16x16xi32>
    %18 = arith.select %15, %17, %6 : vector<16x16xi1>, vector<16x16xi32>
    %19 = tpu.iota {dimensions = array<i32: 1>} : vector<16x16xi32>
    %c2_i32_6 = arith.constant 2 : i32
    %c0_i32_7 = arith.constant 0 : i32
    %20 = arith.cmpi eq, %c2_i32_6, %c0_i32_7 : i32
    %c1_i32_8 = arith.constant 1 : i32
    %21 = arith.select %20, %c1_i32_8, %c2_i32_6 : i32
    %22 = vector.broadcast %21 : i32 to vector<16x16xi32>
    %23 = arith.remsi %19, %22 : vector<16x16xi32>
    %c0_i32_9 = arith.constant 0 : i32
    %24 = vector.broadcast %c0_i32_9 : i32 to vector<16x16xi32>
    %25 = arith.cmpi ne, %23, %24 : vector<16x16xi32>
    %c0_i32_10 = arith.constant 0 : i32
    %26 = vector.broadcast %c0_i32_10 : i32 to vector<16x16xi32>
    %27 = arith.cmpi slt, %23, %26 : vector<16x16xi32>
    %c0_i32_11 = arith.constant 0 : i32
    %28 = arith.cmpi slt, %21, %c0_i32_11 : i32
    %29 = vector.broadcast %28 : i1 to vector<16x16xi1>
    %30 = vector.broadcast %29 : vector<16x16xi1> to vector<16x16xi1>
    %31 = arith.xori %27, %30 : vector<16x16xi1>
    %32 = arith.andi %31, %25 : vector<16x16xi1>
    %33 = vector.broadcast %21 : i32 to vector<16x16xi32>
    %34 = arith.addi %23, %33 : vector<16x16xi32>
    %35 = arith.select %32, %34, %23 : vector<16x16xi1>, vector<16x16xi32>
    %36 = arith.cmpi eq, %18, %35 : vector<16x16xi32>
    %cst = arith.constant 0.000000e+00 : f32
    %cst_12 = arith.constant -1.000000e+30 : f32
    %37 = vector.broadcast %cst : f32 to vector<16x16xf32>
    %38 = vector.broadcast %cst_12 : f32 to vector<16x16xf32>
    %39 = arith.select %36, %37, %38 : vector<16x16xi1>, vector<16x16xf32>
    %40 = arith.addf %0, %1 : vector<16x32xf32>
    %41 = tpu.concatenate %40, %0 in 0 : vector<16x32xf32>, vector<16x32xf32> -> vector<32x32xf32>
    %c0_13 = arith.constant 0 : index
    %c0_14 = arith.constant 0 : index
    %c0_15 = arith.constant 0 : index
    %42 = vector.load %arg3[%c0_13, %c0_14, %c0_15] : memref<2x32x96xf32, #tpu.memory_space<vmem>>, vector<1x32x96xf32>
    %43 = vector.shape_cast %42 : vector<1x32x96xf32> to vector<32x96xf32>
    %cst_16 = arith.constant dense<0.000000e+00> : vector<32x96xf32>
    %44 = tpu.matmul %41, %43, %cst_16 {dimension_numbers = #tpu.dot_dimension_numbers<[1], [0], [0], [1], [0, 0, 1, 1], [], []>} : vector<32x32xf32>, vector<32x96xf32>, vector<32x96xf32> -> vector<32x96xf32>
    %c0_17 = arith.constant 0 : index
    %c0_18 = arith.constant 0 : index
    %c0_19 = arith.constant 0 : index
    %45 = vector.load %arg4[%c0_17, %c0_18, %c0_19] : memref<2x1x96xf32, #tpu.memory_space<vmem>>, vector<1x1x96xf32>
    %46 = vector.shape_cast %45 : vector<1x1x96xf32> to vector<1x96xf32>
    %47 = vector.broadcast %46 : vector<1x96xf32> to vector<32x96xf32>
    %48 = arith.addf %44, %47 : vector<32x96xf32>
    %49 = vector.extract_strided_slice %48 {offsets = [0, 0], sizes = [16, 32], strides = [1, 1]} : vector<32x96xf32> to vector<16x32xf32>
    %50 = vector.extract_strided_slice %48 {offsets = [0, 32], sizes = [16, 32], strides = [1, 1]} : vector<32x96xf32> to vector<16x32xf32>
    %51 = vector.extract_strided_slice %48 {offsets = [16, 64], sizes = [16, 32], strides = [1, 1]} : vector<32x96xf32> to vector<16x32xf32>
    %52 = vector.extract_strided_slice %49 {offsets = [0, 0], sizes = [16, 8], strides = [1, 1]} : vector<16x32xf32> to vector<16x8xf32>
    %53 = vector.extract_strided_slice %50 {offsets = [0, 0], sizes = [16, 8], strides = [1, 1]} : vector<16x32xf32> to vector<16x8xf32>
    %54 = vector.extract_strided_slice %51 {offsets = [0, 0], sizes = [16, 8], strides = [1, 1]} : vector<16x32xf32> to vector<16x8xf32>
    %cst_20 = arith.constant dense<0.000000e+00> : vector<16x16xf32>
    %55 = tpu.matmul %52, %53, %cst_20 {dimension_numbers = #tpu.dot_dimension_numbers<[1], [1], [0], [0], [0, 0, 1, 0], [], []>} : vector<16x8xf32>, vector<16x8xf32>, vector<16x16xf32> -> vector<16x16xf32>
    %56 = arith.addf %55, %39 : vector<16x16xf32>
    %cst_21 = arith.constant dense<0xFF800000> : vector<16xf32>
    %57 = vector.multi_reduction <maximumf>, %56, %cst_21 [1] : vector<16x16xf32> to vector<16xf32>
    %58 = vector.shape_cast %57 : vector<16xf32> to vector<16x1xf32>
    %59 = vector.broadcast %58 : vector<16x1xf32> to vector<16x16xf32>
    %60 = arith.subf %56, %59 : vector<16x16xf32>
    %61 = math.exp %60 : vector<16x16xf32>
    %cst_22 = arith.constant dense<0.000000e+00> : vector<16xf32>
    %62 = vector.multi_reduction <add>, %61, %cst_22 [1] : vector<16x16xf32> to vector<16xf32>
    %63 = vector.shape_cast %62 : vector<16xf32> to vector<16x1xf32>
    %64 = tpu.reciprocal %63 {approx = true} : vector<16x1xf32> -> vector<16x1xf32>
    %65 = vector.broadcast %64 : vector<16x1xf32> to vector<16x16xf32>
    %66 = arith.mulf %61, %65 : vector<16x16xf32>
    %cst_23 = arith.constant dense<0.000000e+00> : vector<16x8xf32>
    %67 = tpu.matmul %66, %54, %cst_23 {dimension_numbers = #tpu.dot_dimension_numbers<[1], [0], [0], [1], [0, 0, 1, 1], [], []>} : vector<16x16xf32>, vector<16x8xf32>, vector<16x8xf32> -> vector<16x8xf32>
    %c0_24 = arith.constant 0 : index
    %c0_25 = arith.constant 0 : index
    %68 = vector.load %arg18[%c0_24, %c0_25] : memref<16x32xf32, #tpu.memory_space<vmem>>, vector<16x8xf32>
    tpu.vector_store %arg18[%c0_24, %c0_25], %67 {strides = array<i32>} : memref<16x32xf32, #tpu.memory_space<vmem>>, vector<16x8xf32>,
    %69 = vector.extract_strided_slice %49 {offsets = [0, 8], sizes = [16, 8], strides = [1, 1]} : vector<16x32xf32> to vector<16x8xf32>
    %70 = vector.extract_strided_slice %50 {offsets = [0, 8], sizes = [16, 8], strides = [1, 1]} : vector<16x32xf32> to vector<16x8xf32>
    %71 = vector.extract_strided_slice %51 {offsets = [0, 8], sizes = [16, 8], strides = [1, 1]} : vector<16x32xf32> to vector<16x8xf32>
    %cst_26 = arith.constant dense<0.000000e+00> : vector<16x16xf32>
    %72 = tpu.matmul %69, %70, %cst_26 {dimension_numbers = #tpu.dot_dimension_numbers<[1], [1], [0], [0], [0, 0, 1, 0], [], []>} : vector<16x8xf32>, vector<16x8xf32>, vector<16x16xf32> -> vector<16x16xf32>
    %73 = arith.addf %72, %39 : vector<16x16xf32>
    %cst_27 = arith.constant dense<0xFF800000> : vector<16xf32>
    %74 = vector.multi_reduction <maximumf>, %73, %cst_27 [1] : vector<16x16xf32> to vector<16xf32>
    %75 = vector.shape_cast %74 : vector<16xf32> to vector<16x1xf32>
    %76 = vector.broadcast %75 : vector<16x1xf32> to vector<16x16xf32>
    %77 = arith.subf %73, %76 : vector<16x16xf32>
    %78 = math.exp %77 : vector<16x16xf32>
    %cst_28 = arith.constant dense<0.000000e+00> : vector<16xf32>
    %79 = vector.multi_reduction <add>, %78, %cst_28 [1] : vector<16x16xf32> to vector<16xf32>
    %80 = vector.shape_cast %79 : vector<16xf32> to vector<16x1xf32>
    %81 = tpu.reciprocal %80 {approx = true} : vector<16x1xf32> -> vector<16x1xf32>
    %82 = vector.broadcast %81 : vector<16x1xf32> to vector<16x16xf32>
    %83 = arith.mulf %78, %82 : vector<16x16xf32>
    %cst_29 = arith.constant dense<0.000000e+00> : vector<16x8xf32>
    %84 = tpu.matmul %83, %71, %cst_29 {dimension_numbers = #tpu.dot_dimension_numbers<[1], [0], [0], [1], [0, 0, 1, 1], [], []>} : vector<16x16xf32>, vector<16x8xf32>, vector<16x8xf32> -> vector<16x8xf32>
    %c0_30 = arith.constant 0 : index
    %c8 = arith.constant 8 : index
    %85 = vector.load %arg18[%c0_30, %c8] : memref<16x32xf32, #tpu.memory_space<vmem>>, vector<16x8xf32>
    tpu.vector_store %arg18[%c0_30, %c8], %84 {strides = array<i32>} : memref<16x32xf32, #tpu.memory_space<vmem>>, vector<16x8xf32>,
    %86 = vector.extract_strided_slice %49 {offsets = [0, 16], sizes = [16, 8], strides = [1, 1]} : vector<16x32xf32> to vector<16x8xf32>
    %87 = vector.extract_strided_slice %50 {offsets = [0, 16], sizes = [16, 8], strides = [1, 1]} : vector<16x32xf32> to vector<16x8xf32>
    %88 = vector.extract_strided_slice %51 {offsets = [0, 16], sizes = [16, 8], strides = [1, 1]} : vector<16x32xf32> to vector<16x8xf32>
    %cst_31 = arith.constant dense<0.000000e+00> : vector<16x16xf32>
    %89 = tpu.matmul %86, %87, %cst_31 {dimension_numbers = #tpu.dot_dimension_numbers<[1], [1], [0], [0], [0, 0, 1, 0], [], []>} : vector<16x8xf32>, vector<16x8xf32>, vector<16x16xf32> -> vector<16x16xf32>
    %90 = arith.addf %89, %39 : vector<16x16xf32>
    %cst_32 = arith.constant dense<0xFF800000> : vector<16xf32>
    %91 = vector.multi_reduction <maximumf>, %90, %cst_32 [1] : vector<16x16xf32> to vector<16xf32>
    %92 = vector.shape_cast %91 : vector<16xf32> to vector<16x1xf32>
    %93 = vector.broadcast %92 : vector<16x1xf32> to vector<16x16xf32>
    %94 = arith.subf %90, %93 : vector<16x16xf32>
    %95 = math.exp %94 : vector<16x16xf32>
    %cst_33 = arith.constant dense<0.000000e+00> : vector<16xf32>
    %96 = vector.multi_reduction <add>, %95, %cst_33 [1] : vector<16x16xf32> to vector<16xf32>
    %97 = vector.shape_cast %96 : vector<16xf32> to vector<16x1xf32>
    %98 = tpu.reciprocal %97 {approx = true} : vector<16x1xf32> -> vector<16x1xf32>
    %99 = vector.broadcast %98 : vector<16x1xf32> to vector<16x16xf32>
    %100 = arith.mulf %95, %99 : vector<16x16xf32>
    %cst_34 = arith.constant dense<0.000000e+00> : vector<16x8xf32>
    %101 = tpu.matmul %100, %88, %cst_34 {dimension_numbers = #tpu.dot_dimension_numbers<[1], [0], [0], [1], [0, 0, 1, 1], [], []>} : vector<16x16xf32>, vector<16x8xf32>, vector<16x8xf32> -> vector<16x8xf32>
    %c0_35 = arith.constant 0 : index
    %c16 = arith.constant 16 : index
    %102 = vector.load %arg18[%c0_35, %c16] : memref<16x32xf32, #tpu.memory_space<vmem>>, vector<16x8xf32>
    tpu.vector_store %arg18[%c0_35, %c16], %101 {strides = array<i32>} : memref<16x32xf32, #tpu.memory_space<vmem>>, vector<16x8xf32>,
    %103 = vector.extract_strided_slice %49 {offsets = [0, 24], sizes = [16, 8], strides = [1, 1]} : vector<16x32xf32> to vector<16x8xf32>
    %104 = vector.extract_strided_slice %50 {offsets = [0, 24], sizes = [16, 8], strides = [1, 1]} : vector<16x32xf32> to vector<16x8xf32>
    %105 = vector.extract_strided_slice %51 {offsets = [0, 24], sizes = [16, 8], strides = [1, 1]} : vector<16x32xf32> to vector<16x8xf32>
    %cst_36 = arith.constant dense<0.000000e+00> : vector<16x16xf32>
    %106 = tpu.matmul %103, %104, %cst_36 {dimension_numbers = #tpu.dot_dimension_numbers<[1], [1], [0], [0], [0, 0, 1, 0], [], []>} : vector<16x8xf32>, vector<16x8xf32>, vector<16x16xf32> -> vector<16x16xf32>
    %107 = arith.addf %106, %39 : vector<16x16xf32>
    %cst_37 = arith.constant dense<0xFF800000> : vector<16xf32>
    %108 = vector.multi_reduction <maximumf>, %107, %cst_37 [1] : vector<16x16xf32> to vector<16xf32>
    %109 = vector.shape_cast %108 : vector<16xf32> to vector<16x1xf32>
    %110 = vector.broadcast %109 : vector<16x1xf32> to vector<16x16xf32>
    %111 = arith.subf %107, %110 : vector<16x16xf32>
    %112 = math.exp %111 : vector<16x16xf32>
    %cst_38 = arith.constant dense<0.000000e+00> : vector<16xf32>
    %113 = vector.multi_reduction <add>, %112, %cst_38 [1] : vector<16x16xf32> to vector<16xf32>
    %114 = vector.shape_cast %113 : vector<16xf32> to vector<16x1xf32>
    %115 = tpu.reciprocal %114 {approx = true} : vector<16x1xf32> -> vector<16x1xf32>
    %116 = vector.broadcast %115 : vector<16x1xf32> to vector<16x16xf32>
    %117 = arith.mulf %112, %116 : vector<16x16xf32>
    %cst_39 = arith.constant dense<0.000000e+00> : vector<16x8xf32>
    %118 = tpu.matmul %117, %105, %cst_39 {dimension_numbers = #tpu.dot_dimension_numbers<[1], [0], [0], [1], [0, 0, 1, 1], [], []>} : vector<16x16xf32>, vector<16x8xf32>, vector<16x8xf32> -> vector<16x8xf32>
    %c0_40 = arith.constant 0 : index
    %c24 = arith.constant 24 : index
    %119 = vector.load %arg18[%c0_40, %c24] : memref<16x32xf32, #tpu.memory_space<vmem>>, vector<16x8xf32>
    tpu.vector_store %arg18[%c0_40, %c24], %118 {strides = array<i32>} : memref<16x32xf32, #tpu.memory_space<vmem>>, vector<16x8xf32>,
    %c0_41 = arith.constant 0 : index
    %c0_42 = arith.constant 0 : index
    %120 = vector.load %arg18[%c0_41, %c0_42] : memref<16x32xf32, #tpu.memory_space<vmem>>, vector<16x32xf32>
    %c0_43 = arith.constant 0 : index
    %c0_44 = arith.constant 0 : index
    %c0_45 = arith.constant 0 : index
    %121 = vector.load %arg5[%c0_43, %c0_44, %c0_45] : memref<2x32x32xf32, #tpu.memory_space<vmem>>, vector<1x32x32xf32>
    %122 = vector.shape_cast %121 : vector<1x32x32xf32> to vector<32x32xf32>
    %cst_46 = arith.constant dense<0.000000e+00> : vector<16x32xf32>
    %123 = tpu.matmul %120, %122, %cst_46 {dimension_numbers = #tpu.dot_dimension_numbers<[1], [0], [0], [1], [0, 0, 1, 1], [], []>} : vector<16x32xf32>, vector<32x32xf32>, vector<16x32xf32> -> vector<16x32xf32>
    %c0_47 = arith.constant 0 : index
    %c0_48 = arith.constant 0 : index
    %c0_49 = arith.constant 0 : index
    %124 = vector.load %arg6[%c0_47, %c0_48, %c0_49] : memref<2x1x32xf32, #tpu.memory_space<vmem>>, vector<1x1x32xf32>
    %125 = vector.shape_cast %124 : vector<1x1x32xf32> to vector<1x32xf32>
    %126 = vector.broadcast %125 : vector<1x32xf32> to vector<16x32xf32>
    %127 = arith.addf %123, %126 : vector<16x32xf32>
    %128 = arith.addf %0, %127 : vector<16x32xf32>
    %c0_50 = arith.constant 0 : index
    %c0_51 = arith.constant 0 : index
    %c0_52 = arith.constant 0 : index
    %129 = vector.load %arg7[%c0_50, %c0_51, %c0_52] : memref<2x1x32xf32, #tpu.memory_space<vmem>>, vector<1x1x32xf32>
    %130 = vector.shape_cast %129 : vector<1x1x32xf32> to vector<1x32xf32>
    %c0_53 = arith.constant 0 : index
    %c0_54 = arith.constant 0 : index
    %c0_55 = arith.constant 0 : index
    %131 = vector.load %arg8[%c0_53, %c0_54, %c0_55] : memref<2x1x32xf32, #tpu.memory_space<vmem>>, vector<1x1x32xf32>
    %132 = vector.shape_cast %131 : vector<1x1x32xf32> to vector<1x32xf32>
    %cst_56 = arith.constant dense<0.000000e+00> : vector<16xf32>
    %133 = vector.multi_reduction <add>, %128, %cst_56 [1] : vector<16x32xf32> to vector<16xf32>
    %134 = vector.shape_cast %133 : vector<16xf32> to vector<16x1xf32>
    %cst_57 = arith.constant 3.200000e+01 : f32
    %135 = vector.broadcast %cst_57 : f32 to vector<16x1xf32>
    %136 = arith.divf %134, %135 : vector<16x1xf32>
    %137 = vector.broadcast %136 : vector<16x1xf32> to vector<16x32xf32>
    %138 = arith.subf %128, %137 : vector<16x32xf32>
    %139 = arith.mulf %138, %138 : vector<16x32xf32>
    %cst_58 = arith.constant dense<0.000000e+00> : vector<16xf32>
    %140 = vector.multi_reduction <add>, %139, %cst_58 [1] : vector<16x32xf32> to vector<16xf32>
    %141 = vector.shape_cast %140 : vector<16xf32> to vector<16x1xf32>
    %cst_59 = arith.constant 3.200000e+01 : f32
    %142 = vector.broadcast %cst_59 : f32 to vector<16x1xf32>
    %143 = arith.divf %141, %142 : vector<16x1xf32>
    %cst_60 = arith.constant 9.99999974E-6 : f32
    %144 = vector.broadcast %cst_60 : f32 to vector<16x1xf32>
    %145 = arith.addf %143, %144 : vector<16x1xf32>
    %146 = math.rsqrt %145 : vector<16x1xf32>
    %147 = vector.broadcast %146 : vector<16x1xf32> to vector<16x32xf32>
    %148 = arith.mulf %138, %147 : vector<16x32xf32>
    %149 = vector.broadcast %130 : vector<1x32xf32> to vector<16x32xf32>
    %150 = arith.mulf %148, %149 : vector<16x32xf32>
    %151 = vector.broadcast %132 : vector<1x32xf32> to vector<16x32xf32>
    %152 = arith.addf %150, %151 : vector<16x32xf32>
    %c0_61 = arith.constant 0 : index
    %c0_62 = arith.constant 0 : index
    %c0_63 = arith.constant 0 : index
    %153 = vector.load %arg9[%c0_61, %c0_62, %c0_63] : memref<2x32x64xf32, #tpu.memory_space<vmem>>, vector<1x32x64xf32>
    %154 = vector.shape_cast %153 : vector<1x32x64xf32> to vector<32x64xf32>
    %cst_64 = arith.constant dense<0.000000e+00> : vector<16x64xf32>
    %155 = tpu.matmul %152, %154, %cst_64 {dimension_numbers = #tpu.dot_dimension_numbers<[1], [0], [0], [1], [0, 0, 1, 1], [], []>} : vector<16x32xf32>, vector<32x64xf32>, vector<16x64xf32> -> vector<16x64xf32>
    %c0_65 = arith.constant 0 : index
    %c0_66 = arith.constant 0 : index
    %c0_67 = arith.constant 0 : index
    %156 = vector.load %arg10[%c0_65, %c0_66, %c0_67] : memref<2x1x64xf32, #tpu.memory_space<vmem>>, vector<1x1x64xf32>
    %157 = vector.shape_cast %156 : vector<1x1x64xf32> to vector<1x64xf32>
    %158 = vector.broadcast %157 : vector<1x64xf32> to vector<16x64xf32>
    %159 = arith.addf %155, %158 : vector<16x64xf32>
    %cst_68 = arith.constant 0.000000e+00 : f32
    %160 = vector.broadcast %cst_68 : f32 to vector<16x64xf32>
    %161 = arith.maximumf %159, %160 : vector<16x64xf32>
    %c0_69 = arith.constant 0 : index
    %c0_70 = arith.constant 0 : index
    %c0_71 = arith.constant 0 : index
    %162 = vector.load %arg11[%c0_69, %c0_70, %c0_71] : memref<2x64x32xf32, #tpu.memory_space<vmem>>, vector<1x64x32xf32>
    %163 = vector.shape_cast %162 : vector<1x64x32xf32> to vector<64x32xf32>
    %cst_72 = arith.constant dense<0.000000e+00> : vector<16x32xf32>
    %164 = tpu.matmul %161, %163, %cst_72 {dimension_numbers = #tpu.dot_dimension_numbers<[1], [0], [0], [1], [0, 0, 1, 1], [], []>} : vector<16x64xf32>, vector<64x32xf32>, vector<16x32xf32> -> vector<16x32xf32>
    %c0_73 = arith.constant 0 : index
    %c0_74 = arith.constant 0 : index
    %c0_75 = arith.constant 0 : index
    %165 = vector.load %arg12[%c0_73, %c0_74, %c0_75] : memref<2x1x32xf32, #tpu.memory_space<vmem>>, vector<1x1x32xf32>
    %166 = vector.shape_cast %165 : vector<1x1x32xf32> to vector<1x32xf32>
    %167 = vector.broadcast %166 : vector<1x32xf32> to vector<16x32xf32>
    %168 = arith.addf %164, %167 : vector<16x32xf32>
    %169 = arith.addf %152, %168 : vector<16x32xf32>
    %c0_76 = arith.constant 0 : index
    %c0_77 = arith.constant 0 : index
    %c0_78 = arith.constant 0 : index
    %170 = vector.load %arg13[%c0_76, %c0_77, %c0_78] : memref<2x1x32xf32, #tpu.memory_space<vmem>>, vector<1x1x32xf32>
    %171 = vector.shape_cast %170 : vector<1x1x32xf32> to vector<1x32xf32>
    %c0_79 = arith.constant 0 : index
    %c0_80 = arith.constant 0 : index
    %c0_81 = arith.constant 0 : index
    %172 = vector.load %arg14[%c0_79, %c0_80, %c0_81] : memref<2x1x32xf32, #tpu.memory_space<vmem>>, vector<1x1x32xf32>
    %173 = vector.shape_cast %172 : vector<1x1x32xf32> to vector<1x32xf32>
    %cst_82 = arith.constant dense<0.000000e+00> : vector<16xf32>
    %174 = vector.multi_reduction <add>, %169, %cst_82 [1] : vector<16x32xf32> to vector<16xf32>
    %175 = vector.shape_cast %174 : vector<16xf32> to vector<16x1xf32>
    %cst_83 = arith.constant 3.200000e+01 : f32
    %176 = vector.broadcast %cst_83 : f32 to vector<16x1xf32>
    %177 = arith.divf %175, %176 : vector<16x1xf32>
    %178 = vector.broadcast %177 : vector<16x1xf32> to vector<16x32xf32>
    %179 = arith.subf %169, %178 : vector<16x32xf32>
    %180 = arith.mulf %179, %179 : vector<16x32xf32>
    %cst_84 = arith.constant dense<0.000000e+00> : vector<16xf32>
    %181 = vector.multi_reduction <add>, %180, %cst_84 [1] : vector<16x32xf32> to vector<16xf32>
    %182 = vector.shape_cast %181 : vector<16xf32> to vector<16x1xf32>
    %cst_85 = arith.constant 3.200000e+01 : f32
    %183 = vector.broadcast %cst_85 : f32 to vector<16x1xf32>
    %184 = arith.divf %182, %183 : vector<16x1xf32>
    %cst_86 = arith.constant 9.99999974E-6 : f32
    %185 = vector.broadcast %cst_86 : f32 to vector<16x1xf32>
    %186 = arith.addf %184, %185 : vector<16x1xf32>
    %187 = math.rsqrt %186 : vector<16x1xf32>
    %188 = vector.broadcast %187 : vector<16x1xf32> to vector<16x32xf32>
    %189 = arith.mulf %179, %188 : vector<16x32xf32>
    %190 = vector.broadcast %171 : vector<1x32xf32> to vector<16x32xf32>
    %191 = arith.mulf %189, %190 : vector<16x32xf32>
    %192 = vector.broadcast %173 : vector<1x32xf32> to vector<16x32xf32>
    %193 = arith.addf %191, %192 : vector<16x32xf32>
    %194 = arith.addf %193, %1 : vector<16x32xf32>
    %195 = tpu.concatenate %194, %193 in 0 : vector<16x32xf32>, vector<16x32xf32> -> vector<32x32xf32>
    %c1 = arith.constant 1 : index
    %c0_87 = arith.constant 0 : index
    %c0_88 = arith.constant 0 : index
    %196 = vector.load %arg3[%c1, %c0_87, %c0_88] : memref<2x32x96xf32, #tpu.memory_space<vmem>>, vector<1x32x96xf32>
    %197 = vector.shape_cast %196 : vector<1x32x96xf32> to vector<32x96xf32>
    %cst_89 = arith.constant dense<0.000000e+00> : vector<32x96xf32>
    %198 = tpu.matmul %195, %197, %cst_89 {dimension_numbers = #tpu.dot_dimension_numbers<[1], [0], [0], [1], [0, 0, 1, 1], [], []>} : vector<32x32xf32>, vector<32x96xf32>, vector<32x96xf32> -> vector<32x96xf32>
    %c1_90 = arith.constant 1 : index
    %c0_91 = arith.constant 0 : index
    %c0_92 = arith.constant 0 : index
    %199 = vector.load %arg4[%c1_90, %c0_91, %c0_92] : memref<2x1x96xf32, #tpu.memory_space<vmem>>, vector<1x1x96xf32>
    %200 = vector.shape_cast %199 : vector<1x1x96xf32> to vector<1x96xf32>
    %201 = vector.broadcast %200 : vector<1x96xf32> to vector<32x96xf32>
    %202 = arith.addf %198, %201 : vector<32x96xf32>
    %203 = vector.extract_strided_slice %202 {offsets = [0, 0], sizes = [16, 32], strides = [1, 1]} : vector<32x96xf32> to vector<16x32xf32>
    %204 = vector.extract_strided_slice %202 {offsets = [0, 32], sizes = [16, 32], strides = [1, 1]} : vector<32x96xf32> to vector<16x32xf32>
    %205 = vector.extract_strided_slice %202 {offsets = [16, 64], sizes = [16, 32], strides = [1, 1]} : vector<32x96xf32> to vector<16x32xf32>
    %206 = vector.extract_strided_slice %203 {offsets = [0, 0], sizes = [16, 8], strides = [1, 1]} : vector<16x32xf32> to vector<16x8xf32>
    %207 = vector.extract_strided_slice %204 {offsets = [0, 0], sizes = [16, 8], strides = [1, 1]} : vector<16x32xf32> to vector<16x8xf32>
    %208 = vector.extract_strided_slice %205 {offsets = [0, 0], sizes = [16, 8], strides = [1, 1]} : vector<16x32xf32> to vector<16x8xf32>
    %cst_93 = arith.constant dense<0.000000e+00> : vector<16x16xf32>
    %209 = tpu.matmul %206, %207, %cst_93 {dimension_numbers = #tpu.dot_dimension_numbers<[1], [1], [0], [0], [0, 0, 1, 0], [], []>} : vector<16x8xf32>, vector<16x8xf32>, vector<16x16xf32> -> vector<16x16xf32>
    %210 = arith.addf %209, %39 : vector<16x16xf32>
    %cst_94 = arith.constant dense<0xFF800000> : vector<16xf32>
    %211 = vector.multi_reduction <maximumf>, %210, %cst_94 [1] : vector<16x16xf32> to vector<16xf32>
    %212 = vector.shape_cast %211 : vector<16xf32> to vector<16x1xf32>
    %213 = vector.broadcast %212 : vector<16x1xf32> to vector<16x16xf32>
    %214 = arith.subf %210, %213 : vector<16x16xf32>
    %215 = math.exp %214 : vector<16x16xf32>
    %cst_95 = arith.constant dense<0.000000e+00> : vector<16xf32>
    %216 = vector.multi_reduction <add>, %215, %cst_95 [1] : vector<16x16xf32> to vector<16xf32>
    %217 = vector.shape_cast %216 : vector<16xf32> to vector<16x1xf32>
    %218 = tpu.reciprocal %217 {approx = true} : vector<16x1xf32> -> vector<16x1xf32>
    %219 = vector.broadcast %218 : vector<16x1xf32> to vector<16x16xf32>
    %220 = arith.mulf %215, %219 : vector<16x16xf32>
    %cst_96 = arith.constant dense<0.000000e+00> : vector<16x8xf32>
    %221 = tpu.matmul %220, %208, %cst_96 {dimension_numbers = #tpu.dot_dimension_numbers<[1], [0], [0], [1], [0, 0, 1, 1], [], []>} : vector<16x16xf32>, vector<16x8xf32>, vector<16x8xf32> -> vector<16x8xf32>
    %c0_97 = arith.constant 0 : index
    %c0_98 = arith.constant 0 : index
    %222 = vector.load %arg18[%c0_97, %c0_98] : memref<16x32xf32, #tpu.memory_space<vmem>>, vector<16x8xf32>
    tpu.vector_store %arg18[%c0_97, %c0_98], %221 {strides = array<i32>} : memref<16x32xf32, #tpu.memory_space<vmem>>, vector<16x8xf32>,
    %223 = vector.extract_strided_slice %203 {offsets = [0, 8], sizes = [16, 8], strides = [1, 1]} : vector<16x32xf32> to vector<16x8xf32>
    %224 = vector.extract_strided_slice %204 {offsets = [0, 8], sizes = [16, 8], strides = [1, 1]} : vector<16x32xf32> to vector<16x8xf32>
    %225 = vector.extract_strided_slice %205 {offsets = [0, 8], sizes = [16, 8], strides = [1, 1]} : vector<16x32xf32> to vector<16x8xf32>
    %cst_99 = arith.constant dense<0.000000e+00> : vector<16x16xf32>
    %226 = tpu.matmul %223, %224, %cst_99 {dimension_numbers = #tpu.dot_dimension_numbers<[1], [1], [0], [0], [0, 0, 1, 0], [], []>} : vector<16x8xf32>, vector<16x8xf32>, vector<16x16xf32> -> vector<16x16xf32>
    %227 = arith.addf %226, %39 : vector<16x16xf32>
    %cst_100 = arith.constant dense<0xFF800000> : vector<16xf32>
    %228 = vector.multi_reduction <maximumf>, %227, %cst_100 [1] : vector<16x16xf32> to vector<16xf32>
    %229 = vector.shape_cast %228 : vector<16xf32> to vector<16x1xf32>
    %230 = vector.broadcast %229 : vector<16x1xf32> to vector<16x16xf32>
    %231 = arith.subf %227, %230 : vector<16x16xf32>
    %232 = math.exp %231 : vector<16x16xf32>
    %cst_101 = arith.constant dense<0.000000e+00> : vector<16xf32>
    %233 = vector.multi_reduction <add>, %232, %cst_101 [1] : vector<16x16xf32> to vector<16xf32>
    %234 = vector.shape_cast %233 : vector<16xf32> to vector<16x1xf32>
    %235 = tpu.reciprocal %234 {approx = true} : vector<16x1xf32> -> vector<16x1xf32>
    %236 = vector.broadcast %235 : vector<16x1xf32> to vector<16x16xf32>
    %237 = arith.mulf %232, %236 : vector<16x16xf32>
    %cst_102 = arith.constant dense<0.000000e+00> : vector<16x8xf32>
    %238 = tpu.matmul %237, %225, %cst_102 {dimension_numbers = #tpu.dot_dimension_numbers<[1], [0], [0], [1], [0, 0, 1, 1], [], []>} : vector<16x16xf32>, vector<16x8xf32>, vector<16x8xf32> -> vector<16x8xf32>
    %c0_103 = arith.constant 0 : index
    %c8_104 = arith.constant 8 : index
    %239 = vector.load %arg18[%c0_103, %c8_104] : memref<16x32xf32, #tpu.memory_space<vmem>>, vector<16x8xf32>
    tpu.vector_store %arg18[%c0_103, %c8_104], %238 {strides = array<i32>} : memref<16x32xf32, #tpu.memory_space<vmem>>, vector<16x8xf32>,
    %240 = vector.extract_strided_slice %203 {offsets = [0, 16], sizes = [16, 8], strides = [1, 1]} : vector<16x32xf32> to vector<16x8xf32>
    %241 = vector.extract_strided_slice %204 {offsets = [0, 16], sizes = [16, 8], strides = [1, 1]} : vector<16x32xf32> to vector<16x8xf32>
    %242 = vector.extract_strided_slice %205 {offsets = [0, 16], sizes = [16, 8], strides = [1, 1]} : vector<16x32xf32> to vector<16x8xf32>
    %cst_105 = arith.constant dense<0.000000e+00> : vector<16x16xf32>
    %243 = tpu.matmul %240, %241, %cst_105 {dimension_numbers = #tpu.dot_dimension_numbers<[1], [1], [0], [0], [0, 0, 1, 0], [], []>} : vector<16x8xf32>, vector<16x8xf32>, vector<16x16xf32> -> vector<16x16xf32>
    %244 = arith.addf %243, %39 : vector<16x16xf32>
    %cst_106 = arith.constant dense<0xFF800000> : vector<16xf32>
    %245 = vector.multi_reduction <maximumf>, %244, %cst_106 [1] : vector<16x16xf32> to vector<16xf32>
    %246 = vector.shape_cast %245 : vector<16xf32> to vector<16x1xf32>
    %247 = vector.broadcast %246 : vector<16x1xf32> to vector<16x16xf32>
    %248 = arith.subf %244, %247 : vector<16x16xf32>
    %249 = math.exp %248 : vector<16x16xf32>
    %cst_107 = arith.constant dense<0.000000e+00> : vector<16xf32>
    %250 = vector.multi_reduction <add>, %249, %cst_107 [1] : vector<16x16xf32> to vector<16xf32>
    %251 = vector.shape_cast %250 : vector<16xf32> to vector<16x1xf32>
    %252 = tpu.reciprocal %251 {approx = true} : vector<16x1xf32> -> vector<16x1xf32>
    %253 = vector.broadcast %252 : vector<16x1xf32> to vector<16x16xf32>
    %254 = arith.mulf %249, %253 : vector<16x16xf32>
    %cst_108 = arith.constant dense<0.000000e+00> : vector<16x8xf32>
    %255 = tpu.matmul %254, %242, %cst_108 {dimension_numbers = #tpu.dot_dimension_numbers<[1], [0], [0], [1], [0, 0, 1, 1], [], []>} : vector<16x16xf32>, vector<16x8xf32>, vector<16x8xf32> -> vector<16x8xf32>
    %c0_109 = arith.constant 0 : index
    %c16_110 = arith.constant 16 : index
    %256 = vector.load %arg18[%c0_109, %c16_110] : memref<16x32xf32, #tpu.memory_space<vmem>>, vector<16x8xf32>
    tpu.vector_store %arg18[%c0_109, %c16_110], %255 {strides = array<i32>} : memref<16x32xf32, #tpu.memory_space<vmem>>, vector<16x8xf32>,
    %257 = vector.extract_strided_slice %203 {offsets = [0, 24], sizes = [16, 8], strides = [1, 1]} : vector<16x32xf32> to vector<16x8xf32>
    %258 = vector.extract_strided_slice %204 {offsets = [0, 24], sizes = [16, 8], strides = [1, 1]} : vector<16x32xf32> to vector<16x8xf32>
    %259 = vector.extract_strided_slice %205 {offsets = [0, 24], sizes = [16, 8], strides = [1, 1]} : vector<16x32xf32> to vector<16x8xf32>
    %cst_111 = arith.constant dense<0.000000e+00> : vector<16x16xf32>
    %260 = tpu.matmul %257, %258, %cst_111 {dimension_numbers = #tpu.dot_dimension_numbers<[1], [1], [0], [0], [0, 0, 1, 0], [], []>} : vector<16x8xf32>, vector<16x8xf32>, vector<16x16xf32> -> vector<16x16xf32>
    %261 = arith.addf %260, %39 : vector<16x16xf32>
    %cst_112 = arith.constant dense<0xFF800000> : vector<16xf32>
    %262 = vector.multi_reduction <maximumf>, %261, %cst_112 [1] : vector<16x16xf32> to vector<16xf32>
    %263 = vector.shape_cast %262 : vector<16xf32> to vector<16x1xf32>
    %264 = vector.broadcast %263 : vector<16x1xf32> to vector<16x16xf32>
    %265 = arith.subf %261, %264 : vector<16x16xf32>
    %266 = math.exp %265 : vector<16x16xf32>
    %cst_113 = arith.constant dense<0.000000e+00> : vector<16xf32>
    %267 = vector.multi_reduction <add>, %266, %cst_113 [1] : vector<16x16xf32> to vector<16xf32>
    %268 = vector.shape_cast %267 : vector<16xf32> to vector<16x1xf32>
    %269 = tpu.reciprocal %268 {approx = true} : vector<16x1xf32> -> vector<16x1xf32>
    %270 = vector.broadcast %269 : vector<16x1xf32> to vector<16x16xf32>
    %271 = arith.mulf %266, %270 : vector<16x16xf32>
    %cst_114 = arith.constant dense<0.000000e+00> : vector<16x8xf32>
    %272 = tpu.matmul %271, %259, %cst_114 {dimension_numbers = #tpu.dot_dimension_numbers<[1], [0], [0], [1], [0, 0, 1, 1], [], []>} : vector<16x16xf32>, vector<16x8xf32>, vector<16x8xf32> -> vector<16x8xf32>
    %c0_115 = arith.constant 0 : index
    %c24_116 = arith.constant 24 : index
    %273 = vector.load %arg18[%c0_115, %c24_116] : memref<16x32xf32, #tpu.memory_space<vmem>>, vector<16x8xf32>
    tpu.vector_store %arg18[%c0_115, %c24_116], %272 {strides = array<i32>} : memref<16x32xf32, #tpu.memory_space<vmem>>, vector<16x8xf32>,
    %c0_117 = arith.constant 0 : index
    %c0_118 = arith.constant 0 : index
    %274 = vector.load %arg18[%c0_117, %c0_118] : memref<16x32xf32, #tpu.memory_space<vmem>>, vector<16x32xf32>
    %c1_119 = arith.constant 1 : index
    %c0_120 = arith.constant 0 : index
    %c0_121 = arith.constant 0 : index
    %275 = vector.load %arg5[%c1_119, %c0_120, %c0_121] : memref<2x32x32xf32, #tpu.memory_space<vmem>>, vector<1x32x32xf32>
    %276 = vector.shape_cast %275 : vector<1x32x32xf32> to vector<32x32xf32>
    %cst_122 = arith.constant dense<0.000000e+00> : vector<16x32xf32>
    %277 = tpu.matmul %274, %276, %cst_122 {dimension_numbers = #tpu.dot_dimension_numbers<[1], [0], [0], [1], [0, 0, 1, 1], [], []>} : vector<16x32xf32>, vector<32x32xf32>, vector<16x32xf32> -> vector<16x32xf32>
    %c1_123 = arith.constant 1 : index
    %c0_124 = arith.constant 0 : index
    %c0_125 = arith.constant 0 : index
    %278 = vector.load %arg6[%c1_123, %c0_124, %c0_125] : memref<2x1x32xf32, #tpu.memory_space<vmem>>, vector<1x1x32xf32>
    %279 = vector.shape_cast %278 : vector<1x1x32xf32> to vector<1x32xf32>
    %280 = vector.broadcast %279 : vector<1x32xf32> to vector<16x32xf32>
    %281 = arith.addf %277, %280 : vector<16x32xf32>
    %282 = arith.addf %193, %281 : vector<16x32xf32>
    %c1_126 = arith.constant 1 : index
    %c0_127 = arith.constant 0 : index
    %c0_128 = arith.constant 0 : index
    %283 = vector.load %arg7[%c1_126, %c0_127, %c0_128] : memref<2x1x32xf32, #tpu.memory_space<vmem>>, vector<1x1x32xf32>
    %284 = vector.shape_cast %283 : vector<1x1x32xf32> to vector<1x32xf32>
    %c1_129 = arith.constant 1 : index
    %c0_130 = arith.constant 0 : index
    %c0_131 = arith.constant 0 : index
    %285 = vector.load %arg8[%c1_129, %c0_130, %c0_131] : memref<2x1x32xf32, #tpu.memory_space<vmem>>, vector<1x1x32xf32>
    %286 = vector.shape_cast %285 : vector<1x1x32xf32> to vector<1x32xf32>
    %cst_132 = arith.constant dense<0.000000e+00> : vector<16xf32>
    %287 = vector.multi_reduction <add>, %282, %cst_132 [1] : vector<16x32xf32> to vector<16xf32>
    %288 = vector.shape_cast %287 : vector<16xf32> to vector<16x1xf32>
    %cst_133 = arith.constant 3.200000e+01 : f32
    %289 = vector.broadcast %cst_133 : f32 to vector<16x1xf32>
    %290 = arith.divf %288, %289 : vector<16x1xf32>
    %291 = vector.broadcast %290 : vector<16x1xf32> to vector<16x32xf32>
    %292 = arith.subf %282, %291 : vector<16x32xf32>
    %293 = arith.mulf %292, %292 : vector<16x32xf32>
    %cst_134 = arith.constant dense<0.000000e+00> : vector<16xf32>
    %294 = vector.multi_reduction <add>, %293, %cst_134 [1] : vector<16x32xf32> to vector<16xf32>
    %295 = vector.shape_cast %294 : vector<16xf32> to vector<16x1xf32>
    %cst_135 = arith.constant 3.200000e+01 : f32
    %296 = vector.broadcast %cst_135 : f32 to vector<16x1xf32>
    %297 = arith.divf %295, %296 : vector<16x1xf32>
    %cst_136 = arith.constant 9.99999974E-6 : f32
    %298 = vector.broadcast %cst_136 : f32 to vector<16x1xf32>
    %299 = arith.addf %297, %298 : vector<16x1xf32>
    %300 = math.rsqrt %299 : vector<16x1xf32>
    %301 = vector.broadcast %300 : vector<16x1xf32> to vector<16x32xf32>
    %302 = arith.mulf %292, %301 : vector<16x32xf32>
    %303 = vector.broadcast %284 : vector<1x32xf32> to vector<16x32xf32>
    %304 = arith.mulf %302, %303 : vector<16x32xf32>
    %305 = vector.broadcast %286 : vector<1x32xf32> to vector<16x32xf32>
    %306 = arith.addf %304, %305 : vector<16x32xf32>
    %c1_137 = arith.constant 1 : index
    %c0_138 = arith.constant 0 : index
    %c0_139 = arith.constant 0 : index
    %307 = vector.load %arg9[%c1_137, %c0_138, %c0_139] : memref<2x32x64xf32, #tpu.memory_space<vmem>>, vector<1x32x64xf32>
    %308 = vector.shape_cast %307 : vector<1x32x64xf32> to vector<32x64xf32>
    %cst_140 = arith.constant dense<0.000000e+00> : vector<16x64xf32>
    %309 = tpu.matmul %306, %308, %cst_140 {dimension_numbers = #tpu.dot_dimension_numbers<[1], [0], [0], [1], [0, 0, 1, 1], [], []>} : vector<16x32xf32>, vector<32x64xf32>, vector<16x64xf32> -> vector<16x64xf32>
    %c1_141 = arith.constant 1 : index
    %c0_142 = arith.constant 0 : index
    %c0_143 = arith.constant 0 : index
    %310 = vector.load %arg10[%c1_141, %c0_142, %c0_143] : memref<2x1x64xf32, #tpu.memory_space<vmem>>, vector<1x1x64xf32>
    %311 = vector.shape_cast %310 : vector<1x1x64xf32> to vector<1x64xf32>
    %312 = vector.broadcast %311 : vector<1x64xf32> to vector<16x64xf32>
    %313 = arith.addf %309, %312 : vector<16x64xf32>
    %cst_144 = arith.constant 0.000000e+00 : f32
    %314 = vector.broadcast %cst_144 : f32 to vector<16x64xf32>
    %315 = arith.maximumf %313, %314 : vector<16x64xf32>
    %c1_145 = arith.constant 1 : index
    %c0_146 = arith.constant 0 : index
    %c0_147 = arith.constant 0 : index
    %316 = vector.load %arg11[%c1_145, %c0_146, %c0_147] : memref<2x64x32xf32, #tpu.memory_space<vmem>>, vector<1x64x32xf32>
    %317 = vector.shape_cast %316 : vector<1x64x32xf32> to vector<64x32xf32>
    %cst_148 = arith.constant dense<0.000000e+00> : vector<16x32xf32>
    %318 = tpu.matmul %315, %317, %cst_148 {dimension_numbers = #tpu.dot_dimension_numbers<[1], [0], [0], [1], [0, 0, 1, 1], [], []>} : vector<16x64xf32>, vector<64x32xf32>, vector<16x32xf32> -> vector<16x32xf32>
    %c1_149 = arith.constant 1 : index
    %c0_150 = arith.constant 0 : index
    %c0_151 = arith.constant 0 : index
    %319 = vector.load %arg12[%c1_149, %c0_150, %c0_151] : memref<2x1x32xf32, #tpu.memory_space<vmem>>, vector<1x1x32xf32>
    %320 = vector.shape_cast %319 : vector<1x1x32xf32> to vector<1x32xf32>
    %321 = vector.broadcast %320 : vector<1x32xf32> to vector<16x32xf32>
    %322 = arith.addf %318, %321 : vector<16x32xf32>
    %323 = arith.addf %306, %322 : vector<16x32xf32>
    %c1_152 = arith.constant 1 : index
    %c0_153 = arith.constant 0 : index
    %c0_154 = arith.constant 0 : index
    %324 = vector.load %arg13[%c1_152, %c0_153, %c0_154] : memref<2x1x32xf32, #tpu.memory_space<vmem>>, vector<1x1x32xf32>
    %325 = vector.shape_cast %324 : vector<1x1x32xf32> to vector<1x32xf32>
    %c1_155 = arith.constant 1 : index
    %c0_156 = arith.constant 0 : index
    %c0_157 = arith.constant 0 : index
    %326 = vector.load %arg14[%c1_155, %c0_156, %c0_157] : memref<2x1x32xf32, #tpu.memory_space<vmem>>, vector<1x1x32xf32>
    %327 = vector.shape_cast %326 : vector<1x1x32xf32> to vector<1x32xf32>
    %cst_158 = arith.constant dense<0.000000e+00> : vector<16xf32>
    %328 = vector.multi_reduction <add>, %323, %cst_158 [1] : vector<16x32xf32> to vector<16xf32>
    %329 = vector.shape_cast %328 : vector<16xf32> to vector<16x1xf32>
    %cst_159 = arith.constant 3.200000e+01 : f32
    %330 = vector.broadcast %cst_159 : f32 to vector<16x1xf32>
    %331 = arith.divf %329, %330 : vector<16x1xf32>
    %332 = vector.broadcast %331 : vector<16x1xf32> to vector<16x32xf32>
    %333 = arith.subf %323, %332 : vector<16x32xf32>
    %334 = arith.mulf %333, %333 : vector<16x32xf32>
    %cst_160 = arith.constant dense<0.000000e+00> : vector<16xf32>
    %335 = vector.multi_reduction <add>, %334, %cst_160 [1] : vector<16x32xf32> to vector<16xf32>
    %336 = vector.shape_cast %335 : vector<16xf32> to vector<16x1xf32>
    %cst_161 = arith.constant 3.200000e+01 : f32
    %337 = vector.broadcast %cst_161 : f32 to vector<16x1xf32>
    %338 = arith.divf %336, %337 : vector<16x1xf32>
    %cst_162 = arith.constant 9.99999974E-6 : f32
    %339 = vector.broadcast %cst_162 : f32 to vector<16x1xf32>
    %340 = arith.addf %338, %339 : vector<16x1xf32>
    %341 = math.rsqrt %340 : vector<16x1xf32>
    %342 = vector.broadcast %341 : vector<16x1xf32> to vector<16x32xf32>
    %343 = arith.mulf %333, %342 : vector<16x32xf32>
    %344 = vector.broadcast %325 : vector<1x32xf32> to vector<16x32xf32>
    %345 = arith.mulf %343, %344 : vector<16x32xf32>
    %346 = vector.broadcast %327 : vector<1x32xf32> to vector<16x32xf32>
    %347 = arith.addf %345, %346 : vector<16x32xf32>
    %c0_163 = arith.constant 0 : index
    %c0_164 = arith.constant 0 : index
    %348 = vector.load %arg15[%c0_163, %c0_164] : memref<1x32xf32, #tpu.memory_space<vmem>>, vector<1x32xf32>
    %c0_165 = arith.constant 0 : index
    %c0_166 = arith.constant 0 : index
    %349 = vector.load %arg16[%c0_165, %c0_166] : memref<1x32xf32, #tpu.memory_space<vmem>>, vector<1x32xf32>
    %cst_167 = arith.constant dense<0.000000e+00> : vector<16xf32>
    %350 = vector.multi_reduction <add>, %347, %cst_167 [1] : vector<16x32xf32> to vector<16xf32>
    %351 = vector.shape_cast %350 : vector<16xf32> to vector<16x1xf32>
    %cst_168 = arith.constant 3.200000e+01 : f32
    %352 = vector.broadcast %cst_168 : f32 to vector<16x1xf32>
    %353 = arith.divf %351, %352 : vector<16x1xf32>
    %354 = vector.broadcast %353 : vector<16x1xf32> to vector<16x32xf32>
    %355 = arith.subf %347, %354 : vector<16x32xf32>
    %356 = arith.mulf %355, %355 : vector<16x32xf32>
    %cst_169 = arith.constant dense<0.000000e+00> : vector<16xf32>
    %357 = vector.multi_reduction <add>, %356, %cst_169 [1] : vector<16x32xf32> to vector<16xf32>
    %358 = vector.shape_cast %357 : vector<16xf32> to vector<16x1xf32>
    %cst_170 = arith.constant 3.200000e+01 : f32
    %359 = vector.broadcast %cst_170 : f32 to vector<16x1xf32>
    %360 = arith.divf %358, %359 : vector<16x1xf32>
    %cst_171 = arith.constant 9.99999974E-6 : f32
    %361 = vector.broadcast %cst_171 : f32 to vector<16x1xf32>
    %362 = arith.addf %360, %361 : vector<16x1xf32>
    %363 = math.rsqrt %362 : vector<16x1xf32>
    %364 = vector.broadcast %363 : vector<16x1xf32> to vector<16x32xf32>
    %365 = arith.mulf %355, %364 : vector<16x32xf32>
    %366 = vector.broadcast %348 : vector<1x32xf32> to vector<16x32xf32>
    %367 = arith.mulf %365, %366 : vector<16x32xf32>
    %368 = vector.broadcast %349 : vector<1x32xf32> to vector<16x32xf32>
    %369 = arith.addf %367, %368 : vector<16x32xf32>
    %c0_172 = arith.constant 0 : index
    %c0_173 = arith.constant 0 : index
    %370 = vector.load %arg17[%c0_172, %c0_173] : memref<16x32xf32, #tpu.memory_space<vmem>>, vector<16x32xf32>
    tpu.vector_store %arg17[%c0_172, %c0_173], %369 {strides = array<i32>} : memref<16x32xf32, #tpu.memory_space<vmem>>, vector<16x32xf32>,
    return
  }
  func.func @transform_0(%arg0: i32) -> (i32, i32) {
    %c0_i32 = arith.constant 0 : i32
    %c0_i32_0 = arith.constant 0 : i32
    %c0_i32_1 = arith.constant 0 : i32
    return %c0_i32, %c0_i32_0 : i32, i32
  }
  func.func @transform_1(%arg0: i32) -> (i32, i32) {
    %c0_i32 = arith.constant 0 : i32
    %c0_i32_0 = arith.constant 0 : i32
    %c0_i32_1 = arith.constant 0 : i32
    return %c0_i32, %c0_i32_0 : i32, i32
  }
  func.func @transform_2(%arg0: i32) -> (i32, i32, i32) {
    %c0_i32 = arith.constant 0 : i32
    %c0_i32_0 = arith.constant 0 : i32
    %c0_i32_1 = arith.constant 0 : i32
    %c0_i32_2 = arith.constant 0 : i32
    return %c0_i32, %c0_i32_0, %c0_i32_1 : i32, i32, i32
  }
  func.func @transform_3(%arg0: i32) -> (i32, i32, i32) {
    %c0_i32 = arith.constant 0 : i32
    %c0_i32_0 = arith.constant 0 : i32
    %c0_i32_1 = arith.constant 0 : i32
    %c0_i32_2 = arith.constant 0 : i32
    return %c0_i32, %c0_i32_0, %c0_i32_1 : i32, i32, i32
  }
  func.func @transform_4(%arg0: i32) -> (i32, i32, i32) {
    %c0_i32 = arith.constant 0 : i32
    %c0_i32_0 = arith.constant 0 : i32
    %c0_i32_1 = arith.constant 0 : i32
    %c0_i32_2 = arith.constant 0 : i32
    return %c0_i32, %c0_i32_0, %c0_i32_1 : i32, i32, i32
  }
  func.func @transform_5(%arg0: i32) -> (i32, i32, i32) {
    %c0_i32 = arith.constant 0 : i32
    %c0_i32_0 = arith.constant 0 : i32
    %c0_i32_1 = arith.constant 0 : i32
    %c0_i32_2 = arith.constant 0 : i32
    return %c0_i32, %c0_i32_0, %c0_i32_1 : i32, i32, i32
  }
  func.func @transform_6(%arg0: i32) -> (i32, i32, i32) {
    %c0_i32 = arith.constant 0 : i32
    %c0_i32_0 = arith.constant 0 : i32
    %c0_i32_1 = arith.constant 0 : i32
    %c0_i32_2 = arith.constant 0 : i32
    return %c0_i32, %c0_i32_0, %c0_i32_1 : i32, i32, i32
  }
  func.func @transform_7(%arg0: i32) -> (i32, i32, i32) {
    %c0_i32 = arith.constant 0 : i32
    %c0_i32_0 = arith.constant 0 : i32
    %c0_i32_1 = arith.constant 0 : i32
    %c0_i32_2 = arith.constant 0 : i32
    return %c0_i32, %c0_i32_0, %c0_i32_1 : i32, i32, i32
  }
  func.func @transform_8(%arg0: i32) -> (i32, i32, i32) {
    %c0_i32 = arith.constant 0 : i32
    %c0_i32_0 = arith.constant 0 : i32
    %c0_i32_1 = arith.constant 0 : i32
    %c0_i32_2 = arith.constant 0 : i32
    return %c0_i32, %c0_i32_0, %c0_i32_1 : i32, i32, i32
  }
  func.func @transform_9(%arg0: i32) -> (i32, i32, i32) {
    %c0_i32 = arith.constant 0 : i32
    %c0_i32_0 = arith.constant 0 : i32
    %c0_i32_1 = arith.constant 0 : i32
    %c0_i32_2 = arith.constant 0 : i32
    return %c0_i32, %c0_i32_0, %c0_i32_1 : i32, i32, i32
  }
  func.func @transform_10(%arg0: i32) -> (i32, i32, i32) {
    %c0_i32 = arith.constant 0 : i32
    %c0_i32_0 = arith.constant 0 : i32
    %c0_i32_1 = arith.constant 0 : i32
    %c0_i32_2 = arith.constant 0 : i32
    return %c0_i32, %c0_i32_0, %c0_i32_1 : i32, i32, i32
  }
  func.func @transform_11(%arg0: i32) -> (i32, i32, i32) {
    %c0_i32 = arith.constant 0 : i32
    %c0_i32_0 = arith.constant 0 : i32
    %c0_i32_1 = arith.constant 0 : i32
    %c0_i32_2 = arith.constant 0 : i32
    return %c0_i32, %c0_i32_0, %c0_i32_1 : i32, i32, i32
  }
  func.func @transform_12(%arg0: i32) -> (i32, i32, i32) {
    %c0_i32 = arith.constant 0 : i32
    %c0_i32_0 = arith.constant 0 : i32
    %c0_i32_1 = arith.constant 0 : i32
    %c0_i32_2 = arith.constant 0 : i32
    return %c0_i32, %c0_i32_0, %c0_i32_1 : i32, i32, i32
  }
  func.func @transform_13(%arg0: i32) -> (i32, i32, i32) {
    %c0_i32 = arith.constant 0 : i32
    %c0_i32_0 = arith.constant 0 : i32
    %c0_i32_1 = arith.constant 0 : i32
    %c0_i32_2 = arith.constant 0 : i32
    return %c0_i32, %c0_i32_0, %c0_i32_1 : i32, i32, i32
  }
  func.func @transform_14(%arg0: i32) -> (i32, i32) {
    %c0_i32 = arith.constant 0 : i32
    %c0_i32_0 = arith.constant 0 : i32
    %c0_i32_1 = arith.constant 0 : i32
    return %c0_i32, %c0_i32_0 : i32, i32
  }
  func.func @transform_15(%arg0: i32) -> (i32, i32) {
    %c0_i32 = arith.constant 0 : i32
    %c0_i32_0 = arith.constant 0 : i32
    %c0_i32_1 = arith.constant 0 : i32
    return %c0_i32, %c0_i32_0 : i32, i32
  }
  func.func @transform_16(%arg0: i32) -> (i32, i32) {
    %c0_i32 = arith.constant 0 : i32
    %c0_i32_0 = arith.constant 0 : i32
    %c0_i32_1 = arith.constant 0 : i32
    return %c0_i32, %c0_i32_0 : i32, i32
  }
}

</mosaic_0001>

<llo_original>
// kernel: transformer_encoder.1
$region0: #{transformer_encoder.1}
  #allocation0 [shape = 'u32[]', space=smem, size = 0x4, offset = 0x4, fixed_abs, tag = 'smem constant byte address 0x4 - core index']
  #allocation1 [shape = 'u32[144,128]{1,0:T(1,128)}', space=vmem, size = 0x12000, scoped, tag = 'internal scratch']
  #allocation2 [shape = 'f32[16,32]{1,0:T(8,128)}', space=vmem, size = 0x2000, scoped, tag = 'scratch operand']
  %s0 = inlined_call_operand.vmem [shape: f32[16,32], index: 0, kind: input, shape index: {}]
  %s1 = inlined_call_operand.vmem [shape: f32[16,32], index: 1, kind: input, shape index: {}]
  %s2 = inlined_call_operand.vmem [shape: f32[2,32,96], index: 2, kind: input, shape index: {}]
  %s3 = inlined_call_operand.vmem [shape: f32[2,1,96], index: 3, kind: input, shape index: {}]
  %s4 = inlined_call_operand.vmem [shape: f32[2,32,32], index: 4, kind: input, shape index: {}]
  %s5 = inlined_call_operand.vmem [shape: f32[2,1,32], index: 5, kind: input, shape index: {}]
  %s6 = inlined_call_operand.vmem [shape: f32[2,1,32], index: 6, kind: input, shape index: {}]
  %s7 = inlined_call_operand.vmem [shape: f32[2,1,32], index: 7, kind: input, shape index: {}]
  %s8 = inlined_call_operand.vmem [shape: f32[2,32,64], index: 8, kind: input, shape index: {}]
  %s9 = inlined_call_operand.vmem [shape: f32[2,1,64], index: 9, kind: input, shape index: {}]
  %s10 = inlined_call_operand.vmem [shape: f32[2,64,32], index: 10, kind: input, shape index: {}]
  %s11 = inlined_call_operand.vmem [shape: f32[2,1,32], index: 11, kind: input, shape index: {}]
  %s12 = inlined_call_operand.vmem [shape: f32[2,1,32], index: 12, kind: input, shape index: {}]
  %s13 = inlined_call_operand.vmem [shape: f32[2,1,32], index: 13, kind: input, shape index: {}]
  %s14 = inlined_call_operand.vmem [shape: f32[1,32], index: 14, kind: input, shape index: {}]
  %s15 = inlined_call_operand.vmem [shape: f32[1,32], index: 15, kind: input, shape index: {}]
  %s16 = inlined_call_operand.hbm [shape: f32[16,32], index: 16, kind: output, shape index: {}]
  %s17 = sld [smem:[#allocation0]]
  $region74: #{transformer_encoder.1} parent=0
    _
  %s19 = ssub.s32 1, %s17
  %s20 = scalar_select 0, %s19, %s17
  $region1: #{transformer_encoder.1} parent=0
    #allocation3 [shape = 'u8[8192]{0}', space=vmem, size = 0x2000, scoped, tag = 'output window, operand 0, single buffered']
    #allocation4 [shape = 's32[1]{0}', space=sflag, size = 0x4, scoped, tag = 'scoped memory for transformer_encoder.1']
    %21 = vsyncpa [#allocation4], 0
    // Predicated region
    $region2: #{transformer_encoder.1} parent=1 // pred_check
      _
    $region3: #{transformer_encoder.1} parent=1 // pred_check_branch
      %23 = sbr.rel (0) target = $region5
    $region4: #{transformer_encoder.1} parent=1 // pred_region
      _
    $region5: #{transformer_encoder.1} parent=1 // pred_fallthru
      _
    // Predicated region
    $region6: #{transformer_encoder.1} parent=1 // pred_check
      _
    $region7: #{transformer_encoder.1} parent=1 // pred_check_branch
      %25 = sbr.rel (0) target = $region9
    $region8: #{transformer_encoder.1} parent=1 // pred_region
      _
    $region9: #{transformer_encoder.1} parent=1 // pred_fallthru
      _
    // Predicated region
    $region10: #{transformer_encoder.1} parent=1 // pred_check
      _
    $region11: #{transformer_encoder.1} parent=1 // pred_check_branch
      %27 = sbr.rel (0) target = $region13
    $region12: #{transformer_encoder.1} parent=1 // pred_region
      _
    $region13: #{transformer_encoder.1} parent=1 // pred_fallthru
      _
    // Predicated region
    $region14: #{transformer_encoder.1} parent=1 // pred_check
      _
    $region15: #{transformer_encoder.1} parent=1 // pred_check_branch
      %29 = sbr.rel (0) target = $region17
    $region16: #{transformer_encoder.1} parent=1 // pred_region
      _
    $region17: #{transformer_encoder.1} parent=1 // pred_fallthru
      _
    // Predicated region
    $region18: #{transformer_encoder.1} parent=1 // pred_check
      _
    $region19: #{transformer_encoder.1} parent=1 // pred_check_branch
      %31 = sbr.rel (0) target = $region21
    $region20: #{transformer_encoder.1} parent=1 // pred_region
      _
    $region21: #{transformer_encoder.1} parent=1 // pred_fallthru
      _
    // Predicated region
    $region22: #{transformer_encoder.1} parent=1 // pred_check
      _
    $region23: #{transformer_encoder.1} parent=1 // pred_check_branch
      %33 = sbr.rel (0) target = $region25
    $region24: #{transformer_encoder.1} parent=1 // pred_region
      _
    $region25: #{transformer_encoder.1} parent=1 // pred_fallthru
      _
    // Predicated region
    $region26: #{transformer_encoder.1} parent=1 // pred_check
      _
    $region27: #{transformer_encoder.1} parent=1 // pred_check_branch
      %35 = sbr.rel (0) target = $region29
    $region28: #{transformer_encoder.1} parent=1 // pred_region
      _
    $region29: #{transformer_encoder.1} parent=1 // pred_fallthru
      _
    // Predicated region
    $region30: #{transformer_encoder.1} parent=1 // pred_check
      _
    $region31: #{transformer_encoder.1} parent=1 // pred_check_branch
      %37 = sbr.rel (0) target = $region33
    $region32: #{transformer_encoder.1} parent=1 // pred_region
      _
    $region33: #{transformer_encoder.1} parent=1 // pred_fallthru
      _
    // Predicated region
    $region34: #{transformer_encoder.1} parent=1 // pred_check
      _
    $region35: #{transformer_encoder.1} parent=1 // pred_check_branch
      %39 = sbr.rel (0) target = $region37
    $region36: #{transformer_encoder.1} parent=1 // pred_region
      _
    $region37: #{transformer_encoder.1} parent=1 // pred_fallthru
      _
    // Predicated region
    $region38: #{transformer_encoder.1} parent=1 // pred_check
      _
    $region39: #{transformer_encoder.1} parent=1 // pred_check_branch
      %41 = sbr.rel (0) target = $region41
    $region40: #{transformer_encoder.1} parent=1 // pred_region
      _
    $region41: #{transformer_encoder.1} parent=1 // pred_fallthru
      _
    // Predicated region
    $region42: #{transformer_encoder.1} parent=1 // pred_check
      _
    $region43: #{transformer_encoder.1} parent=1 // pred_check_branch
      %43 = sbr.rel (0) target = $region45
    $region44: #{transformer_encoder.1} parent=1 // pred_region
      _
    $region45: #{transformer_encoder.1} parent=1 // pred_fallthru
      _
    // Predicated region
    $region46: #{transformer_encoder.1} parent=1 // pred_check
      _
    $region47: #{transformer_encoder.1} parent=1 // pred_check_branch
      %45 = sbr.rel (0) target = $region49
    $region48: #{transformer_encoder.1} parent=1 // pred_region
      _
    $region49: #{transformer_encoder.1} parent=1 // pred_fallthru
      _
    // Predicated region
    $region50: #{transformer_encoder.1} parent=1 // pred_check
      _
    $region51: #{transformer_encoder.1} parent=1 // pred_check_branch
      %47 = sbr.rel (0) target = $region53
    $region52: #{transformer_encoder.1} parent=1 // pred_region
      _
    $region53: #{transformer_encoder.1} parent=1 // pred_fallthru
      _
    // Predicated region
    $region54: #{transformer_encoder.1} parent=1 // pred_check
      _
    $region55: #{transformer_encoder.1} parent=1 // pred_check_branch
      %49 = sbr.rel (0) target = $region57
    $region56: #{transformer_encoder.1} parent=1 // pred_region
      _
    $region57: #{transformer_encoder.1} parent=1 // pred_fallthru
      _
    // Predicated region
    $region58: #{transformer_encoder.1} parent=1 // pred_check
      _
    $region59: #{transformer_encoder.1} parent=1 // pred_check_branch
      %51 = sbr.rel (0) target = $region61
    $region60: #{transformer_encoder.1} parent=1 // pred_region
      _
    $region61: #{transformer_encoder.1} parent=1 // pred_fallthru
      _
    // Predicated region
    $region62: #{transformer_encoder.1} parent=1 // pred_check
      _
    $region63: #{transformer_encoder.1} parent=1 // pred_check_branch
      %53 = sbr.rel (0) target = $region65
    $region64: #{transformer_encoder.1} parent=1 // pred_region
      _
    $region65: #{transformer_encoder.1} parent=1 // pred_fallthru
      _
    %v54 = vld [vmem:[%s0] sm:$0xff]
    %v55 = vld [vmem:[%s0 + $0x8] sm:$0xff]
    %v56 = vld [vmem:[%s1] sm:$0xff]
    %v57 = vld [vmem:[%s1 + $0x8] sm:$0xff]
    %v58 = vlaneseq
    %v59 = vshrl.u32 %v58, 7
    %v60 = vadd.s32 %v59, 8
    %vm61 = vcmp.lt.s32.totalorder %v59, 0
    %v62 = vsub.s32 0, %v59
    %v63 = vsel %vm61, %v62, %v59
    %v64 = vshrl.u32 %v63, 1
    %v65 = vand.u32 %v63, 1
    %v66 = vsub.s32 0, %v65
    %v67 = vsel %vm61, %v66, %v65
    %vm68 = vcmp.lt.s32.totalorder %v60, 0
    %v69 = vsub.s32 0, %v60
    %v70 = vsel %vm68, %v69, %v60
    %v71 = vshrl.u32 %v70, 1
    %v72 = vand.u32 %v70, 1
    %v73 = vsub.s32 0, %v72
    %v74 = vsel %vm68, %v73, %v72
    %vm75 = vcmp.ne.s32.totalorder %v67, 0
    %vm76 = vcmp.ne.s32.totalorder %v74, 0
    %vm77 = vcmp.lt.s32.totalorder %v67, 0
    %vm78 = vcmp.lt.s32.totalorder %v74, 0
    %vm79 = vmand %vm77, %vm75
    %vm80 = vmand %vm78, %vm76
    %v81 = vadd.s32 %v67, 2
    %v82 = vadd.s32 %v74, 2
    %v83 = vsel %vm79, %v81, %v67
    %v84 = vsel %vm80, %v82, %v74
    %v85 = vlaneseq
    %v86 = vand.u32 %v85, 127
    %vm87 = vcmp.lt.s32.totalorder %v86, 0
    %v88 = vsub.s32 0, %v86
    %v89 = vsel %vm87, %v88, %v86
    %v90 = vshrl.u32 %v89, 1
    %v91 = vand.u32 %v89, 1
    %v92 = vsub.s32 0, %v91
    %v93 = vsel %vm87, %v92, %v91
    %vm94 = vcmp.ne.s32.totalorder %v93, 0
    %vm95 = vcmp.lt.s32.totalorder %v93, 0
    %vm96 = vmand %vm95, %vm94
    %v97 = vadd.s32 %v93, 2
    %v98 = vsel %vm96, %v97, %v93
    %vm99 = vcmp.eq.s32.totalorder %v83, %v98
    %vm100 = vcmp.eq.s32.totalorder %v84, %v98
    %v101 = vsel %vm99, 0.0, -1e+30
    %v102 = vsel %vm100, 0.0, -1e+30
    %v103 = vadd.f32 %v54, %v56
    %v104 = vadd.f32 %v55, %v57
    %v105 = vld [vmem:[%s2] sm:$0xff]
    %v106 = vld [vmem:[%s2 + $0x8] sm:$0xff]
    %v107 = vld [vmem:[%s2 + $0x10] sm:$0xff]
    %v108 = vld [vmem:[%s2 + $0x18] sm:$0xff]
    %v109 = vld [vmem:[%s3] sm:$0x1]
    %v111 = vlaneseq
    %v112 = vshrl.u32 %v111, 7
    %v113 = vsub.s32 0, %v112
    %v114 = vrot.slane %v109, %v113
    %vm116 = vcmask 261120
    %v118 = vsel %vm116, %v103, 0
    %v121 = vsel %vm116, %v104, 0
    %v124 = vsel %vm116, %v54, 0
    %v127 = vsel %vm116, %v55, 0
    %129 = vmatprep.subr.mxu0 0.0
    %130 = vmatpush1.msra.mxu0 0.0
    %131 = vmatprep.subr.mxu0 0.0
    %132 = vmatpush1.msra.mxu0 0.0
    %133 = vmatprep.subr.mxu0 0.0
    %134 = vmatpush1.msra.mxu0 0.0
    %135 = vmatprep.subr.mxu0 0.0
    %136 = vmatpush1.msra.mxu0 0.0
    %137 = vmatprep.subr.mxu0 0.0
    %138 = vmatpush1.msra.mxu0 0.0
    %139 = vmatprep.subr.mxu0 0.0
    %140 = vmatpush1.msra.mxu0 0.0
    %141 = vmatprep.subr.mxu0 0.0
    %142 = vmatpush1.msra.mxu0 0.0
    %143 = vmatprep.subr.mxu0 0.0
    %144 = vmatpush1.msra.mxu0 0.0
    %145 = vmatprep.subr.mxu0 0.0
    %146 = vmatpush1.msra.mxu0 0.0
    %147 = vmatprep.subr.mxu0 0.0
    %148 = vmatpush1.msra.mxu0 0.0
    %149 = vmatprep.subr.mxu0 0.0
    %150 = vmatpush1.msra.mxu0 0.0
    %151 = vmatprep.subr.mxu0 0.0
    %152 = vmatpush1.msra.mxu0 0.0
    %153 = vmatprep.subr.mxu0 0.0
    %154 = vmatpush1.msra.mxu0 %v108
    %155 = vmatprep.subr.mxu0 0.0
    %156 = vmatpush1.msra.mxu0 %v107
    %157 = vmatprep.subr.mxu0 0.0
    %158 = vmatpush1.msra.mxu0 %v106
    %159 = vmatprep.subr.mxu0 0.0
    %160 = vmatpush1.msra.mxu0 %v105
    %161 = vmatprep.subr.mxu0 0.0
    %162 = vmatpush2.msra.mxu0 0.0
    %163 = vmatprep.subr.mxu0 0.0
    %164 = vmatpush2.msra.mxu0 0.0
    %165 = vmatprep.subr.mxu0 0.0
    %166 = vmatpush2.msra.mxu0 0.0
    %167 = vmatprep.subr.mxu0 0.0
    %168 = vmatpush2.msra.mxu0 0.0
    %169 = vmatprep.subr.mxu0 0.0
    %170 = vmatpush2.msra.mxu0 0.0
    %171 = vmatprep.subr.mxu0 0.0
    %172 = vmatpush2.msra.mxu0 0.0
    %173 = vmatprep.subr.mxu0 0.0
    %174 = vmatpush2.msra.mxu0 0.0
    %175 = vmatprep.subr.mxu0 0.0
    %176 = vmatpush2.msra.mxu0 0.0
    %177 = vmatprep.subr.mxu0 0.0
    %178 = vmatpush2.msra.mxu0 0.0
    %179 = vmatprep.subr.mxu0 0.0
    %180 = vmatpush2.msra.mxu0 0.0
    %181 = vmatprep.subr.mxu0 0.0
    %182 = vmatpush2.msra.mxu0 0.0
    %183 = vmatprep.subr.mxu0 0.0
    %184 = vmatpush2.msra.mxu0 0.0
    %185 = vmatprep.subr.mxu0 0.0
    %186 = vmatpush2.msra.mxu0 0.0
    %187 = vmatprep.subr.mxu0 0.0
    %188 = vmatpush2.msra.mxu0 0.0
    %189 = vmatprep.subr.mxu0 0.0
    %190 = vmatpush2.msra.mxu0 0.0
    %191 = vmatprep.subr.mxu0 0.0
    %192 = vmatpush2.msra.mxu0 0.0
    %193 = vmatprep.mubr.f32.mxu0 0.0
    %194 = vmatmul.mubr.f32.gmra.mxu0 %v118
    %v195 = vpop.f32.mrf.mxu0
    %v196 = vadd.f32 %v114, %v195
    %v197 = vpop.f32.mrf.mxu0
    %198 = vmatprep.mubr.f32.mxu0 0.0
    %199 = vmatmul.mubr.f32.gmra.mxu0 %v121
    %v200 = vpop.f32.mrf.mxu0
    %v201 = vadd.f32 %v114, %v200
    %v202 = vpop.f32.mrf.mxu0
    %203 = vmatprep.mubr.f32.mxu0 0.0
    %204 = vmatmul.mubr.f32.gmra.mxu0 %v124
    %v205 = vpop.f32.mrf.mxu0
    %v206 = vadd.f32 %v114, %v205
    %v207 = vpop.f32.mrf.mxu0
    %208 = vmatprep.mubr.f32.mxu0 0.0
    %209 = vmatmul.mubr.f32.gmra.mxu0 %v127
    %v210 = vpop.f32.mrf.mxu0
    %v211 = vadd.f32 %v114, %v210
    %v212 = vpop.f32.mrf.mxu0
    %213 = vdwg.mxu0
    %216 = vrot.lane.b32.xlu0 %v196, 96
    %v217 = vpop.permute.xlu0 %216
    %218 = vrot.lane.b32.xlu0 %v201, 96
    %v219 = vpop.permute.xlu0 %218
    %vm220 = vcmask 64512
    %v221 = vsel %vm220, %v196, 0
    %v223 = vsel %vm220, %v201, 0
    %v225 = vsel %vm220, %v217, 0
    %v227 = vsel %vm220, %v219, 0
    %229 = vmatprep.subr.mxu0 0.0
    %230 = vmatpush1.xpose.msra.mxu0 0.0
    %231 = vmatprep.subr.mxu0 0.0
    %232 = vmatpush1.xpose.msra.mxu0 0.0
    %233 = vmatprep.subr.mxu0 0.0
    %234 = vmatpush1.xpose.msra.mxu0 0.0
    %235 = vmatprep.subr.mxu0 0.0
    %236 = vmatpush1.xpose.msra.mxu0 0.0
    %237 = vmatprep.subr.mxu0 0.0
    %238 = vmatpush1.xpose.msra.mxu0 0.0
    %239 = vmatprep.subr.mxu0 0.0
    %240 = vmatpush1.xpose.msra.mxu0 0.0
    %241 = vmatprep.subr.mxu0 0.0
    %242 = vmatpush1.xpose.msra.mxu0 0.0
    %243 = vmatprep.subr.mxu0 0.0
    %244 = vmatpush1.xpose.msra.mxu0 0.0
    %245 = vmatprep.subr.mxu0 0.0
    %246 = vmatpush1.xpose.msra.mxu0 0.0
    %247 = vmatprep.subr.mxu0 0.0
    %248 = vmatpush1.xpose.msra.mxu0 0.0
    %249 = vmatprep.subr.mxu0 0.0
    %250 = vmatpush1.xpose.msra.mxu0 0.0
    %251 = vmatprep.subr.mxu0 0.0
    %252 = vmatpush1.xpose.msra.mxu0 0.0
    %253 = vmatprep.subr.mxu0 0.0
    %254 = vmatpush1.xpose.msra.mxu0 0.0
    %255 = vmatprep.subr.mxu0 0.0
    %256 = vmatpush1.xpose.msra.mxu0 0.0
    %257 = vmatprep.subr.mxu0 0.0
    %258 = vmatpush1.xpose.msra.mxu0 %v227
    %259 = vmatprep.subr.mxu0 0.0
    %260 = vmatpush1.xpose.msra.mxu0 %v225
    %261 = vmatprep.subr.mxu0 0.0
    %262 = vmatpush2.xpose.msra.mxu0 0.0
    %263 = vmatprep.subr.mxu0 0.0
    %264 = vmatpush2.xpose.msra.mxu0 0.0
    %265 = vmatprep.subr.mxu0 0.0
    %266 = vmatpush2.xpose.msra.mxu0 0.0
    %267 = vmatprep.subr.mxu0 0.0
    %268 = vmatpush2.xpose.msra.mxu0 0.0
    %269 = vmatprep.subr.mxu0 0.0
    %270 = vmatpush2.xpose.msra.mxu0 0.0
    %271 = vmatprep.subr.mxu0 0.0
    %272 = vmatpush2.xpose.msra.mxu0 0.0
    %273 = vmatprep.subr.mxu0 0.0
    %274 = vmatpush2.xpose.msra.mxu0 0.0
    %275 = vmatprep.subr.mxu0 0.0
    %276 = vmatpush2.xpose.msra.mxu0 0.0
    %277 = vmatprep.subr.mxu0 0.0
    %278 = vmatpush2.xpose.msra.mxu0 0.0
    %279 = vmatprep.subr.mxu0 0.0
    %280 = vmatpush2.xpose.msra.mxu0 0.0
    %281 = vmatprep.subr.mxu0 0.0
    %282 = vmatpush2.xpose.msra.mxu0 0.0
    %283 = vmatprep.subr.mxu0 0.0
    %284 = vmatpush2.xpose.msra.mxu0 0.0
    %285 = vmatprep.subr.mxu0 0.0
    %286 = vmatpush2.xpose.msra.mxu0 0.0
    %287 = vmatprep.subr.mxu0 0.0
    %288 = vmatpush2.xpose.msra.mxu0 0.0
    %289 = vmatprep.subr.mxu0 0.0
    %290 = vmatpush2.xpose.msra.mxu0 0.0
    %291 = vmatprep.subr.mxu0 0.0
    %292 = vmatpush2.xpose.msra.mxu0 0.0
    %293 = vmatprep.mubr.f32.mxu0 0.0
    %294 = vmatmul.mubr.f32.gmra.mxu0 %v221
    %v295 = vpop.f32.mrf.mxu0
    %v296 = vadd.f32 %v101, %v295
    %v297 = vpop.f32.mrf.mxu0
    %298 = vmatprep.mubr.f32.mxu0 0.0
    %299 = vmatmul.mubr.f32.gmra.mxu0 %v223
    %v300 = vpop.f32.mrf.mxu0
    %v301 = vadd.f32 %v102, %v300
    %v302 = vpop.f32.mrf.mxu0
    %303 = vdwg.mxu0
    %vm304 = vcmask 130048
    %v305 = vsel %vm304, %v296, -inf
    %306 = vmax.xlane.f32.xlu0 %v305
    %v307 = vpop.xlane.xlu0 %306
    %v308 = vsel %vm304, %v301, -inf
    %309 = vmax.xlane.f32.xlu0 %v308
    %v310 = vpop.xlane.xlu0 %309
    %v311 = vsub.f32 %v296, %v307
    %v312 = vsub.f32 %v301, %v310
    %v313 = vmul.f32 %v311, 1.442695
    %v314 = vpow.pop %v313
    %v315 = vmul.f32 %v312, 1.442695
    %v316 = vpow.pop %v315
    %v317 = vsel %vm304, %v314, 0.0
    %318 = vadd.xlane.f32.xlu0 %v317
    %v319 = vpop.xlane.xlu0 %318
    %v320 = vsel %vm304, %v316, 0.0
    %321 = vadd.xlane.f32.xlu0 %v320
    %v322 = vpop.xlane.xlu0 %321
    %v323 = vrcp.pop %v319
    %v324 = vrcp.pop %v322
    %v325 = vmul.f32 %v314, %v323
    %v326 = vmul.f32 %v316, %v324
    %329 = vrot.lane.b32.xlu0 %v206, 64
    %v330 = vpop.permute.xlu0 %329
    %331 = vrot.lane.b32.xlu0 %v211, 64
    %v332 = vpop.permute.xlu0 %331
    %v336 = vsel %vm304, %v325, 0
    %v339 = vsel %vm304, %v326, 0
    %341 = vmatprep.subr.mxu0 0.0
    %342 = vmatpush1.msra.mxu0 0.0
    %343 = vmatprep.subr.mxu0 0.0
    %344 = vmatpush1.msra.mxu0 0.0
    %345 = vmatprep.subr.mxu0 0.0
    %346 = vmatpush1.msra.mxu0 0.0
    %347 = vmatprep.subr.mxu0 0.0
    %348 = vmatpush1.msra.mxu0 0.0
    %349 = vmatprep.subr.mxu0 0.0
    %350 = vmatpush1.msra.mxu0 0.0
    %351 = vmatprep.subr.mxu0 0.0
    %352 = vmatpush1.msra.mxu0 0.0
    %353 = vmatprep.subr.mxu0 0.0
    %354 = vmatpush1.msra.mxu0 0.0
    %355 = vmatprep.subr.mxu0 0.0
    %356 = vmatpush1.msra.mxu0 0.0
    %357 = vmatprep.subr.mxu0 0.0
    %358 = vmatpush1.msra.mxu0 0.0
    %359 = vmatprep.subr.mxu0 0.0
    %360 = vmatpush1.msra.mxu0 0.0
    %361 = vmatprep.subr.mxu0 0.0
    %362 = vmatpush1.msra.mxu0 0.0
    %363 = vmatprep.subr.mxu0 0.0
    %364 = vmatpush1.msra.mxu0 0.0
    %365 = vmatprep.subr.mxu0 0.0
    %366 = vmatpush1.msra.mxu0 0.0
    %367 = vmatprep.subr.mxu0 0.0
    %368 = vmatpush1.msra.mxu0 0.0
    %369 = vmatprep.subr.mxu0 0.0
    %370 = vmatpush1.msra.mxu0 %v332
    %371 = vmatprep.subr.mxu0 0.0
    %372 = vmatpush1.msra.mxu0 %v330
    %373 = vmatprep.subr.mxu0 0.0
    %374 = vmatpush2.msra.mxu0 0.0
    %375 = vmatprep.subr.mxu0 0.0
    %376 = vmatpush2.msra.mxu0 0.0
    %377 = vmatprep.subr.mxu0 0.0
    %378 = vmatpush2.msra.mxu0 0.0
    %379 = vmatprep.subr.mxu0 0.0
    %380 = vmatpush2.msra.mxu0 0.0
    %381 = vmatprep.subr.mxu0 0.0
    %382 = vmatpush2.msra.mxu0 0.0
    %383 = vmatprep.subr.mxu0 0.0
    %384 = vmatpush2.msra.mxu0 0.0
    %385 = vmatprep.subr.mxu0 0.0
    %386 = vmatpush2.msra.mxu0 0.0
    %387 = vmatprep.subr.mxu0 0.0
    %388 = vmatpush2.msra.mxu0 0.0
    %389 = vmatprep.subr.mxu0 0.0
    %390 = vmatpush2.msra.mxu0 0.0
    %391 = vmatprep.subr.mxu0 0.0
    %392 = vmatpush2.msra.mxu0 0.0
    %393 = vmatprep.subr.mxu0 0.0
    %394 = vmatpush2.msra.mxu0 0.0
    %395 = vmatprep.subr.mxu0 0.0
    %396 = vmatpush2.msra.mxu0 0.0
    %397 = vmatprep.subr.mxu0 0.0
    %398 = vmatpush2.msra.mxu0 0.0
    %399 = vmatprep.subr.mxu0 0.0
    %400 = vmatpush2.msra.mxu0 0.0
    %401 = vmatprep.subr.mxu0 0.0
    %402 = vmatpush2.msra.mxu0 0.0
    %403 = vmatprep.subr.mxu0 0.0
    %404 = vmatpush2.msra.mxu0 0.0
    %405 = vmatprep.mubr.f32.mxu0 0.0
    %406 = vmatmul.mubr.f32.gmra.mxu0 %v336
    %v407 = vpop.f32.mrf.mxu0
    %v408 = vadd.f32 0.0, %v407
    %v409 = vpop.f32.mrf.mxu0
    %410 = vmatprep.mubr.f32.mxu0 0.0
    %411 = vmatmul.mubr.f32.gmra.mxu0 %v339
    %v412 = vpop.f32.mrf.mxu0
    %v413 = vadd.f32 0.0, %v412
    %v414 = vpop.f32.mrf.mxu0
    %415 = vdwg.mxu0
    %416 = vst.msk [vmem:[#allocation2] sm:$0xff] %vm220, %v408
    %417 = vst.msk [vmem:[#allocation2 + $0x8] sm:$0xff] %vm220, %v413
    %418 = vrot.lane.b32.xlu0 %v196, 120
    %v419 = vpop.permute.xlu0 %418
    %420 = vrot.lane.b32.xlu0 %v201, 120
    %v421 = vpop.permute.xlu0 %420
    %422 = vrot.lane.b32.xlu0 %v196, 88
    %v423 = vpop.permute.xlu0 %422
    %424 = vrot.lane.b32.xlu0 %v201, 88
    %v425 = vpop.permute.xlu0 %424
    %v426 = vsel %vm220, %v419, 0
    %v428 = vsel %vm220, %v421, 0
    %v430 = vsel %vm220, %v423, 0
    %v432 = vsel %vm220, %v425, 0
    %434 = vmatprep.subr.mxu0 0.0
    %435 = vmatpush1.xpose.msra.mxu0 0.0
    %436 = vmatprep.subr.mxu0 0.0
    %437 = vmatpush1.xpose.msra.mxu0 0.0
    %438 = vmatprep.subr.mxu0 0.0
    %439 = vmatpush1.xpose.msra.mxu0 0.0
    %440 = vmatprep.subr.mxu0 0.0
    %441 = vmatpush1.xpose.msra.mxu0 0.0
    %442 = vmatprep.subr.mxu0 0.0
    %443 = vmatpush1.xpose.msra.mxu0 0.0
    %444 = vmatprep.subr.mxu0 0.0
    %445 = vmatpush1.xpose.msra.mxu0 0.0
    %446 = vmatprep.subr.mxu0 0.0
    %447 = vmatpush1.xpose.msra.mxu0 0.0
    %448 = vmatprep.subr.mxu0 0.0
    %449 = vmatpush1.xpose.msra.mxu0 0.0
    %450 = vmatprep.subr.mxu0 0.0
    %451 = vmatpush1.xpose.msra.mxu0 0.0
    %452 = vmatprep.subr.mxu0 0.0
    %453 = vmatpush1.xpose.msra.mxu0 0.0
    %454 = vmatprep.subr.mxu0 0.0
    %455 = vmatpush1.xpose.msra.mxu0 0.0
    %456 = vmatprep.subr.mxu0 0.0
    %457 = vmatpush1.xpose.msra.mxu0 0.0
    %458 = vmatprep.subr.mxu0 0.0
    %459 = vmatpush1.xpose.msra.mxu0 0.0
    %460 = vmatprep.subr.mxu0 0.0
    %461 = vmatpush1.xpose.msra.mxu0 0.0
    %462 = vmatprep.subr.mxu0 0.0
    %463 = vmatpush1.xpose.msra.mxu0 %v432
    %464 = vmatprep.subr.mxu0 0.0
    %465 = vmatpush1.xpose.msra.mxu0 %v430
    %466 = vmatprep.subr.mxu0 0.0
    %467 = vmatpush2.xpose.msra.mxu0 0.0
    %468 = vmatprep.subr.mxu0 0.0
    %469 = vmatpush2.xpose.msra.mxu0 0.0
    %470 = vmatprep.subr.mxu0 0.0
    %471 = vmatpush2.xpose.msra.mxu0 0.0
    %472 = vmatprep.subr.mxu0 0.0
    %473 = vmatpush2.xpose.msra.mxu0 0.0
    %474 = vmatprep.subr.mxu0 0.0
    %475 = vmatpush2.xpose.msra.mxu0 0.0
    %476 = vmatprep.subr.mxu0 0.0
    %477 = vmatpush2.xpose.msra.mxu0 0.0
    %478 = vmatprep.subr.mxu0 0.0
    %479 = vmatpush2.xpose.msra.mxu0 0.0
    %480 = vmatprep.subr.mxu0 0.0
    %481 = vmatpush2.xpose.msra.mxu0 0.0
    %482 = vmatprep.subr.mxu0 0.0
    %483 = vmatpush2.xpose.msra.mxu0 0.0
    %484 = vmatprep.subr.mxu0 0.0
    %485 = vmatpush2.xpose.msra.mxu0 0.0
    %486 = vmatprep.subr.mxu0 0.0
    %487 = vmatpush2.xpose.msra.mxu0 0.0
    %488 = vmatprep.subr.mxu0 0.0
    %489 = vmatpush2.xpose.msra.mxu0 0.0
    %490 = vmatprep.subr.mxu0 0.0
    %491 = vmatpush2.xpose.msra.mxu0 0.0
    %492 = vmatprep.subr.mxu0 0.0
    %493 = vmatpush2.xpose.msra.mxu0 0.0
    %494 = vmatprep.subr.mxu0 0.0
    %495 = vmatpush2.xpose.msra.mxu0 0.0
    %496 = vmatprep.subr.mxu0 0.0
    %497 = vmatpush2.xpose.msra.mxu0 0.0
    %498 = vmatprep.mubr.f32.mxu0 0.0
    %499 = vmatmul.mubr.f32.gmra.mxu0 %v426
    %v500 = vpop.f32.mrf.mxu0
    %v501 = vadd.f32 %v101, %v500
    %v502 = vpop.f32.mrf.mxu0
    %503 = vmatprep.mubr.f32.mxu0 0.0
    %504 = vmatmul.mubr.f32.gmra.mxu0 %v428
    %v505 = vpop.f32.mrf.mxu0
    %v506 = vadd.f32 %v102, %v505
    %v507 = vpop.f32.mrf.mxu0
    %508 = vdwg.mxu0
    %v509 = vsel %vm304, %v501, -inf
    %510 = vmax.xlane.f32.xlu0 %v509
    %v511 = vpop.xlane.xlu0 %510
    %v512 = vsel %vm304, %v506, -inf
    %513 = vmax.xlane.f32.xlu0 %v512
    %v514 = vpop.xlane.xlu0 %513
    %v515 = vsub.f32 %v501, %v511
    %v516 = vsub.f32 %v506, %v514
    %v517 = vmul.f32 %v515, 1.442695
    %v518 = vpow.pop %v517
    %v519 = vmul.f32 %v516, 1.442695
    %v520 = vpow.pop %v519
    %v521 = vsel %vm304, %v518, 0.0
    %522 = vadd.xlane.f32.xlu0 %v521
    %v523 = vpop.xlane.xlu0 %522
    %v524 = vsel %vm304, %v520, 0.0
    %525 = vadd.xlane.f32.xlu0 %v524
    %v526 = vpop.xlane.xlu0 %525
    %v527 = vrcp.pop %v523
    %v528 = vrcp.pop %v526
    %v529 = vmul.f32 %v518, %v527
    %v530 = vmul.f32 %v520, %v528
    %531 = vrot.lane.b32.xlu0 %v206, 56
    %v532 = vpop.permute.xlu0 %531
    %533 = vrot.lane.b32.xlu0 %v211, 56
    %v534 = vpop.permute.xlu0 %533
    %v538 = vsel %vm304, %v529, 0
    %v541 = vsel %vm304, %v530, 0
    %543 = vmatprep.subr.mxu0 0.0
    %544 = vmatpush1.msra.mxu0 0.0
    %545 = vmatprep.subr.mxu0 0.0
    %546 = vmatpush1.msra.mxu0 0.0
    %547 = vmatprep.subr.mxu0 0.0
    %548 = vmatpush1.msra.mxu0 0.0
    %549 = vmatprep.subr.mxu0 0.0
    %550 = vmatpush1.msra.mxu0 0.0
    %551 = vmatprep.subr.mxu0 0.0
    %552 = vmatpush1.msra.mxu0 0.0
    %553 = vmatprep.subr.mxu0 0.0
    %554 = vmatpush1.msra.mxu0 0.0
    %555 = vmatprep.subr.mxu0 0.0
    %556 = vmatpush1.msra.mxu0 0.0
    %557 = vmatprep.subr.mxu0 0.0
    %558 = vmatpush1.msra.mxu0 0.0
    %559 = vmatprep.subr.mxu0 0.0
    %560 = vmatpush1.msra.mxu0 0.0
    %561 = vmatprep.subr.mxu0 0.0
    %562 = vmatpush1.msra.mxu0 0.0
    %563 = vmatprep.subr.mxu0 0.0
    %564 = vmatpush1.msra.mxu0 0.0
    %565 = vmatprep.subr.mxu0 0.0
    %566 = vmatpush1.msra.mxu0 0.0
    %567 = vmatprep.subr.mxu0 0.0
    %568 = vmatpush1.msra.mxu0 0.0
    %569 = vmatprep.subr.mxu0 0.0
    %570 = vmatpush1.msra.mxu0 0.0
    %571 = vmatprep.subr.mxu0 0.0
    %572 = vmatpush1.msra.mxu0 %v534
    %573 = vmatprep.subr.mxu0 0.0
    %574 = vmatpush1.msra.mxu0 %v532
    %575 = vmatprep.subr.mxu0 0.0
    %576 = vmatpush2.msra.mxu0 0.0
    %577 = vmatprep.subr.mxu0 0.0
    %578 = vmatpush2.msra.mxu0 0.0
    %579 = vmatprep.subr.mxu0 0.0
    %580 = vmatpush2.msra.mxu0 0.0
    %581 = vmatprep.subr.mxu0 0.0
    %582 = vmatpush2.msra.mxu0 0.0
    %583 = vmatprep.subr.mxu0 0.0
    %584 = vmatpush2.msra.mxu0 0.0
    %585 = vmatprep.subr.mxu0 0.0
    %586 = vmatpush2.msra.mxu0 0.0
    %587 = vmatprep.subr.mxu0 0.0
    %588 = vmatpush2.msra.mxu0 0.0
    %589 = vmatprep.subr.mxu0 0.0
    %590 = vmatpush2.msra.mxu0 0.0
    %591 = vmatprep.subr.mxu0 0.0
    %592 = vmatpush2.msra.mxu0 0.0
    %593 = vmatprep.subr.mxu0 0.0
    %594 = vmatpush2.msra.mxu0 0.0
    %595 = vmatprep.subr.mxu0 0.0
    %596 = vmatpush2.msra.mxu0 0.0
    %597 = vmatprep.subr.mxu0 0.0
    %598 = vmatpush2.msra.mxu0 0.0
    %599 = vmatprep.subr.mxu0 0.0
    %600 = vmatpush2.msra.mxu0 0.0
    %601 = vmatprep.subr.mxu0 0.0
    %602 = vmatpush2.msra.mxu0 0.0
    %603 = vmatprep.subr.mxu0 0.0
    %604 = vmatpush2.msra.mxu0 0.0
    %605 = vmatprep.subr.mxu0 0.0
    %606 = vmatpush2.msra.mxu0 0.0
    %607 = vmatprep.mubr.f32.mxu0 0.0
    %608 = vmatmul.mubr.f32.gmra.mxu0 %v538
    %v609 = vpop.f32.mrf.mxu0
    %v610 = vadd.f32 0.0, %v609
    %v611 = vpop.f32.mrf.mxu0
    %612 = vmatprep.mubr.f32.mxu0 0.0
    %613 = vmatmul.mubr.f32.gmra.mxu0 %v541
    %v614 = vpop.f32.mrf.mxu0
    %v615 = vadd.f32 0.0, %v614
    %v616 = vpop.f32.mrf.mxu0
    %617 = vdwg.mxu0
    %620 = vrot.lane.b32.xlu0 %v610, 8
    %v621 = vpop.permute.xlu0 %620
    %622 = vrot.lane.b32.xlu0 %v615, 8
    %v623 = vpop.permute.xlu0 %622
    %vm626 = vcmask 130112
    %627 = vst.msk [vmem:[#allocation2] sm:$0xff] %vm626, %v621
    %628 = vst.msk [vmem:[#allocation2 + $0x8] sm:$0xff] %vm626, %v623
    %629 = vrot.lane.b32.xlu0 %v196, 112
    %v630 = vpop.permute.xlu0 %629
    %631 = vrot.lane.b32.xlu0 %v201, 112
    %v632 = vpop.permute.xlu0 %631
    %633 = vrot.lane.b32.xlu0 %v196, 80
    %v634 = vpop.permute.xlu0 %633
    %635 = vrot.lane.b32.xlu0 %v201, 80
    %v636 = vpop.permute.xlu0 %635
    %v637 = vsel %vm220, %v630, 0
    %v639 = vsel %vm220, %v632, 0
    %v641 = vsel %vm220, %v634, 0
    %v643 = vsel %vm220, %v636, 0
    %645 = vmatprep.subr.mxu0 0.0
    %646 = vmatpush1.xpose.msra.mxu0 0.0
    %647 = vmatprep.subr.mxu0 0.0
    %648 = vmatpush1.xpose.msra.mxu0 0.0
    %649 = vmatprep.subr.mxu0 0.0
    %650 = vmatpush1.xpose.msra.mxu0 0.0
    %651 = vmatprep.subr.mxu0 0.0
    %652 = vmatpush1.xpose.msra.mxu0 0.0
    %653 = vmatprep.subr.mxu0 0.0
    %654 = vmatpush1.xpose.msra.mxu0 0.0
    %655 = vmatprep.subr.mxu0 0.0
    %656 = vmatpush1.xpose.msra.mxu0 0.0
    %657 = vmatprep.subr.mxu0 0.0
    %658 = vmatpush1.xpose.msra.mxu0 0.0
    %659 = vmatprep.subr.mxu0 0.0
    %660 = vmatpush1.xpose.msra.mxu0 0.0
    %661 = vmatprep.subr.mxu0 0.0
    %662 = vmatpush1.xpose.msra.mxu0 0.0
    %663 = vmatprep.subr.mxu0 0.0
    %664 = vmatpush1.xpose.msra.mxu0 0.0
    %665 = vmatprep.subr.mxu0 0.0
    %666 = vmatpush1.xpose.msra.mxu0 0.0
    %667 = vmatprep.subr.mxu0 0.0
    %668 = vmatpush1.xpose.msra.mxu0 0.0
    %669 = vmatprep.subr.mxu0 0.0
    %670 = vmatpush1.xpose.msra.mxu0 0.0
    %671 = vmatprep.subr.mxu0 0.0
    %672 = vmatpush1.xpose.msra.mxu0 0.0
    %673 = vmatprep.subr.mxu0 0.0
    %674 = vmatpush1.xpose.msra.mxu0 %v643
    %675 = vmatprep.subr.mxu0 0.0
    %676 = vmatpush1.xpose.msra.mxu0 %v641
    %677 = vmatprep.subr.mxu0 0.0
    %678 = vmatpush2.xpose.msra.mxu0 0.0
    %679 = vmatprep.subr.mxu0 0.0
    %680 = vmatpush2.xpose.msra.mxu0 0.0
    %681 = vmatprep.subr.mxu0 0.0
    %682 = vmatpush2.xpose.msra.mxu0 0.0
    %683 = vmatprep.subr.mxu0 0.0
    %684 = vmatpush2.xpose.msra.mxu0 0.0
    %685 = vmatprep.subr.mxu0 0.0
    %686 = vmatpush2.xpose.msra.mxu0 0.0
    %687 = vmatprep.subr.mxu0 0.0
    %688 = vmatpush2.xpose.msra.mxu0 0.0
    %689 = vmatprep.subr.mxu0 0.0
    %690 = vmatpush2.xpose.msra.mxu0 0.0
    %691 = vmatprep.subr.mxu0 0.0
    %692 = vmatpush2.xpose.msra.mxu0 0.0
    %693 = vmatprep.subr.mxu0 0.0
    %694 = vmatpush2.xpose.msra.mxu0 0.0
    %695 = vmatprep.subr.mxu0 0.0
    %696 = vmatpush2.xpose.msra.mxu0 0.0
    %697 = vmatprep.subr.mxu0 0.0
    %698 = vmatpush2.xpose.msra.mxu0 0.0
    %699 = vmatprep.subr.mxu0 0.0
    %700 = vmatpush2.xpose.msra.mxu0 0.0
    %701 = vmatprep.subr.mxu0 0.0
    %702 = vmatpush2.xpose.msra.mxu0 0.0
    %703 = vmatprep.subr.mxu0 0.0
    %704 = vmatpush2.xpose.msra.mxu0 0.0
    %705 = vmatprep.subr.mxu0 0.0
    %706 = vmatpush2.xpose.msra.mxu0 0.0
    %707 = vmatprep.subr.mxu0 0.0
    %708 = vmatpush2.xpose.msra.mxu0 0.0
    %709 = vmatprep.mubr.f32.mxu0 0.0
    %710 = vmatmul.mubr.f32.gmra.mxu0 %v637
    %v711 = vpop.f32.mrf.mxu0
    %v712 = vadd.f32 %v101, %v711
    %v713 = vpop.f32.mrf.mxu0
    %714 = vmatprep.mubr.f32.mxu0 0.0
    %715 = vmatmul.mubr.f32.gmra.mxu0 %v639
    %v716 = vpop.f32.mrf.mxu0
    %v717 = vadd.f32 %v102, %v716
    %v718 = vpop.f32.mrf.mxu0
    %719 = vdwg.mxu0
    %v720 = vsel %vm304, %v712, -inf
    %721 = vmax.xlane.f32.xlu0 %v720
    %v722 = vpop.xlane.xlu0 %721
    %v723 = vsel %vm304, %v717, -inf
    %724 = vmax.xlane.f32.xlu0 %v723
    %v725 = vpop.xlane.xlu0 %724
    %v726 = vsub.f32 %v712, %v722
    %v727 = vsub.f32 %v717, %v725
    %v728 = vmul.f32 %v726, 1.442695
    %v729 = vpow.pop %v728
    %v730 = vmul.f32 %v727, 1.442695
    %v731 = vpow.pop %v730
    %v732 = vsel %vm304, %v729, 0.0
    %733 = vadd.xlane.f32.xlu0 %v732
    %v734 = vpop.xlane.xlu0 %733
    %v735 = vsel %vm304, %v731, 0.0
    %736 = vadd.xlane.f32.xlu0 %v735
    %v737 = vpop.xlane.xlu0 %736
    %v738 = vrcp.pop %v734
    %v739 = vrcp.pop %v737
    %v740 = vmul.f32 %v729, %v738
    %v741 = vmul.f32 %v731, %v739
    %742 = vrot.lane.b32.xlu0 %v206, 48
    %v743 = vpop.permute.xlu0 %742
    %744 = vrot.lane.b32.xlu0 %v211, 48
    %v745 = vpop.permute.xlu0 %744
    %v749 = vsel %vm304, %v740, 0
    %v752 = vsel %vm304, %v741, 0
    %754 = vmatprep.subr.mxu0 0.0
    %755 = vmatpush1.msra.mxu0 0.0
    %756 = vmatprep.subr.mxu0 0.0
    %757 = vmatpush1.msra.mxu0 0.0
    %758 = vmatprep.subr.mxu0 0.0
    %759 = vmatpush1.msra.mxu0 0.0
    %760 = vmatprep.subr.mxu0 0.0
    %761 = vmatpush1.msra.mxu0 0.0
    %762 = vmatprep.subr.mxu0 0.0
    %763 = vmatpush1.msra.mxu0 0.0
    %764 = vmatprep.subr.mxu0 0.0
    %765 = vmatpush1.msra.mxu0 0.0
    %766 = vmatprep.subr.mxu0 0.0
    %767 = vmatpush1.msra.mxu0 0.0
    %768 = vmatprep.subr.mxu0 0.0
    %769 = vmatpush1.msra.mxu0 0.0
    %770 = vmatprep.subr.mxu0 0.0
    %771 = vmatpush1.msra.mxu0 0.0
    %772 = vmatprep.subr.mxu0 0.0
    %773 = vmatpush1.msra.mxu0 0.0
    %774 = vmatprep.subr.mxu0 0.0
    %775 = vmatpush1.msra.mxu0 0.0
    %776 = vmatprep.subr.mxu0 0.0
    %777 = vmatpush1.msra.mxu0 0.0
    %778 = vmatprep.subr.mxu0 0.0
    %779 = vmatpush1.msra.mxu0 0.0
    %780 = vmatprep.subr.mxu0 0.0
    %781 = vmatpush1.msra.mxu0 0.0
    %782 = vmatprep.subr.mxu0 0.0
    %783 = vmatpush1.msra.mxu0 %v745
    %784 = vmatprep.subr.mxu0 0.0
    %785 = vmatpush1.msra.mxu0 %v743
    %786 = vmatprep.subr.mxu0 0.0
    %787 = vmatpush2.msra.mxu0 0.0
    %788 = vmatprep.subr.mxu0 0.0
    %789 = vmatpush2.msra.mxu0 0.0
    %790 = vmatprep.subr.mxu0 0.0
    %791 = vmatpush2.msra.mxu0 0.0
    %792 = vmatprep.subr.mxu0 0.0
    %793 = vmatpush2.msra.mxu0 0.0
    %794 = vmatprep.subr.mxu0 0.0
    %795 = vmatpush2.msra.mxu0 0.0
    %796 = vmatprep.subr.mxu0 0.0
    %797 = vmatpush2.msra.mxu0 0.0
    %798 = vmatprep.subr.mxu0 0.0
    %799 = vmatpush2.msra.mxu0 0.0
    %800 = vmatprep.subr.mxu0 0.0
    %801 = vmatpush2.msra.mxu0 0.0
    %802 = vmatprep.subr.mxu0 0.0
    %803 = vmatpush2.msra.mxu0 0.0
    %804 = vmatprep.subr.mxu0 0.0
    %805 = vmatpush2.msra.mxu0 0.0
    %806 = vmatprep.subr.mxu0 0.0
    %807 = vmatpush2.msra.mxu0 0.0
    %808 = vmatprep.subr.mxu0 0.0
    %809 = vmatpush2.msra.mxu0 0.0
    %810 = vmatprep.subr.mxu0 0.0
    %811 = vmatpush2.msra.mxu0 0.0
    %812 = vmatprep.subr.mxu0 0.0
    %813 = vmatpush2.msra.mxu0 0.0
    %814 = vmatprep.subr.mxu0 0.0
    %815 = vmatpush2.msra.mxu0 0.0
    %816 = vmatprep.subr.mxu0 0.0
    %817 = vmatpush2.msra.mxu0 0.0
    %818 = vmatprep.mubr.f32.mxu0 0.0
    %819 = vmatmul.mubr.f32.gmra.mxu0 %v749
    %v820 = vpop.f32.mrf.mxu0
    %v821 = vadd.f32 0.0, %v820
    %v822 = vpop.f32.mrf.mxu0
    %823 = vmatprep.mubr.f32.mxu0 0.0
    %824 = vmatmul.mubr.f32.gmra.mxu0 %v752
    %v825 = vpop.f32.mrf.mxu0
    %v826 = vadd.f32 0.0, %v825
    %v827 = vpop.f32.mrf.mxu0
    %828 = vdwg.mxu0
    %831 = vrot.lane.b32.xlu0 %v821, 16
    %v832 = vpop.permute.xlu0 %831
    %833 = vrot.lane.b32.xlu0 %v826, 16
    %v834 = vpop.permute.xlu0 %833
    %vm837 = vcmask 195712
    %838 = vst.msk [vmem:[#allocation2] sm:$0xff] %vm837, %v832
    %839 = vst.msk [vmem:[#allocation2 + $0x8] sm:$0xff] %vm837, %v834
    %840 = vrot.lane.b32.xlu0 %v196, 104
    %v841 = vpop.permute.xlu0 %840
    %842 = vrot.lane.b32.xlu0 %v201, 104
    %v843 = vpop.permute.xlu0 %842
    %844 = vrot.lane.b32.xlu0 %v196, 72
    %v845 = vpop.permute.xlu0 %844
    %846 = vrot.lane.b32.xlu0 %v201, 72
    %v847 = vpop.permute.xlu0 %846
    %v848 = vsel %vm220, %v841, 0
    %v850 = vsel %vm220, %v843, 0
    %v852 = vsel %vm220, %v845, 0
    %v854 = vsel %vm220, %v847, 0
    %856 = vmatprep.subr.mxu0 0.0
    %857 = vmatpush1.xpose.msra.mxu0 0.0
    %858 = vmatprep.subr.mxu0 0.0
    %859 = vmatpush1.xpose.msra.mxu0 0.0
    %860 = vmatprep.subr.mxu0 0.0
    %861 = vmatpush1.xpose.msra.mxu0 0.0
    %862 = vmatprep.subr.mxu0 0.0
    %863 = vmatpush1.xpose.msra.mxu0 0.0
    %864 = vmatprep.subr.mxu0 0.0
    %865 = vmatpush1.xpose.msra.mxu0 0.0
    %866 = vmatprep.subr.mxu0 0.0
    %867 = vmatpush1.xpose.msra.mxu0 0.0
    %868 = vmatprep.subr.mxu0 0.0
    %869 = vmatpush1.xpose.msra.mxu0 0.0
    %870 = vmatprep.subr.mxu0 0.0
    %871 = vmatpush1.xpose.msra.mxu0 0.0
    %872 = vmatprep.subr.mxu0 0.0
    %873 = vmatpush1.xpose.msra.mxu0 0.0
    %874 = vmatprep.subr.mxu0 0.0
    %875 = vmatpush1.xpose.msra.mxu0 0.0
    %876 = vmatprep.subr.mxu0 0.0
    %877 = vmatpush1.xpose.msra.mxu0 0.0
    %878 = vmatprep.subr.mxu0 0.0
    %879 = vmatpush1.xpose.msra.mxu0 0.0
    %880 = vmatprep.subr.mxu0 0.0
    %881 = vmatpush1.xpose.msra.mxu0 0.0
    %882 = vmatprep.subr.mxu0 0.0
    %883 = vmatpush1.xpose.msra.mxu0 0.0
    %884 = vmatprep.subr.mxu0 0.0
    %885 = vmatpush1.xpose.msra.mxu0 %v854
    %886 = vmatprep.subr.mxu0 0.0
    %887 = vmatpush1.xpose.msra.mxu0 %v852
    %888 = vmatprep.subr.mxu0 0.0
    %889 = vmatpush2.xpose.msra.mxu0 0.0
    %890 = vmatprep.subr.mxu0 0.0
    %891 = vmatpush2.xpose.msra.mxu0 0.0
    %892 = vmatprep.subr.mxu0 0.0
    %893 = vmatpush2.xpose.msra.mxu0 0.0
    %894 = vmatprep.subr.mxu0 0.0
    %895 = vmatpush2.xpose.msra.mxu0 0.0
    %896 = vmatprep.subr.mxu0 0.0
    %897 = vmatpush2.xpose.msra.mxu0 0.0
    %898 = vmatprep.subr.mxu0 0.0
    %899 = vmatpush2.xpose.msra.mxu0 0.0
    %900 = vmatprep.subr.mxu0 0.0
    %901 = vmatpush2.xpose.msra.mxu0 0.0
    %902 = vmatprep.subr.mxu0 0.0
    %903 = vmatpush2.xpose.msra.mxu0 0.0
    %904 = vmatprep.subr.mxu0 0.0
    %905 = vmatpush2.xpose.msra.mxu0 0.0
    %906 = vmatprep.subr.mxu0 0.0
    %907 = vmatpush2.xpose.msra.mxu0 0.0
    %908 = vmatprep.subr.mxu0 0.0
    %909 = vmatpush2.xpose.msra.mxu0 0.0
    %910 = vmatprep.subr.mxu0 0.0
    %911 = vmatpush2.xpose.msra.mxu0 0.0
    %912 = vmatprep.subr.mxu0 0.0
    %913 = vmatpush2.xpose.msra.mxu0 0.0
    %914 = vmatprep.subr.mxu0 0.0
    %915 = vmatpush2.xpose.msra.mxu0 0.0
    %916 = vmatprep.subr.mxu0 0.0
    %917 = vmatpush2.xpose.msra.mxu0 0.0
    %918 = vmatprep.subr.mxu0 0.0
    %919 = vmatpush2.xpose.msra.mxu0 0.0
    %920 = vmatprep.mubr.f32.mxu0 0.0
    %921 = vmatmul.mubr.f32.gmra.mxu0 %v848
    %v922 = vpop.f32.mrf.mxu0
    %v923 = vadd.f32 %v101, %v922
    %v924 = vpop.f32.mrf.mxu0
    %925 = vmatprep.mubr.f32.mxu0 0.0
    %926 = vmatmul.mubr.f32.gmra.mxu0 %v850
    %v927 = vpop.f32.mrf.mxu0
    %v928 = vadd.f32 %v102, %v927
    %v929 = vpop.f32.mrf.mxu0
    %930 = vdwg.mxu0
    %v931 = vsel %vm304, %v923, -inf
    %932 = vmax.xlane.f32.xlu0 %v931
    %v933 = vpop.xlane.xlu0 %932
    %v934 = vsel %vm304, %v928, -inf
    %935 = vmax.xlane.f32.xlu0 %v934
    %v936 = vpop.xlane.xlu0 %935
    %v937 = vsub.f32 %v923, %v933
    %v938 = vsub.f32 %v928, %v936
    %v939 = vmul.f32 %v937, 1.442695
    %v940 = vpow.pop %v939
    %v941 = vmul.f32 %v938, 1.442695
    %v942 = vpow.pop %v941
    %v943 = vsel %vm304, %v940, 0.0
    %944 = vadd.xlane.f32.xlu0 %v943
    %v945 = vpop.xlane.xlu0 %944
    %v946 = vsel %vm304, %v942, 0.0
    %947 = vadd.xlane.f32.xlu0 %v946
    %v948 = vpop.xlane.xlu0 %947
    %v949 = vrcp.pop %v945
    %v950 = vrcp.pop %v948
    %v951 = vmul.f32 %v940, %v949
    %v952 = vmul.f32 %v942, %v950
    %953 = vrot.lane.b32.xlu0 %v206, 40
    %v954 = vpop.permute.xlu0 %953
    %955 = vrot.lane.b32.xlu0 %v211, 40
    %v956 = vpop.permute.xlu0 %955
    %v960 = vsel %vm304, %v951, 0
    %v963 = vsel %vm304, %v952, 0
    %965 = vmatprep.subr.mxu0 0.0
    %966 = vmatpush1.msra.mxu0 0.0
    %967 = vmatprep.subr.mxu0 0.0
    %968 = vmatpush1.msra.mxu0 0.0
    %969 = vmatprep.subr.mxu0 0.0
    %970 = vmatpush1.msra.mxu0 0.0
    %971 = vmatprep.subr.mxu0 0.0
    %972 = vmatpush1.msra.mxu0 0.0
    %973 = vmatprep.subr.mxu0 0.0
    %974 = vmatpush1.msra.mxu0 0.0
    %975 = vmatprep.subr.mxu0 0.0
    %976 = vmatpush1.msra.mxu0 0.0
    %977 = vmatprep.subr.mxu0 0.0
    %978 = vmatpush1.msra.mxu0 0.0
    %979 = vmatprep.subr.mxu0 0.0
    %980 = vmatpush1.msra.mxu0 0.0
    %981 = vmatprep.subr.mxu0 0.0
    %982 = vmatpush1.msra.mxu0 0.0
    %983 = vmatprep.subr.mxu0 0.0
    %984 = vmatpush1.msra.mxu0 0.0
    %985 = vmatprep.subr.mxu0 0.0
    %986 = vmatpush1.msra.mxu0 0.0
    %987 = vmatprep.subr.mxu0 0.0
    %988 = vmatpush1.msra.mxu0 0.0
    %989 = vmatprep.subr.mxu0 0.0
    %990 = vmatpush1.msra.mxu0 0.0
    %991 = vmatprep.subr.mxu0 0.0
    %992 = vmatpush1.msra.mxu0 0.0
    %993 = vmatprep.subr.mxu0 0.0
    %994 = vmatpush1.msra.mxu0 %v956
    %995 = vmatprep.subr.mxu0 0.0
    %996 = vmatpush1.msra.mxu0 %v954
    %997 = vmatprep.subr.mxu0 0.0
    %998 = vmatpush2.msra.mxu0 0.0
    %999 = vmatprep.subr.mxu0 0.0
    %1000 = vmatpush2.msra.mxu0 0.0
    %1001 = vmatprep.subr.mxu0 0.0
    %1002 = vmatpush2.msra.mxu0 0.0
    %1003 = vmatprep.subr.mxu0 0.0
    %1004 = vmatpush2.msra.mxu0 0.0
    %1005 = vmatprep.subr.mxu0 0.0
    %1006 = vmatpush2.msra.mxu0 0.0
    %1007 = vmatprep.subr.mxu0 0.0
    %1008 = vmatpush2.msra.mxu0 0.0
    %1009 = vmatprep.subr.mxu0 0.0
    %1010 = vmatpush2.msra.mxu0 0.0
    %1011 = vmatprep.subr.mxu0 0.0
    %1012 = vmatpush2.msra.mxu0 0.0
    %1013 = vmatprep.subr.mxu0 0.0
    %1014 = vmatpush2.msra.mxu0 0.0
    %1015 = vmatprep.subr.mxu0 0.0
    %1016 = vmatpush2.msra.mxu0 0.0
    %1017 = vmatprep.subr.mxu0 0.0
    %1018 = vmatpush2.msra.mxu0 0.0
    %1019 = vmatprep.subr.mxu0 0.0
    %1020 = vmatpush2.msra.mxu0 0.0
    %1021 = vmatprep.subr.mxu0 0.0
    %1022 = vmatpush2.msra.mxu0 0.0
    %1023 = vmatprep.subr.mxu0 0.0
    %1024 = vmatpush2.msra.mxu0 0.0
    %1025 = vmatprep.subr.mxu0 0.0
    %1026 = vmatpush2.msra.mxu0 0.0
    %1027 = vmatprep.subr.mxu0 0.0
    %1028 = vmatpush2.msra.mxu0 0.0
    %1029 = vmatprep.mubr.f32.mxu0 0.0
    %1030 = vmatmul.mubr.f32.gmra.mxu0 %v960
    %v1031 = vpop.f32.mrf.mxu0
    %v1032 = vadd.f32 0.0, %v1031
    %v1033 = vpop.f32.mrf.mxu0
    %1034 = vmatprep.mubr.f32.mxu0 0.0
    %1035 = vmatmul.mubr.f32.gmra.mxu0 %v963
    %v1036 = vpop.f32.mrf.mxu0
    %v1037 = vadd.f32 0.0, %v1036
    %v1038 = vpop.f32.mrf.mxu0
    %1039 = vdwg.mxu0
    %1042 = vrot.lane.b32.xlu0 %v1032, 24
    %v1043 = vpop.permute.xlu0 %1042
    %1044 = vrot.lane.b32.xlu0 %v1037, 24
    %v1045 = vpop.permute.xlu0 %1044
    %vm1048 = vcmask 261312
    %1049 = vst.msk [vmem:[#allocation2] sm:$0xff] %vm1048, %v1043
    %1050 = vst.msk [vmem:[#allocation2 + $0x8] sm:$0xff] %vm1048, %v1045
    %v1051 = vld [vmem:[#allocation2] sm:$0xff]
    %v1052 = vld [vmem:[#allocation2 + $0x8] sm:$0xff]
    %v1053 = vld [vmem:[%s4] sm:$0xff]
    %v1054 = vld [vmem:[%s4 + $0x8] sm:$0xff]
    %v1055 = vld [vmem:[%s4 + $0x10] sm:$0xff]
    %v1056 = vld [vmem:[%s4 + $0x18] sm:$0xff]
    %v1057 = vld [vmem:[%s5] sm:$0x1]
    %v1059 = vlaneseq
    %v1060 = vshrl.u32 %v1059, 7
    %v1061 = vsub.s32 0, %v1060
    %v1062 = vrot.slane %v1057, %v1061
    %v1065 = vsel %vm116, %v1051, 0
    %v1068 = vsel %vm116, %v1052, 0
    %1070 = vmatprep.subr.mxu0 0.0
    %1071 = vmatpush1.msra.mxu0 0.0
    %1072 = vmatprep.subr.mxu0 0.0
    %1073 = vmatpush1.msra.mxu0 0.0
    %1074 = vmatprep.subr.mxu0 0.0
    %1075 = vmatpush1.msra.mxu0 0.0
    %1076 = vmatprep.subr.mxu0 0.0
    %1077 = vmatpush1.msra.mxu0 0.0
    %1078 = vmatprep.subr.mxu0 0.0
    %1079 = vmatpush1.msra.mxu0 0.0
    %1080 = vmatprep.subr.mxu0 0.0
    %1081 = vmatpush1.msra.mxu0 0.0
    %1082 = vmatprep.subr.mxu0 0.0
    %1083 = vmatpush1.msra.mxu0 0.0
    %1084 = vmatprep.subr.mxu0 0.0
    %1085 = vmatpush1.msra.mxu0 0.0
    %1086 = vmatprep.subr.mxu0 0.0
    %1087 = vmatpush1.msra.mxu0 0.0
    %1088 = vmatprep.subr.mxu0 0.0
    %1089 = vmatpush1.msra.mxu0 0.0
    %1090 = vmatprep.subr.mxu0 0.0
    %1091 = vmatpush1.msra.mxu0 0.0
    %1092 = vmatprep.subr.mxu0 0.0
    %1093 = vmatpush1.msra.mxu0 0.0
    %1094 = vmatprep.subr.mxu0 0.0
    %1095 = vmatpush1.msra.mxu0 %v1056
    %1096 = vmatprep.subr.mxu0 0.0
    %1097 = vmatpush1.msra.mxu0 %v1055
    %1098 = vmatprep.subr.mxu0 0.0
    %1099 = vmatpush1.msra.mxu0 %v1054
    %1100 = vmatprep.subr.mxu0 0.0
    %1101 = vmatpush1.msra.mxu0 %v1053
    %1102 = vmatprep.subr.mxu0 0.0
    %1103 = vmatpush2.msra.mxu0 0.0
    %1104 = vmatprep.subr.mxu0 0.0
    %1105 = vmatpush2.msra.mxu0 0.0
    %1106 = vmatprep.subr.mxu0 0.0
    %1107 = vmatpush2.msra.mxu0 0.0
    %1108 = vmatprep.subr.mxu0 0.0
    %1109 = vmatpush2.msra.mxu0 0.0
    %1110 = vmatprep.subr.mxu0 0.0
    %1111 = vmatpush2.msra.mxu0 0.0
    %1112 = vmatprep.subr.mxu0 0.0
    %1113 = vmatpush2.msra.mxu0 0.0
    %1114 = vmatprep.subr.mxu0 0.0
    %1115 = vmatpush2.msra.mxu0 0.0
    %1116 = vmatprep.subr.mxu0 0.0
    %1117 = vmatpush2.msra.mxu0 0.0
    %1118 = vmatprep.subr.mxu0 0.0
    %1119 = vmatpush2.msra.mxu0 0.0
    %1120 = vmatprep.subr.mxu0 0.0
    %1121 = vmatpush2.msra.mxu0 0.0
    %1122 = vmatprep.subr.mxu0 0.0
    %1123 = vmatpush2.msra.mxu0 0.0
    %1124 = vmatprep.subr.mxu0 0.0
    %1125 = vmatpush2.msra.mxu0 0.0
    %1126 = vmatprep.subr.mxu0 0.0
    %1127 = vmatpush2.msra.mxu0 0.0
    %1128 = vmatprep.subr.mxu0 0.0
    %1129 = vmatpush2.msra.mxu0 0.0
    %1130 = vmatprep.subr.mxu0 0.0
    %1131 = vmatpush2.msra.mxu0 0.0
    %1132 = vmatprep.subr.mxu0 0.0
    %1133 = vmatpush2.msra.mxu0 0.0
    %1134 = vmatprep.mubr.f32.mxu0 0.0
    %1135 = vmatmul.mubr.f32.gmra.mxu0 %v1065
    %v1136 = vpop.f32.mrf.mxu0
    %v1137 = vadd.f32 %v1062, %v1136
    %v1138 = vpop.f32.mrf.mxu0
    %1139 = vmatprep.mubr.f32.mxu0 0.0
    %1140 = vmatmul.mubr.f32.gmra.mxu0 %v1068
    %v1141 = vpop.f32.mrf.mxu0
    %v1142 = vadd.f32 %v1062, %v1141
    %v1143 = vpop.f32.mrf.mxu0
    %1144 = vdwg.mxu0
    %v1145 = vadd.f32 %v54, %v1137
    %v1146 = vadd.f32 %v55, %v1142
    %v1147 = vld [vmem:[%s6] sm:$0x1]
    %v1148 = vld [vmem:[%s7] sm:$0x1]
    %v1149 = vsel %vm116, %v1145, 0.0
    %1150 = vadd.xlane.f32.xlu0 %v1149
    %v1151 = vpop.xlane.xlu0 %1150
    %v1152 = vsel %vm116, %v1146, 0.0
    %1153 = vadd.xlane.f32.xlu0 %v1152
    %v1154 = vpop.xlane.xlu0 %1153
    %v1155 = vrcp.pop 32.0
    %v1156 = vmul.f32 %v1151, %v1155
    %v1157 = vmul.f32 %v1154, %v1155
    %v1158 = vsub.f32 %v1145, %v1156
    %v1159 = vsub.f32 %v1146, %v1157
    %v1160 = vmul.f32 %v1158, %v1158
    %v1161 = vmul.f32 %v1159, %v1159
    %v1162 = vsel %vm116, %v1160, 0.0
    %1163 = vadd.xlane.f32.xlu0 %v1162
    %v1164 = vpop.xlane.xlu0 %1163
    %v1165 = vsel %vm116, %v1161, 0.0
    %1166 = vadd.xlane.f32.xlu0 %v1165
    %v1167 = vpop.xlane.xlu0 %1166
    %v1168 = vmul.f32 %v1164, %v1155
    %v1169 = vmul.f32 %v1167, %v1155
    %v1170 = vadd.f32 %v1168, 1e-05
    %v1171 = vadd.f32 %v1169, 1e-05
    %v1172 = vrsqrt.pop %v1170
    %v1173 = vrsqrt.pop %v1171
    %v1174 = vmul.f32 %v1158, %v1172
    %v1175 = vmul.f32 %v1159, %v1173
    %v1177 = vlaneseq
    %v1178 = vshrl.u32 %v1177, 7
    %v1179 = vsub.s32 0, %v1178
    %v1180 = vrot.slane %v1147, %v1179
    %v1182 = vmul.f32 %v1174, %v1180
    %v1183 = vmul.f32 %v1175, %v1180
    %v1185 = vlaneseq
    %v1186 = vshrl.u32 %v1185, 7
    %v1187 = vsub.s32 0, %v1186
    %v1188 = vrot.slane %v1148, %v1187
    %v1190 = vadd.f32 %v1182, %v1188
    %v1191 = vadd.f32 %v1183, %v1188
    %v1192 = vld [vmem:[%s8] sm:$0xff]
    %v1193 = vld [vmem:[%s8 + $0x8] sm:$0xff]
    %v1194 = vld [vmem:[%s8 + $0x10] sm:$0xff]
    %v1195 = vld [vmem:[%s8 + $0x18] sm:$0xff]
    %v1196 = vld [vmem:[%s9] sm:$0x1]
    %v1198 = vlaneseq
    %v1199 = vshrl.u32 %v1198, 7
    %v1200 = vsub.s32 0, %v1199
    %v1201 = vrot.slane %v1196, %v1200
    %v1204 = vsel %vm116, %v1190, 0
    %v1207 = vsel %vm116, %v1191, 0
    %1209 = vmatprep.subr.mxu0 0.0
    %1210 = vmatpush1.msra.mxu0 0.0
    %1211 = vmatprep.subr.mxu0 0.0
    %1212 = vmatpush1.msra.mxu0 0.0
    %1213 = vmatprep.subr.mxu0 0.0
    %1214 = vmatpush1.msra.mxu0 0.0
    %1215 = vmatprep.subr.mxu0 0.0
    %1216 = vmatpush1.msra.mxu0 0.0
    %1217 = vmatprep.subr.mxu0 0.0
    %1218 = vmatpush1.msra.mxu0 0.0
    %1219 = vmatprep.subr.mxu0 0.0
    %1220 = vmatpush1.msra.mxu0 0.0
    %1221 = vmatprep.subr.mxu0 0.0
    %1222 = vmatpush1.msra.mxu0 0.0
    %1223 = vmatprep.subr.mxu0 0.0
    %1224 = vmatpush1.msra.mxu0 0.0
    %1225 = vmatprep.subr.mxu0 0.0
    %1226 = vmatpush1.msra.mxu0 0.0
    %1227 = vmatprep.subr.mxu0 0.0
    %1228 = vmatpush1.msra.mxu0 0.0
    %1229 = vmatprep.subr.mxu0 0.0
    %1230 = vmatpush1.msra.mxu0 0.0
    %1231 = vmatprep.subr.mxu0 0.0
    %1232 = vmatpush1.msra.mxu0 0.0
    %1233 = vmatprep.subr.mxu0 0.0
    %1234 = vmatpush1.msra.mxu0 %v1195
    %1235 = vmatprep.subr.mxu0 0.0
    %1236 = vmatpush1.msra.mxu0 %v1194
    %1237 = vmatprep.subr.mxu0 0.0
    %1238 = vmatpush1.msra.mxu0 %v1193
    %1239 = vmatprep.subr.mxu0 0.0
    %1240 = vmatpush1.msra.mxu0 %v1192
    %1241 = vmatprep.subr.mxu0 0.0
    %1242 = vmatpush2.msra.mxu0 0.0
    %1243 = vmatprep.subr.mxu0 0.0
    %1244 = vmatpush2.msra.mxu0 0.0
    %1245 = vmatprep.subr.mxu0 0.0
    %1246 = vmatpush2.msra.mxu0 0.0
    %1247 = vmatprep.subr.mxu0 0.0
    %1248 = vmatpush2.msra.mxu0 0.0
    %1249 = vmatprep.subr.mxu0 0.0
    %1250 = vmatpush2.msra.mxu0 0.0
    %1251 = vmatprep.subr.mxu0 0.0
    %1252 = vmatpush2.msra.mxu0 0.0
    %1253 = vmatprep.subr.mxu0 0.0
    %1254 = vmatpush2.msra.mxu0 0.0
    %1255 = vmatprep.subr.mxu0 0.0
    %1256 = vmatpush2.msra.mxu0 0.0
    %1257 = vmatprep.subr.mxu0 0.0
    %1258 = vmatpush2.msra.mxu0 0.0
    %1259 = vmatprep.subr.mxu0 0.0
    %1260 = vmatpush2.msra.mxu0 0.0
    %1261 = vmatprep.subr.mxu0 0.0
    %1262 = vmatpush2.msra.mxu0 0.0
    %1263 = vmatprep.subr.mxu0 0.0
    %1264 = vmatpush2.msra.mxu0 0.0
    %1265 = vmatprep.subr.mxu0 0.0
    %1266 = vmatpush2.msra.mxu0 0.0
    %1267 = vmatprep.subr.mxu0 0.0
    %1268 = vmatpush2.msra.mxu0 0.0
    %1269 = vmatprep.subr.mxu0 0.0
    %1270 = vmatpush2.msra.mxu0 0.0
    %1271 = vmatprep.subr.mxu0 0.0
    %1272 = vmatpush2.msra.mxu0 0.0
    %1273 = vmatprep.mubr.f32.mxu0 0.0
    %1274 = vmatmul.mubr.f32.gmra.mxu0 %v1204
    %v1275 = vpop.f32.mrf.mxu0
    %v1276 = vadd.f32 %v1201, %v1275
    %v1277 = vpop.f32.mrf.mxu0
    %1278 = vmatprep.mubr.f32.mxu0 0.0
    %1279 = vmatmul.mubr.f32.gmra.mxu0 %v1207
    %v1280 = vpop.f32.mrf.mxu0
    %v1281 = vadd.f32 %v1201, %v1280
    %v1282 = vpop.f32.mrf.mxu0
    %1283 = vdwg.mxu0
    %v1284 = vmax.f32 %v1276, 0.0
    %v1285 = vmax.f32 %v1281, 0.0
    %v1286 = vld [vmem:[%s10] sm:$0xff]
    %v1287 = vld [vmem:[%s10 + $0x8] sm:$0xff]
    %v1288 = vld [vmem:[%s10 + $0x10] sm:$0xff]
    %v1289 = vld [vmem:[%s10 + $0x18] sm:$0xff]
    %v1290 = vld [vmem:[%s10 + $0x20] sm:$0xff]
    %v1291 = vld [vmem:[%s10 + $0x28] sm:$0xff]
    %v1292 = vld [vmem:[%s10 + $0x30] sm:$0xff]
    %v1293 = vld [vmem:[%s10 + $0x38] sm:$0xff]
    %v1294 = vld [vmem:[%s11] sm:$0x1]
    %v1296 = vlaneseq
    %v1297 = vshrl.u32 %v1296, 7
    %v1298 = vsub.s32 0, %v1297
    %v1299 = vrot.slane %v1294, %v1298
    %vm1301 = vcmask 523264
    %v1303 = vsel %vm1301, %v1284, 0
    %v1306 = vsel %vm1301, %v1285, 0
    %1308 = vmatprep.subr.mxu0 0.0
    %1309 = vmatpush1.msra.mxu0 0.0
    %1310 = vmatprep.subr.mxu0 0.0
    %1311 = vmatpush1.msra.mxu0 0.0
    %1312 = vmatprep.subr.mxu0 0.0
    %1313 = vmatpush1.msra.mxu0 0.0
    %1314 = vmatprep.subr.mxu0 0.0
    %1315 = vmatpush1.msra.mxu0 0.0
    %1316 = vmatprep.subr.mxu0 0.0
    %1317 = vmatpush1.msra.mxu0 0.0
    %1318 = vmatprep.subr.mxu0 0.0
    %1319 = vmatpush1.msra.mxu0 0.0
    %1320 = vmatprep.subr.mxu0 0.0
    %1321 = vmatpush1.msra.mxu0 0.0
    %1322 = vmatprep.subr.mxu0 0.0
    %1323 = vmatpush1.msra.mxu0 0.0
    %1324 = vmatprep.subr.mxu0 0.0
    %1325 = vmatpush1.msra.mxu0 %v1293
    %1326 = vmatprep.subr.mxu0 0.0
    %1327 = vmatpush1.msra.mxu0 %v1292
    %1328 = vmatprep.subr.mxu0 0.0
    %1329 = vmatpush1.msra.mxu0 %v1291
    %1330 = vmatprep.subr.mxu0 0.0
    %1331 = vmatpush1.msra.mxu0 %v1290
    %1332 = vmatprep.subr.mxu0 0.0
    %1333 = vmatpush1.msra.mxu0 %v1289
    %1334 = vmatprep.subr.mxu0 0.0
    %1335 = vmatpush1.msra.mxu0 %v1288
    %1336 = vmatprep.subr.mxu0 0.0
    %1337 = vmatpush1.msra.mxu0 %v1287
    %1338 = vmatprep.subr.mxu0 0.0
    %1339 = vmatpush1.msra.mxu0 %v1286
    %1340 = vmatprep.subr.mxu0 0.0
    %1341 = vmatpush2.msra.mxu0 0.0
    %1342 = vmatprep.subr.mxu0 0.0
    %1343 = vmatpush2.msra.mxu0 0.0
    %1344 = vmatprep.subr.mxu0 0.0
    %1345 = vmatpush2.msra.mxu0 0.0
    %1346 = vmatprep.subr.mxu0 0.0
    %1347 = vmatpush2.msra.mxu0 0.0
    %1348 = vmatprep.subr.mxu0 0.0
    %1349 = vmatpush2.msra.mxu0 0.0
    %1350 = vmatprep.subr.mxu0 0.0
    %1351 = vmatpush2.msra.mxu0 0.0
    %1352 = vmatprep.subr.mxu0 0.0
    %1353 = vmatpush2.msra.mxu0 0.0
    %1354 = vmatprep.subr.mxu0 0.0
    %1355 = vmatpush2.msra.mxu0 0.0
    %1356 = vmatprep.subr.mxu0 0.0
    %1357 = vmatpush2.msra.mxu0 0.0
    %1358 = vmatprep.subr.mxu0 0.0
    %1359 = vmatpush2.msra.mxu0 0.0
    %1360 = vmatprep.subr.mxu0 0.0
    %1361 = vmatpush2.msra.mxu0 0.0
    %1362 = vmatprep.subr.mxu0 0.0
    %1363 = vmatpush2.msra.mxu0 0.0
    %1364 = vmatprep.subr.mxu0 0.0
    %1365 = vmatpush2.msra.mxu0 0.0
    %1366 = vmatprep.subr.mxu0 0.0
    %1367 = vmatpush2.msra.mxu0 0.0
    %1368 = vmatprep.subr.mxu0 0.0
    %1369 = vmatpush2.msra.mxu0 0.0
    %1370 = vmatprep.subr.mxu0 0.0
    %1371 = vmatpush2.msra.mxu0 0.0
    %1372 = vmatprep.mubr.f32.mxu0 0.0
    %1373 = vmatmul.mubr.f32.gmra.mxu0 %v1303
    %v1374 = vpop.f32.mrf.mxu0
    %v1375 = vadd.f32 %v1299, %v1374
    %v1376 = vpop.f32.mrf.mxu0
    %1377 = vmatprep.mubr.f32.mxu0 0.0
    %1378 = vmatmul.mubr.f32.gmra.mxu0 %v1306
    %v1379 = vpop.f32.mrf.mxu0
    %v1380 = vadd.f32 %v1299, %v1379
    %v1381 = vpop.f32.mrf.mxu0
    %1382 = vdwg.mxu0
    %v1383 = vadd.f32 %v1190, %v1375
    %v1384 = vadd.f32 %v1191, %v1380
    %v1385 = vld [vmem:[%s12] sm:$0x1]
    %v1386 = vld [vmem:[%s13] sm:$0x1]
    %v1387 = vsel %vm116, %v1383, 0.0
    %1388 = vadd.xlane.f32.xlu0 %v1387
    %v1389 = vpop.xlane.xlu0 %1388
    %v1390 = vsel %vm116, %v1384, 0.0
    %1391 = vadd.xlane.f32.xlu0 %v1390
    %v1392 = vpop.xlane.xlu0 %1391
    %v1393 = vmul.f32 %v1389, %v1155
    %v1394 = vmul.f32 %v1392, %v1155
    %v1395 = vsub.f32 %v1383, %v1393
    %v1396 = vsub.f32 %v1384, %v1394
    %v1397 = vmul.f32 %v1395, %v1395
    %v1398 = vmul.f32 %v1396, %v1396
    %v1399 = vsel %vm116, %v1397, 0.0
    %1400 = vadd.xlane.f32.xlu0 %v1399
    %v1401 = vpop.xlane.xlu0 %1400
    %v1402 = vsel %vm116, %v1398, 0.0
    %1403 = vadd.xlane.f32.xlu0 %v1402
    %v1404 = vpop.xlane.xlu0 %1403
    %v1405 = vmul.f32 %v1401, %v1155
    %v1406 = vmul.f32 %v1404, %v1155
    %v1407 = vadd.f32 %v1405, 1e-05
    %v1408 = vadd.f32 %v1406, 1e-05
    %v1409 = vrsqrt.pop %v1407
    %v1410 = vrsqrt.pop %v1408
    %v1411 = vmul.f32 %v1395, %v1409
    %v1412 = vmul.f32 %v1396, %v1410
    %v1414 = vlaneseq
    %v1415 = vshrl.u32 %v1414, 7
    %v1416 = vsub.s32 0, %v1415
    %v1417 = vrot.slane %v1385, %v1416
    %v1419 = vmul.f32 %v1411, %v1417
    %v1420 = vmul.f32 %v1412, %v1417
    %v1422 = vlaneseq
    %v1423 = vshrl.u32 %v1422, 7
    %v1424 = vsub.s32 0, %v1423
    %v1425 = vrot.slane %v1386, %v1424
    %v1427 = vadd.f32 %v1419, %v1425
    %v1428 = vadd.f32 %v1420, %v1425
    %v1429 = vadd.f32 %v1427, %v56
    %v1430 = vadd.f32 %v1428, %v57
    %s1431 = scalar_lea.vmem %s2, 32
    %v1432 = vld [vmem:[%s1431] sm:$0xff]
    %v1433 = vld [vmem:[%s1431 + $0x8] sm:$0xff]
    %v1434 = vld [vmem:[%s1431 + $0x10] sm:$0xff]
    %v1435 = vld [vmem:[%s1431 + $0x18] sm:$0xff]
    %s1436 = scalar_lea.vmem %s3, 1
    %v1437 = vld [vmem:[%s1436] sm:$0x1]
    %v1439 = vlaneseq
    %v1440 = vshrl.u32 %v1439, 7
    %v1441 = vsub.s32 0, %v1440
    %v1442 = vrot.slane %v1437, %v1441
    %v1445 = vsel %vm116, %v1429, 0
    %v1448 = vsel %vm116, %v1430, 0
    %v1451 = vsel %vm116, %v1427, 0
    %v1454 = vsel %vm116, %v1428, 0
    %1456 = vmatprep.subr.mxu0 0.0
    %1457 = vmatpush1.msra.mxu0 0.0
    %1458 = vmatprep.subr.mxu0 0.0
    %1459 = vmatpush1.msra.mxu0 0.0
    %1460 = vmatprep.subr.mxu0 0.0
    %1461 = vmatpush1.msra.mxu0 0.0
    %1462 = vmatprep.subr.mxu0 0.0
    %1463 = vmatpush1.msra.mxu0 0.0
    %1464 = vmatprep.subr.mxu0 0.0
    %1465 = vmatpush1.msra.mxu0 0.0
    %1466 = vmatprep.subr.mxu0 0.0
    %1467 = vmatpush1.msra.mxu0 0.0
    %1468 = vmatprep.subr.mxu0 0.0
    %1469 = vmatpush1.msra.mxu0 0.0
    %1470 = vmatprep.subr.mxu0 0.0
    %1471 = vmatpush1.msra.mxu0 0.0
    %1472 = vmatprep.subr.mxu0 0.0
    %1473 = vmatpush1.msra.mxu0 0.0
    %1474 = vmatprep.subr.mxu0 0.0
    %1475 = vmatpush1.msra.mxu0 0.0
    %1476 = vmatprep.subr.mxu0 0.0
    %1477 = vmatpush1.msra.mxu0 0.0
    %1478 = vmatprep.subr.mxu0 0.0
    %1479 = vmatpush1.msra.mxu0 0.0
    %1480 = vmatprep.subr.mxu0 0.0
    %1481 = vmatpush1.msra.mxu0 %v1435
    %1482 = vmatprep.subr.mxu0 0.0
    %1483 = vmatpush1.msra.mxu0 %v1434
    %1484 = vmatprep.subr.mxu0 0.0
    %1485 = vmatpush1.msra.mxu0 %v1433
    %1486 = vmatprep.subr.mxu0 0.0
    %1487 = vmatpush1.msra.mxu0 %v1432
    %1488 = vmatprep.subr.mxu0 0.0
    %1489 = vmatpush2.msra.mxu0 0.0
    %1490 = vmatprep.subr.mxu0 0.0
    %1491 = vmatpush2.msra.mxu0 0.0
    %1492 = vmatprep.subr.mxu0 0.0
    %1493 = vmatpush2.msra.mxu0 0.0
    %1494 = vmatprep.subr.mxu0 0.0
    %1495 = vmatpush2.msra.mxu0 0.0
    %1496 = vmatprep.subr.mxu0 0.0
    %1497 = vmatpush2.msra.mxu0 0.0
    %1498 = vmatprep.subr.mxu0 0.0
    %1499 = vmatpush2.msra.mxu0 0.0
    %1500 = vmatprep.subr.mxu0 0.0
    %1501 = vmatpush2.msra.mxu0 0.0
    %1502 = vmatprep.subr.mxu0 0.0
    %1503 = vmatpush2.msra.mxu0 0.0
    %1504 = vmatprep.subr.mxu0 0.0
    %1505 = vmatpush2.msra.mxu0 0.0
    %1506 = vmatprep.subr.mxu0 0.0
    %1507 = vmatpush2.msra.mxu0 0.0
    %1508 = vmatprep.subr.mxu0 0.0
    %1509 = vmatpush2.msra.mxu0 0.0
    %1510 = vmatprep.subr.mxu0 0.0
    %1511 = vmatpush2.msra.mxu0 0.0
    %1512 = vmatprep.subr.mxu0 0.0
    %1513 = vmatpush2.msra.mxu0 0.0
    %1514 = vmatprep.subr.mxu0 0.0
    %1515 = vmatpush2.msra.mxu0 0.0
    %1516 = vmatprep.subr.mxu0 0.0
    %1517 = vmatpush2.msra.mxu0 0.0
    %1518 = vmatprep.subr.mxu0 0.0
    %1519 = vmatpush2.msra.mxu0 0.0
    %1520 = vmatprep.mubr.f32.mxu0 0.0
    %1521 = vmatmul.mubr.f32.gmra.mxu0 %v1445
    %v1522 = vpop.f32.mrf.mxu0
    %v1523 = vadd.f32 %v1442, %v1522
    %v1524 = vpop.f32.mrf.mxu0
    %1525 = vmatprep.mubr.f32.mxu0 0.0
    %1526 = vmatmul.mubr.f32.gmra.mxu0 %v1448
    %v1527 = vpop.f32.mrf.mxu0
    %v1528 = vadd.f32 %v1442, %v1527
    %v1529 = vpop.f32.mrf.mxu0
    %1530 = vmatprep.mubr.f32.mxu0 0.0
    %1531 = vmatmul.mubr.f32.gmra.mxu0 %v1451
    %v1532 = vpop.f32.mrf.mxu0
    %v1533 = vadd.f32 %v1442, %v1532
    %v1534 = vpop.f32.mrf.mxu0
    %1535 = vmatprep.mubr.f32.mxu0 0.0
    %1536 = vmatmul.mubr.f32.gmra.mxu0 %v1454
    %v1537 = vpop.f32.mrf.mxu0
    %v1538 = vadd.f32 %v1442, %v1537
    %v1539 = vpop.f32.mrf.mxu0
    %1540 = vdwg.mxu0
    %1543 = vrot.lane.b32.xlu0 %v1523, 96
    %v1544 = vpop.permute.xlu0 %1543
    %1545 = vrot.lane.b32.xlu0 %v1528, 96
    %v1546 = vpop.permute.xlu0 %1545
    %v1547 = vsel %vm220, %v1523, 0
    %v1549 = vsel %vm220, %v1528, 0
    %v1551 = vsel %vm220, %v1544, 0
    %v1553 = vsel %vm220, %v1546, 0
    %1555 = vmatprep.subr.mxu0 0.0
    %1556 = vmatpush1.xpose.msra.mxu0 0.0
    %1557 = vmatprep.subr.mxu0 0.0
    %1558 = vmatpush1.xpose.msra.mxu0 0.0
    %1559 = vmatprep.subr.mxu0 0.0
    %1560 = vmatpush1.xpose.msra.mxu0 0.0
    %1561 = vmatprep.subr.mxu0 0.0
    %1562 = vmatpush1.xpose.msra.mxu0 0.0
    %1563 = vmatprep.subr.mxu0 0.0
    %1564 = vmatpush1.xpose.msra.mxu0 0.0
    %1565 = vmatprep.subr.mxu0 0.0
    %1566 = vmatpush1.xpose.msra.mxu0 0.0
    %1567 = vmatprep.subr.mxu0 0.0
    %1568 = vmatpush1.xpose.msra.mxu0 0.0
    %1569 = vmatprep.subr.mxu0 0.0
    %1570 = vmatpush1.xpose.msra.mxu0 0.0
    %1571 = vmatprep.subr.mxu0 0.0
    %1572 = vmatpush1.xpose.msra.mxu0 0.0
    %1573 = vmatprep.subr.mxu0 0.0
    %1574 = vmatpush1.xpose.msra.mxu0 0.0
    %1575 = vmatprep.subr.mxu0 0.0
    %1576 = vmatpush1.xpose.msra.mxu0 0.0
    %1577 = vmatprep.subr.mxu0 0.0
    %1578 = vmatpush1.xpose.msra.mxu0 0.0
    %1579 = vmatprep.subr.mxu0 0.0
    %1580 = vmatpush1.xpose.msra.mxu0 0.0
    %1581 = vmatprep.subr.mxu0 0.0
    %1582 = vmatpush1.xpose.msra.mxu0 0.0
    %1583 = vmatprep.subr.mxu0 0.0
    %1584 = vmatpush1.xpose.msra.mxu0 %v1553
    %1585 = vmatprep.subr.mxu0 0.0
    %1586 = vmatpush1.xpose.msra.mxu0 %v1551
    %1587 = vmatprep.subr.mxu0 0.0
    %1588 = vmatpush2.xpose.msra.mxu0 0.0
    %1589 = vmatprep.subr.mxu0 0.0
    %1590 = vmatpush2.xpose.msra.mxu0 0.0
    %1591 = vmatprep.subr.mxu0 0.0
    %1592 = vmatpush2.xpose.msra.mxu0 0.0
    %1593 = vmatprep.subr.mxu0 0.0
    %1594 = vmatpush2.xpose.msra.mxu0 0.0
    %1595 = vmatprep.subr.mxu0 0.0
    %1596 = vmatpush2.xpose.msra.mxu0 0.0
    %1597 = vmatprep.subr.mxu0 0.0
    %1598 = vmatpush2.xpose.msra.mxu0 0.0
    %1599 = vmatprep.subr.mxu0 0.0
    %1600 = vmatpush2.xpose.msra.mxu0 0.0
    %1601 = vmatprep.subr.mxu0 0.0
    %1602 = vmatpush2.xpose.msra.mxu0 0.0
    %1603 = vmatprep.subr.mxu0 0.0
    %1604 = vmatpush2.xpose.msra.mxu0 0.0
    %1605 = vmatprep.subr.mxu0 0.0
    %1606 = vmatpush2.xpose.msra.mxu0 0.0
    %1607 = vmatprep.subr.mxu0 0.0
    %1608 = vmatpush2.xpose.msra.mxu0 0.0
    %1609 = vmatprep.subr.mxu0 0.0
    %1610 = vmatpush2.xpose.msra.mxu0 0.0
    %1611 = vmatprep.subr.mxu0 0.0
    %1612 = vmatpush2.xpose.msra.mxu0 0.0
    %1613 = vmatprep.subr.mxu0 0.0
    %1614 = vmatpush2.xpose.msra.mxu0 0.0
    %1615 = vmatprep.subr.mxu0 0.0
    %1616 = vmatpush2.xpose.msra.mxu0 0.0
    %1617 = vmatprep.subr.mxu0 0.0
    %1618 = vmatpush2.xpose.msra.mxu0 0.0
    %1619 = vmatprep.mubr.f32.mxu0 0.0
    %1620 = vmatmul.mubr.f32.gmra.mxu0 %v1547
    %v1621 = vpop.f32.mrf.mxu0
    %v1622 = vadd.f32 %v101, %v1621
    %v1623 = vpop.f32.mrf.mxu0
    %1624 = vmatprep.mubr.f32.mxu0 0.0
    %1625 = vmatmul.mubr.f32.gmra.mxu0 %v1549
    %v1626 = vpop.f32.mrf.mxu0
    %v1627 = vadd.f32 %v102, %v1626
    %v1628 = vpop.f32.mrf.mxu0
    %1629 = vdwg.mxu0
    %v1630 = vsel %vm304, %v1622, -inf
    %1631 = vmax.xlane.f32.xlu0 %v1630
    %v1632 = vpop.xlane.xlu0 %1631
    %v1633 = vsel %vm304, %v1627, -inf
    %1634 = vmax.xlane.f32.xlu0 %v1633
    %v1635 = vpop.xlane.xlu0 %1634
    %v1636 = vsub.f32 %v1622, %v1632
    %v1637 = vsub.f32 %v1627, %v1635
    %v1638 = vmul.f32 %v1636, 1.442695
    %v1639 = vpow.pop %v1638
    %v1640 = vmul.f32 %v1637, 1.442695
    %v1641 = vpow.pop %v1640
    %v1642 = vsel %vm304, %v1639, 0.0
    %1643 = vadd.xlane.f32.xlu0 %v1642
    %v1644 = vpop.xlane.xlu0 %1643
    %v1645 = vsel %vm304, %v1641, 0.0
    %1646 = vadd.xlane.f32.xlu0 %v1645
    %v1647 = vpop.xlane.xlu0 %1646
    %v1648 = vrcp.pop %v1644
    %v1649 = vrcp.pop %v1647
    %v1650 = vmul.f32 %v1639, %v1648
    %v1651 = vmul.f32 %v1641, %v1649
    %1654 = vrot.lane.b32.xlu0 %v1533, 64
    %v1655 = vpop.permute.xlu0 %1654
    %1656 = vrot.lane.b32.xlu0 %v1538, 64
    %v1657 = vpop.permute.xlu0 %1656
    %v1661 = vsel %vm304, %v1650, 0
    %v1664 = vsel %vm304, %v1651, 0
    %1666 = vmatprep.subr.mxu0 0.0
    %1667 = vmatpush1.msra.mxu0 0.0
    %1668 = vmatprep.subr.mxu0 0.0
    %1669 = vmatpush1.msra.mxu0 0.0
    %1670 = vmatprep.subr.mxu0 0.0
    %1671 = vmatpush1.msra.mxu0 0.0
    %1672 = vmatprep.subr.mxu0 0.0
    %1673 = vmatpush1.msra.mxu0 0.0
    %1674 = vmatprep.subr.mxu0 0.0
    %1675 = vmatpush1.msra.mxu0 0.0
    %1676 = vmatprep.subr.mxu0 0.0
    %1677 = vmatpush1.msra.mxu0 0.0
    %1678 = vmatprep.subr.mxu0 0.0
    %1679 = vmatpush1.msra.mxu0 0.0
    %1680 = vmatprep.subr.mxu0 0.0
    %1681 = vmatpush1.msra.mxu0 0.0
    %1682 = vmatprep.subr.mxu0 0.0
    %1683 = vmatpush1.msra.mxu0 0.0
    %1684 = vmatprep.subr.mxu0 0.0
    %1685 = vmatpush1.msra.mxu0 0.0
    %1686 = vmatprep.subr.mxu0 0.0
    %1687 = vmatpush1.msra.mxu0 0.0
    %1688 = vmatprep.subr.mxu0 0.0
    %1689 = vmatpush1.msra.mxu0 0.0
    %1690 = vmatprep.subr.mxu0 0.0
    %1691 = vmatpush1.msra.mxu0 0.0
    %1692 = vmatprep.subr.mxu0 0.0
    %1693 = vmatpush1.msra.mxu0 0.0
    %1694 = vmatprep.subr.mxu0 0.0
    %1695 = vmatpush1.msra.mxu0 %v1657
    %1696 = vmatprep.subr.mxu0 0.0
    %1697 = vmatpush1.msra.mxu0 %v1655
    %1698 = vmatprep.subr.mxu0 0.0
    %1699 = vmatpush2.msra.mxu0 0.0
    %1700 = vmatprep.subr.mxu0 0.0
    %1701 = vmatpush2.msra.mxu0 0.0
    %1702 = vmatprep.subr.mxu0 0.0
    %1703 = vmatpush2.msra.mxu0 0.0
    %1704 = vmatprep.subr.mxu0 0.0
    %1705 = vmatpush2.msra.mxu0 0.0
    %1706 = vmatprep.subr.mxu0 0.0
    %1707 = vmatpush2.msra.mxu0 0.0
    %1708 = vmatprep.subr.mxu0 0.0
    %1709 = vmatpush2.msra.mxu0 0.0
    %1710 = vmatprep.subr.mxu0 0.0
    %1711 = vmatpush2.msra.mxu0 0.0
    %1712 = vmatprep.subr.mxu0 0.0
    %1713 = vmatpush2.msra.mxu0 0.0
    %1714 = vmatprep.subr.mxu0 0.0
    %1715 = vmatpush2.msra.mxu0 0.0
    %1716 = vmatprep.subr.mxu0 0.0
    %1717 = vmatpush2.msra.mxu0 0.0
    %1718 = vmatprep.subr.mxu0 0.0
    %1719 = vmatpush2.msra.mxu0 0.0
    %1720 = vmatprep.subr.mxu0 0.0
    %1721 = vmatpush2.msra.mxu0 0.0
    %1722 = vmatprep.subr.mxu0 0.0
    %1723 = vmatpush2.msra.mxu0 0.0
    %1724 = vmatprep.subr.mxu0 0.0
    %1725 = vmatpush2.msra.mxu0 0.0
    %1726 = vmatprep.subr.mxu0 0.0
    %1727 = vmatpush2.msra.mxu0 0.0
    %1728 = vmatprep.subr.mxu0 0.0
    %1729 = vmatpush2.msra.mxu0 0.0
    %1730 = vmatprep.mubr.f32.mxu0 0.0
    %1731 = vmatmul.mubr.f32.gmra.mxu0 %v1661
    %v1732 = vpop.f32.mrf.mxu0
    %v1733 = vadd.f32 0.0, %v1732
    %v1734 = vpop.f32.mrf.mxu0
    %1735 = vmatprep.mubr.f32.mxu0 0.0
    %1736 = vmatmul.mubr.f32.gmra.mxu0 %v1664
    %v1737 = vpop.f32.mrf.mxu0
    %v1738 = vadd.f32 0.0, %v1737
    %v1739 = vpop.f32.mrf.mxu0
    %1740 = vdwg.mxu0
    %1741 = vst.msk [vmem:[#allocation2] sm:$0xff] %vm220, %v1733
    %1742 = vst.msk [vmem:[#allocation2 + $0x8] sm:$0xff] %vm220, %v1738
    %1743 = vrot.lane.b32.xlu0 %v1523, 120
    %v1744 = vpop.permute.xlu0 %1743
    %1745 = vrot.lane.b32.xlu0 %v1528, 120
    %v1746 = vpop.permute.xlu0 %1745
    %1747 = vrot.lane.b32.xlu0 %v1523, 88
    %v1748 = vpop.permute.xlu0 %1747
    %1749 = vrot.lane.b32.xlu0 %v1528, 88
    %v1750 = vpop.permute.xlu0 %1749
    %v1751 = vsel %vm220, %v1744, 0
    %v1753 = vsel %vm220, %v1746, 0
    %v1755 = vsel %vm220, %v1748, 0
    %v1757 = vsel %vm220, %v1750, 0
    %1759 = vmatprep.subr.mxu0 0.0
    %1760 = vmatpush1.xpose.msra.mxu0 0.0
    %1761 = vmatprep.subr.mxu0 0.0
    %1762 = vmatpush1.xpose.msra.mxu0 0.0
    %1763 = vmatprep.subr.mxu0 0.0
    %1764 = vmatpush1.xpose.msra.mxu0 0.0
    %1765 = vmatprep.subr.mxu0 0.0
    %1766 = vmatpush1.xpose.msra.mxu0 0.0
    %1767 = vmatprep.subr.mxu0 0.0
    %1768 = vmatpush1.xpose.msra.mxu0 0.0
    %1769 = vmatprep.subr.mxu0 0.0
    %1770 = vmatpush1.xpose.msra.mxu0 0.0
    %1771 = vmatprep.subr.mxu0 0.0
    %1772 = vmatpush1.xpose.msra.mxu0 0.0
    %1773 = vmatprep.subr.mxu0 0.0
    %1774 = vmatpush1.xpose.msra.mxu0 0.0
    %1775 = vmatprep.subr.mxu0 0.0
    %1776 = vmatpush1.xpose.msra.mxu0 0.0
    %1777 = vmatprep.subr.mxu0 0.0
    %1778 = vmatpush1.xpose.msra.mxu0 0.0
    %1779 = vmatprep.subr.mxu0 0.0
    %1780 = vmatpush1.xpose.msra.mxu0 0.0
    %1781 = vmatprep.subr.mxu0 0.0
    %1782 = vmatpush1.xpose.msra.mxu0 0.0
    %1783 = vmatprep.subr.mxu0 0.0
    %1784 = vmatpush1.xpose.msra.mxu0 0.0
    %1785 = vmatprep.subr.mxu0 0.0
    %1786 = vmatpush1.xpose.msra.mxu0 0.0
    %1787 = vmatprep.subr.mxu0 0.0
    %1788 = vmatpush1.xpose.msra.mxu0 %v1757
    %1789 = vmatprep.subr.mxu0 0.0
    %1790 = vmatpush1.xpose.msra.mxu0 %v1755
    %1791 = vmatprep.subr.mxu0 0.0
    %1792 = vmatpush2.xpose.msra.mxu0 0.0
    %1793 = vmatprep.subr.mxu0 0.0
    %1794 = vmatpush2.xpose.msra.mxu0 0.0
    %1795 = vmatprep.subr.mxu0 0.0
    %1796 = vmatpush2.xpose.msra.mxu0 0.0
    %1797 = vmatprep.subr.mxu0 0.0
    %1798 = vmatpush2.xpose.msra.mxu0 0.0
    %1799 = vmatprep.subr.mxu0 0.0
    %1800 = vmatpush2.xpose.msra.mxu0 0.0
    %1801 = vmatprep.subr.mxu0 0.0
    %1802 = vmatpush2.xpose.msra.mxu0 0.0
    %1803 = vmatprep.subr.mxu0 0.0
    %1804 = vmatpush2.xpose.msra.mxu0 0.0
    %1805 = vmatprep.subr.mxu0 0.0
    %1806 = vmatpush2.xpose.msra.mxu0 0.0
    %1807 = vmatprep.subr.mxu0 0.0
    %1808 = vmatpush2.xpose.msra.mxu0 0.0
    %1809 = vmatprep.subr.mxu0 0.0
    %1810 = vmatpush2.xpose.msra.mxu0 0.0
    %1811 = vmatprep.subr.mxu0 0.0
    %1812 = vmatpush2.xpose.msra.mxu0 0.0
    %1813 = vmatprep.subr.mxu0 0.0
    %1814 = vmatpush2.xpose.msra.mxu0 0.0
    %1815 = vmatprep.subr.mxu0 0.0
    %1816 = vmatpush2.xpose.msra.mxu0 0.0
    %1817 = vmatprep.subr.mxu0 0.0
    %1818 = vmatpush2.xpose.msra.mxu0 0.0
    %1819 = vmatprep.subr.mxu0 0.0
    %1820 = vmatpush2.xpose.msra.mxu0 0.0
    %1821 = vmatprep.subr.mxu0 0.0
    %1822 = vmatpush2.xpose.msra.mxu0 0.0
    %1823 = vmatprep.mubr.f32.mxu0 0.0
    %1824 = vmatmul.mubr.f32.gmra.mxu0 %v1751
    %v1825 = vpop.f32.mrf.mxu0
    %v1826 = vadd.f32 %v101, %v1825
    %v1827 = vpop.f32.mrf.mxu0
    %1828 = vmatprep.mubr.f32.mxu0 0.0
    %1829 = vmatmul.mubr.f32.gmra.mxu0 %v1753
    %v1830 = vpop.f32.mrf.mxu0
    %v1831 = vadd.f32 %v102, %v1830
    %v1832 = vpop.f32.mrf.mxu0
    %1833 = vdwg.mxu0
    %v1834 = vsel %vm304, %v1826, -inf
    %1835 = vmax.xlane.f32.xlu0 %v1834
    %v1836 = vpop.xlane.xlu0 %1835
    %v1837 = vsel %vm304, %v1831, -inf
    %1838 = vmax.xlane.f32.xlu0 %v1837
    %v1839 = vpop.xlane.xlu0 %1838
    %v1840 = vsub.f32 %v1826, %v1836
    %v1841 = vsub.f32 %v1831, %v1839
    %v1842 = vmul.f32 %v1840, 1.442695
    %v1843 = vpow.pop %v1842
    %v1844 = vmul.f32 %v1841, 1.442695
    %v1845 = vpow.pop %v1844
    %v1846 = vsel %vm304, %v1843, 0.0
    %1847 = vadd.xlane.f32.xlu0 %v1846
    %v1848 = vpop.xlane.xlu0 %1847
    %v1849 = vsel %vm304, %v1845, 0.0
    %1850 = vadd.xlane.f32.xlu0 %v1849
    %v1851 = vpop.xlane.xlu0 %1850
    %v1852 = vrcp.pop %v1848
    %v1853 = vrcp.pop %v1851
    %v1854 = vmul.f32 %v1843, %v1852
    %v1855 = vmul.f32 %v1845, %v1853
    %1856 = vrot.lane.b32.xlu0 %v1533, 56
    %v1857 = vpop.permute.xlu0 %1856
    %1858 = vrot.lane.b32.xlu0 %v1538, 56
    %v1859 = vpop.permute.xlu0 %1858
    %v1863 = vsel %vm304, %v1854, 0
    %v1866 = vsel %vm304, %v1855, 0
    %1868 = vmatprep.subr.mxu0 0.0
    %1869 = vmatpush1.msra.mxu0 0.0
    %1870 = vmatprep.subr.mxu0 0.0
    %1871 = vmatpush1.msra.mxu0 0.0
    %1872 = vmatprep.subr.mxu0 0.0
    %1873 = vmatpush1.msra.mxu0 0.0
    %1874 = vmatprep.subr.mxu0 0.0
    %1875 = vmatpush1.msra.mxu0 0.0
    %1876 = vmatprep.subr.mxu0 0.0
    %1877 = vmatpush1.msra.mxu0 0.0
    %1878 = vmatprep.subr.mxu0 0.0
    %1879 = vmatpush1.msra.mxu0 0.0
    %1880 = vmatprep.subr.mxu0 0.0
    %1881 = vmatpush1.msra.mxu0 0.0
    %1882 = vmatprep.subr.mxu0 0.0
    %1883 = vmatpush1.msra.mxu0 0.0
    %1884 = vmatprep.subr.mxu0 0.0
    %1885 = vmatpush1.msra.mxu0 0.0
    %1886 = vmatprep.subr.mxu0 0.0
    %1887 = vmatpush1.msra.mxu0 0.0
    %1888 = vmatprep.subr.mxu0 0.0
    %1889 = vmatpush1.msra.mxu0 0.0
    %1890 = vmatprep.subr.mxu0 0.0
    %1891 = vmatpush1.msra.mxu0 0.0
    %1892 = vmatprep.subr.mxu0 0.0
    %1893 = vmatpush1.msra.mxu0 0.0
    %1894 = vmatprep.subr.mxu0 0.0
    %1895 = vmatpush1.msra.mxu0 0.0
    %1896 = vmatprep.subr.mxu0 0.0
    %1897 = vmatpush1.msra.mxu0 %v1859
    %1898 = vmatprep.subr.mxu0 0.0
    %1899 = vmatpush1.msra.mxu0 %v1857
    %1900 = vmatprep.subr.mxu0 0.0
    %1901 = vmatpush2.msra.mxu0 0.0
    %1902 = vmatprep.subr.mxu0 0.0
    %1903 = vmatpush2.msra.mxu0 0.0
    %1904 = vmatprep.subr.mxu0 0.0
    %1905 = vmatpush2.msra.mxu0 0.0
    %1906 = vmatprep.subr.mxu0 0.0
    %1907 = vmatpush2.msra.mxu0 0.0
    %1908 = vmatprep.subr.mxu0 0.0
    %1909 = vmatpush2.msra.mxu0 0.0
    %1910 = vmatprep.subr.mxu0 0.0
    %1911 = vmatpush2.msra.mxu0 0.0
    %1912 = vmatprep.subr.mxu0 0.0
    %1913 = vmatpush2.msra.mxu0 0.0
    %1914 = vmatprep.subr.mxu0 0.0
    %1915 = vmatpush2.msra.mxu0 0.0
    %1916 = vmatprep.subr.mxu0 0.0
    %1917 = vmatpush2.msra.mxu0 0.0
    %1918 = vmatprep.subr.mxu0 0.0
    %1919 = vmatpush2.msra.mxu0 0.0
    %1920 = vmatprep.subr.mxu0 0.0
    %1921 = vmatpush2.msra.mxu0 0.0
    %1922 = vmatprep.subr.mxu0 0.0
    %1923 = vmatpush2.msra.mxu0 0.0
    %1924 = vmatprep.subr.mxu0 0.0
    %1925 = vmatpush2.msra.mxu0 0.0
    %1926 = vmatprep.subr.mxu0 0.0
    %1927 = vmatpush2.msra.mxu0 0.0
    %1928 = vmatprep.subr.mxu0 0.0
    %1929 = vmatpush2.msra.mxu0 0.0
    %1930 = vmatprep.subr.mxu0 0.0
    %1931 = vmatpush2.msra.mxu0 0.0
    %1932 = vmatprep.mubr.f32.mxu0 0.0
    %1933 = vmatmul.mubr.f32.gmra.mxu0 %v1863
    %v1934 = vpop.f32.mrf.mxu0
    %v1935 = vadd.f32 0.0, %v1934
    %v1936 = vpop.f32.mrf.mxu0
    %1937 = vmatprep.mubr.f32.mxu0 0.0
    %1938 = vmatmul.mubr.f32.gmra.mxu0 %v1866
    %v1939 = vpop.f32.mrf.mxu0
    %v1940 = vadd.f32 0.0, %v1939
    %v1941 = vpop.f32.mrf.mxu0
    %1942 = vdwg.mxu0
    %1945 = vrot.lane.b32.xlu0 %v1935, 8
    %v1946 = vpop.permute.xlu0 %1945
    %1947 = vrot.lane.b32.xlu0 %v1940, 8
    %v1948 = vpop.permute.xlu0 %1947
    %1951 = vst.msk [vmem:[#allocation2] sm:$0xff] %vm626, %v1946
    %1952 = vst.msk [vmem:[#allocation2 + $0x8] sm:$0xff] %vm626, %v1948
    %1953 = vrot.lane.b32.xlu0 %v1523, 112
    %v1954 = vpop.permute.xlu0 %1953
    %1955 = vrot.lane.b32.xlu0 %v1528, 112
    %v1956 = vpop.permute.xlu0 %1955
    %1957 = vrot.lane.b32.xlu0 %v1523, 80
    %v1958 = vpop.permute.xlu0 %1957
    %1959 = vrot.lane.b32.xlu0 %v1528, 80
    %v1960 = vpop.permute.xlu0 %1959
    %v1961 = vsel %vm220, %v1954, 0
    %v1963 = vsel %vm220, %v1956, 0
    %v1965 = vsel %vm220, %v1958, 0
    %v1967 = vsel %vm220, %v1960, 0
    %1969 = vmatprep.subr.mxu0 0.0
    %1970 = vmatpush1.xpose.msra.mxu0 0.0
    %1971 = vmatprep.subr.mxu0 0.0
    %1972 = vmatpush1.xpose.msra.mxu0 0.0
    %1973 = vmatprep.subr.mxu0 0.0
    %1974 = vmatpush1.xpose.msra.mxu0 0.0
    %1975 = vmatprep.subr.mxu0 0.0
    %1976 = vmatpush1.xpose.msra.mxu0 0.0
    %1977 = vmatprep.subr.mxu0 0.0
    %1978 = vmatpush1.xpose.msra.mxu0 0.0
    %1979 = vmatprep.subr.mxu0 0.0
    %1980 = vmatpush1.xpose.msra.mxu0 0.0
    %1981 = vmatprep.subr.mxu0 0.0
    %1982 = vmatpush1.xpose.msra.mxu0 0.0
    %1983 = vmatprep.subr.mxu0 0.0
    %1984 = vmatpush1.xpose.msra.mxu0 0.0
    %1985 = vmatprep.subr.mxu0 0.0
    %1986 = vmatpush1.xpose.msra.mxu0 0.0
    %1987 = vmatprep.subr.mxu0 0.0
    %1988 = vmatpush1.xpose.msra.mxu0 0.0
    %1989 = vmatprep.subr.mxu0 0.0
    %1990 = vmatpush1.xpose.msra.mxu0 0.0
    %1991 = vmatprep.subr.mxu0 0.0
    %1992 = vmatpush1.xpose.msra.mxu0 0.0
    %1993 = vmatprep.subr.mxu0 0.0
    %1994 = vmatpush1.xpose.msra.mxu0 0.0
    %1995 = vmatprep.subr.mxu0 0.0
    %1996 = vmatpush1.xpose.msra.mxu0 0.0
    %1997 = vmatprep.subr.mxu0 0.0
    %1998 = vmatpush1.xpose.msra.mxu0 %v1967
    %1999 = vmatprep.subr.mxu0 0.0
    %2000 = vmatpush1.xpose.msra.mxu0 %v1965
    %2001 = vmatprep.subr.mxu0 0.0
    %2002 = vmatpush2.xpose.msra.mxu0 0.0
    %2003 = vmatprep.subr.mxu0 0.0
    %2004 = vmatpush2.xpose.msra.mxu0 0.0
    %2005 = vmatprep.subr.mxu0 0.0
    %2006 = vmatpush2.xpose.msra.mxu0 0.0
    %2007 = vmatprep.subr.mxu0 0.0
    %2008 = vmatpush2.xpose.msra.mxu0 0.0
    %2009 = vmatprep.subr.mxu0 0.0
    %2010 = vmatpush2.xpose.msra.mxu0 0.0
    %2011 = vmatprep.subr.mxu0 0.0
    %2012 = vmatpush2.xpose.msra.mxu0 0.0
    %2013 = vmatprep.subr.mxu0 0.0
    %2014 = vmatpush2.xpose.msra.mxu0 0.0
    %2015 = vmatprep.subr.mxu0 0.0
    %2016 = vmatpush2.xpose.msra.mxu0 0.0
    %2017 = vmatprep.subr.mxu0 0.0
    %2018 = vmatpush2.xpose.msra.mxu0 0.0
    %2019 = vmatprep.subr.mxu0 0.0
    %2020 = vmatpush2.xpose.msra.mxu0 0.0
    %2021 = vmatprep.subr.mxu0 0.0
    %2022 = vmatpush2.xpose.msra.mxu0 0.0
    %2023 = vmatprep.subr.mxu0 0.0
    %2024 = vmatpush2.xpose.msra.mxu0 0.0
    %2025 = vmatprep.subr.mxu0 0.0
    %2026 = vmatpush2.xpose.msra.mxu0 0.0
    %2027 = vmatprep.subr.mxu0 0.0
    %2028 = vmatpush2.xpose.msra.mxu0 0.0
    %2029 = vmatprep.subr.mxu0 0.0
    %2030 = vmatpush2.xpose.msra.mxu0 0.0
    %2031 = vmatprep.subr.mxu0 0.0
    %2032 = vmatpush2.xpose.msra.mxu0 0.0
    %2033 = vmatprep.mubr.f32.mxu0 0.0
    %2034 = vmatmul.mubr.f32.gmra.mxu0 %v1961
    %v2035 = vpop.f32.mrf.mxu0
    %v2036 = vadd.f32 %v101, %v2035
    %v2037 = vpop.f32.mrf.mxu0
    %2038 = vmatprep.mubr.f32.mxu0 0.0
    %2039 = vmatmul.mubr.f32.gmra.mxu0 %v1963
    %v2040 = vpop.f32.mrf.mxu0
    %v2041 = vadd.f32 %v102, %v2040
    %v2042 = vpop.f32.mrf.mxu0
    %2043 = vdwg.mxu0
    %v2044 = vsel %vm304, %v2036, -inf
    %2045 = vmax.xlane.f32.xlu0 %v2044
    %v2046 = vpop.xlane.xlu0 %2045
    %v2047 = vsel %vm304, %v2041, -inf
    %2048 = vmax.xlane.f32.xlu0 %v2047
    %v2049 = vpop.xlane.xlu0 %2048
    %v2050 = vsub.f32 %v2036, %v2046
    %v2051 = vsub.f32 %v2041, %v2049
    %v2052 = vmul.f32 %v2050, 1.442695
    %v2053 = vpow.pop %v2052
    %v2054 = vmul.f32 %v2051, 1.442695
    %v2055 = vpow.pop %v2054
    %v2056 = vsel %vm304, %v2053, 0.0
    %2057 = vadd.xlane.f32.xlu0 %v2056
    %v2058 = vpop.xlane.xlu0 %2057
    %v2059 = vsel %vm304, %v2055, 0.0
    %2060 = vadd.xlane.f32.xlu0 %v2059
    %v2061 = vpop.xlane.xlu0 %2060
    %v2062 = vrcp.pop %v2058
    %v2063 = vrcp.pop %v2061
    %v2064 = vmul.f32 %v2053, %v2062
    %v2065 = vmul.f32 %v2055, %v2063
    %2066 = vrot.lane.b32.xlu0 %v1533, 48
    %v2067 = vpop.permute.xlu0 %2066
    %2068 = vrot.lane.b32.xlu0 %v1538, 48
    %v2069 = vpop.permute.xlu0 %2068
    %v2073 = vsel %vm304, %v2064, 0
    %v2076 = vsel %vm304, %v2065, 0
    %2078 = vmatprep.subr.mxu0 0.0
    %2079 = vmatpush1.msra.mxu0 0.0
    %2080 = vmatprep.subr.mxu0 0.0
    %2081 = vmatpush1.msra.mxu0 0.0
    %2082 = vmatprep.subr.mxu0 0.0
    %2083 = vmatpush1.msra.mxu0 0.0
    %2084 = vmatprep.subr.mxu0 0.0
    %2085 = vmatpush1.msra.mxu0 0.0
    %2086 = vmatprep.subr.mxu0 0.0
    %2087 = vmatpush1.msra.mxu0 0.0
    %2088 = vmatprep.subr.mxu0 0.0
    %2089 = vmatpush1.msra.mxu0 0.0
    %2090 = vmatprep.subr.mxu0 0.0
    %2091 = vmatpush1.msra.mxu0 0.0
    %2092 = vmatprep.subr.mxu0 0.0
    %2093 = vmatpush1.msra.mxu0 0.0
    %2094 = vmatprep.subr.mxu0 0.0
    %2095 = vmatpush1.msra.mxu0 0.0
    %2096 = vmatprep.subr.mxu0 0.0
    %2097 = vmatpush1.msra.mxu0 0.0
    %2098 = vmatprep.subr.mxu0 0.0
    %2099 = vmatpush1.msra.mxu0 0.0
    %2100 = vmatprep.subr.mxu0 0.0
    %2101 = vmatpush1.msra.mxu0 0.0
    %2102 = vmatprep.subr.mxu0 0.0
    %2103 = vmatpush1.msra.mxu0 0.0
    %2104 = vmatprep.subr.mxu0 0.0
    %2105 = vmatpush1.msra.mxu0 0.0
    %2106 = vmatprep.subr.mxu0 0.0
    %2107 = vmatpush1.msra.mxu0 %v2069
    %2108 = vmatprep.subr.mxu0 0.0
    %2109 = vmatpush1.msra.mxu0 %v2067
    %2110 = vmatprep.subr.mxu0 0.0
    %2111 = vmatpush2.msra.mxu0 0.0
    %2112 = vmatprep.subr.mxu0 0.0
    %2113 = vmatpush2.msra.mxu0 0.0
    %2114 = vmatprep.subr.mxu0 0.0
    %2115 = vmatpush2.msra.mxu0 0.0
    %2116 = vmatprep.subr.mxu0 0.0
    %2117 = vmatpush2.msra.mxu0 0.0
    %2118 = vmatprep.subr.mxu0 0.0
    %2119 = vmatpush2.msra.mxu0 0.0
    %2120 = vmatprep.subr.mxu0 0.0
    %2121 = vmatpush2.msra.mxu0 0.0
    %2122 = vmatprep.subr.mxu0 0.0
    %2123 = vmatpush2.msra.mxu0 0.0
    %2124 = vmatprep.subr.mxu0 0.0
    %2125 = vmatpush2.msra.mxu0 0.0
    %2126 = vmatprep.subr.mxu0 0.0
    %2127 = vmatpush2.msra.mxu0 0.0
    %2128 = vmatprep.subr.mxu0 0.0
    %2129 = vmatpush2.msra.mxu0 0.0
    %2130 = vmatprep.subr.mxu0 0.0
    %2131 = vmatpush2.msra.mxu0 0.0
    %2132 = vmatprep.subr.mxu0 0.0
    %2133 = vmatpush2.msra.mxu0 0.0
    %2134 = vmatprep.subr.mxu0 0.0
    %2135 = vmatpush2.msra.mxu0 0.0
    %2136 = vmatprep.subr.mxu0 0.0
    %2137 = vmatpush2.msra.mxu0 0.0
    %2138 = vmatprep.subr.mxu0 0.0
    %2139 = vmatpush2.msra.mxu0 0.0
    %2140 = vmatprep.subr.mxu0 0.0
    %2141 = vmatpush2.msra.mxu0 0.0
    %2142 = vmatprep.mubr.f32.mxu0 0.0
    %2143 = vmatmul.mubr.f32.gmra.mxu0 %v2073
    %v2144 = vpop.f32.mrf.mxu0
    %v2145 = vadd.f32 0.0, %v2144
    %v2146 = vpop.f32.mrf.mxu0
    %2147 = vmatprep.mubr.f32.mxu0 0.0
    %2148 = vmatmul.mubr.f32.gmra.mxu0 %v2076
    %v2149 = vpop.f32.mrf.mxu0
    %v2150 = vadd.f32 0.0, %v2149
    %v2151 = vpop.f32.mrf.mxu0
    %2152 = vdwg.mxu0
    %2155 = vrot.lane.b32.xlu0 %v2145, 16
    %v2156 = vpop.permute.xlu0 %2155
    %2157 = vrot.lane.b32.xlu0 %v2150, 16
    %v2158 = vpop.permute.xlu0 %2157
    %2161 = vst.msk [vmem:[#allocation2] sm:$0xff] %vm837, %v2156
    %2162 = vst.msk [vmem:[#allocation2 + $0x8] sm:$0xff] %vm837, %v2158
    %2163 = vrot.lane.b32.xlu0 %v1523, 104
    %v2164 = vpop.permute.xlu0 %2163
    %2165 = vrot.lane.b32.xlu0 %v1528, 104
    %v2166 = vpop.permute.xlu0 %2165
    %2167 = vrot.lane.b32.xlu0 %v1523, 72
    %v2168 = vpop.permute.xlu0 %2167
    %2169 = vrot.lane.b32.xlu0 %v1528, 72
    %v2170 = vpop.permute.xlu0 %2169
    %v2171 = vsel %vm220, %v2164, 0
    %v2173 = vsel %vm220, %v2166, 0
    %v2175 = vsel %vm220, %v2168, 0
    %v2177 = vsel %vm220, %v2170, 0
    %2179 = vmatprep.subr.mxu0 0.0
    %2180 = vmatpush1.xpose.msra.mxu0 0.0
    %2181 = vmatprep.subr.mxu0 0.0
    %2182 = vmatpush1.xpose.msra.mxu0 0.0
    %2183 = vmatprep.subr.mxu0 0.0
    %2184 = vmatpush1.xpose.msra.mxu0 0.0
    %2185 = vmatprep.subr.mxu0 0.0
    %2186 = vmatpush1.xpose.msra.mxu0 0.0
    %2187 = vmatprep.subr.mxu0 0.0
    %2188 = vmatpush1.xpose.msra.mxu0 0.0
    %2189 = vmatprep.subr.mxu0 0.0
    %2190 = vmatpush1.xpose.msra.mxu0 0.0
    %2191 = vmatprep.subr.mxu0 0.0
    %2192 = vmatpush1.xpose.msra.mxu0 0.0
    %2193 = vmatprep.subr.mxu0 0.0
    %2194 = vmatpush1.xpose.msra.mxu0 0.0
    %2195 = vmatprep.subr.mxu0 0.0
    %2196 = vmatpush1.xpose.msra.mxu0 0.0
    %2197 = vmatprep.subr.mxu0 0.0
    %2198 = vmatpush1.xpose.msra.mxu0 0.0
    %2199 = vmatprep.subr.mxu0 0.0
    %2200 = vmatpush1.xpose.msra.mxu0 0.0
    %2201 = vmatprep.subr.mxu0 0.0
    %2202 = vmatpush1.xpose.msra.mxu0 0.0
    %2203 = vmatprep.subr.mxu0 0.0
    %2204 = vmatpush1.xpose.msra.mxu0 0.0
    %2205 = vmatprep.subr.mxu0 0.0
    %2206 = vmatpush1.xpose.msra.mxu0 0.0
    %2207 = vmatprep.subr.mxu0 0.0
    %2208 = vmatpush1.xpose.msra.mxu0 %v2177
    %2209 = vmatprep.subr.mxu0 0.0
    %2210 = vmatpush1.xpose.msra.mxu0 %v2175
    %2211 = vmatprep.subr.mxu0 0.0
    %2212 = vmatpush2.xpose.msra.mxu0 0.0
    %2213 = vmatprep.subr.mxu0 0.0
    %2214 = vmatpush2.xpose.msra.mxu0 0.0
    %2215 = vmatprep.subr.mxu0 0.0
    %2216 = vmatpush2.xpose.msra.mxu0 0.0
    %2217 = vmatprep.subr.mxu0 0.0
    %2218 = vmatpush2.xpose.msra.mxu0 0.0
    %2219 = vmatprep.subr.mxu0 0.0
    %2220 = vmatpush2.xpose.msra.mxu0 0.0
    %2221 = vmatprep.subr.mxu0 0.0
    %2222 = vmatpush2.xpose.msra.mxu0 0.0
    %2223 = vmatprep.subr.mxu0 0.0
    %2224 = vmatpush2.xpose.msra.mxu0 0.0
    %2225 = vmatprep.subr.mxu0 0.0
    %2226 = vmatpush2.xpose.msra.mxu0 0.0
    %2227 = vmatprep.subr.mxu0 0.0
    %2228 = vmatpush2.xpose.msra.mxu0 0.0
    %2229 = vmatprep.subr.mxu0 0.0
    %2230 = vmatpush2.xpose.msra.mxu0 0.0
    %2231 = vmatprep.subr.mxu0 0.0
    %2232 = vmatpush2.xpose.msra.mxu0 0.0
    %2233 = vmatprep.subr.mxu0 0.0
    %2234 = vmatpush2.xpose.msra.mxu0 0.0
    %2235 = vmatprep.subr.mxu0 0.0
    %2236 = vmatpush2.xpose.msra.mxu0 0.0
    %2237 = vmatprep.subr.mxu0 0.0
    %2238 = vmatpush2.xpose.msra.mxu0 0.0
    %2239 = vmatprep.subr.mxu0 0.0
    %2240 = vmatpush2.xpose.msra.mxu0 0.0
    %2241 = vmatprep.subr.mxu0 0.0
    %2242 = vmatpush2.xpose.msra.mxu0 0.0
    %2243 = vmatprep.mubr.f32.mxu0 0.0
    %2244 = vmatmul.mubr.f32.gmra.mxu0 %v2171
    %v2245 = vpop.f32.mrf.mxu0
    %v2246 = vadd.f32 %v101, %v2245
    %v2247 = vpop.f32.mrf.mxu0
    %2248 = vmatprep.mubr.f32.mxu0 0.0
    %2249 = vmatmul.mubr.f32.gmra.mxu0 %v2173
    %v2250 = vpop.f32.mrf.mxu0
    %v2251 = vadd.f32 %v102, %v2250
    %v2252 = vpop.f32.mrf.mxu0
    %2253 = vdwg.mxu0
    %v2254 = vsel %vm304, %v2246, -inf
    %2255 = vmax.xlane.f32.xlu0 %v2254
    %v2256 = vpop.xlane.xlu0 %2255
    %v2257 = vsel %vm304, %v2251, -inf
    %2258 = vmax.xlane.f32.xlu0 %v2257
    %v2259 = vpop.xlane.xlu0 %2258
    %v2260 = vsub.f32 %v2246, %v2256
    %v2261 = vsub.f32 %v2251, %v2259
    %v2262 = vmul.f32 %v2260, 1.442695
    %v2263 = vpow.pop %v2262
    %v2264 = vmul.f32 %v2261, 1.442695
    %v2265 = vpow.pop %v2264
    %v2266 = vsel %vm304, %v2263, 0.0
    %2267 = vadd.xlane.f32.xlu0 %v2266
    %v2268 = vpop.xlane.xlu0 %2267
    %v2269 = vsel %vm304, %v2265, 0.0
    %2270 = vadd.xlane.f32.xlu0 %v2269
    %v2271 = vpop.xlane.xlu0 %2270
    %v2272 = vrcp.pop %v2268
    %v2273 = vrcp.pop %v2271
    %v2274 = vmul.f32 %v2263, %v2272
    %v2275 = vmul.f32 %v2265, %v2273
    %2276 = vrot.lane.b32.xlu0 %v1533, 40
    %v2277 = vpop.permute.xlu0 %2276
    %2278 = vrot.lane.b32.xlu0 %v1538, 40
    %v2279 = vpop.permute.xlu0 %2278
    %v2283 = vsel %vm304, %v2274, 0
    %v2286 = vsel %vm304, %v2275, 0
    %2288 = vmatprep.subr.mxu0 0.0
    %2289 = vmatpush1.msra.mxu0 0.0
    %2290 = vmatprep.subr.mxu0 0.0
    %2291 = vmatpush1.msra.mxu0 0.0
    %2292 = vmatprep.subr.mxu0 0.0
    %2293 = vmatpush1.msra.mxu0 0.0
    %2294 = vmatprep.subr.mxu0 0.0
    %2295 = vmatpush1.msra.mxu0 0.0
    %2296 = vmatprep.subr.mxu0 0.0
    %2297 = vmatpush1.msra.mxu0 0.0
    %2298 = vmatprep.subr.mxu0 0.0
    %2299 = vmatpush1.msra.mxu0 0.0
    %2300 = vmatprep.subr.mxu0 0.0
    %2301 = vmatpush1.msra.mxu0 0.0
    %2302 = vmatprep.subr.mxu0 0.0
    %2303 = vmatpush1.msra.mxu0 0.0
    %2304 = vmatprep.subr.mxu0 0.0
    %2305 = vmatpush1.msra.mxu0 0.0
    %2306 = vmatprep.subr.mxu0 0.0
    %2307 = vmatpush1.msra.mxu0 0.0
    %2308 = vmatprep.subr.mxu0 0.0
    %2309 = vmatpush1.msra.mxu0 0.0
    %2310 = vmatprep.subr.mxu0 0.0
    %2311 = vmatpush1.msra.mxu0 0.0
    %2312 = vmatprep.subr.mxu0 0.0
    %2313 = vmatpush1.msra.mxu0 0.0
    %2314 = vmatprep.subr.mxu0 0.0
    %2315 = vmatpush1.msra.mxu0 0.0
    %2316 = vmatprep.subr.mxu0 0.0
    %2317 = vmatpush1.msra.mxu0 %v2279
    %2318 = vmatprep.subr.mxu0 0.0
    %2319 = vmatpush1.msra.mxu0 %v2277
    %2320 = vmatprep.subr.mxu0 0.0
    %2321 = vmatpush2.msra.mxu0 0.0
    %2322 = vmatprep.subr.mxu0 0.0
    %2323 = vmatpush2.msra.mxu0 0.0
    %2324 = vmatprep.subr.mxu0 0.0
    %2325 = vmatpush2.msra.mxu0 0.0
    %2326 = vmatprep.subr.mxu0 0.0
    %2327 = vmatpush2.msra.mxu0 0.0
    %2328 = vmatprep.subr.mxu0 0.0
    %2329 = vmatpush2.msra.mxu0 0.0
    %2330 = vmatprep.subr.mxu0 0.0
    %2331 = vmatpush2.msra.mxu0 0.0
    %2332 = vmatprep.subr.mxu0 0.0
    %2333 = vmatpush2.msra.mxu0 0.0
    %2334 = vmatprep.subr.mxu0 0.0
    %2335 = vmatpush2.msra.mxu0 0.0
    %2336 = vmatprep.subr.mxu0 0.0
    %2337 = vmatpush2.msra.mxu0 0.0
    %2338 = vmatprep.subr.mxu0 0.0
    %2339 = vmatpush2.msra.mxu0 0.0
    %2340 = vmatprep.subr.mxu0 0.0
    %2341 = vmatpush2.msra.mxu0 0.0
    %2342 = vmatprep.subr.mxu0 0.0
    %2343 = vmatpush2.msra.mxu0 0.0
    %2344 = vmatprep.subr.mxu0 0.0
    %2345 = vmatpush2.msra.mxu0 0.0
    %2346 = vmatprep.subr.mxu0 0.0
    %2347 = vmatpush2.msra.mxu0 0.0
    %2348 = vmatprep.subr.mxu0 0.0
    %2349 = vmatpush2.msra.mxu0 0.0
    %2350 = vmatprep.subr.mxu0 0.0
    %2351 = vmatpush2.msra.mxu0 0.0
    %2352 = vmatprep.mubr.f32.mxu0 0.0
    %2353 = vmatmul.mubr.f32.gmra.mxu0 %v2283
    %v2354 = vpop.f32.mrf.mxu0
    %v2355 = vadd.f32 0.0, %v2354
    %v2356 = vpop.f32.mrf.mxu0
    %2357 = vmatprep.mubr.f32.mxu0 0.0
    %2358 = vmatmul.mubr.f32.gmra.mxu0 %v2286
    %v2359 = vpop.f32.mrf.mxu0
    %v2360 = vadd.f32 0.0, %v2359
    %v2361 = vpop.f32.mrf.mxu0
    %2362 = vdwg.mxu0
    %2365 = vrot.lane.b32.xlu0 %v2355, 24
    %v2366 = vpop.permute.xlu0 %2365
    %2367 = vrot.lane.b32.xlu0 %v2360, 24
    %v2368 = vpop.permute.xlu0 %2367
    %2371 = vst.msk [vmem:[#allocation2] sm:$0xff] %vm1048, %v2366
    %2372 = vst.msk [vmem:[#allocation2 + $0x8] sm:$0xff] %vm1048, %v2368
    %v2373 = vld [vmem:[#allocation2] sm:$0xff]
    %v2374 = vld [vmem:[#allocation2 + $0x8] sm:$0xff]
    %s2375 = scalar_lea.vmem %s4, 32
    %v2376 = vld [vmem:[%s2375] sm:$0xff]
    %v2377 = vld [vmem:[%s2375 + $0x8] sm:$0xff]
    %v2378 = vld [vmem:[%s2375 + $0x10] sm:$0xff]
    %v2379 = vld [vmem:[%s2375 + $0x18] sm:$0xff]
    %s2380 = scalar_lea.vmem %s5, 1
    %v2381 = vld [vmem:[%s2380] sm:$0x1]
    %v2383 = vlaneseq
    %v2384 = vshrl.u32 %v2383, 7
    %v2385 = vsub.s32 0, %v2384
    %v2386 = vrot.slane %v2381, %v2385
    %v2389 = vsel %vm116, %v2373, 0
    %v2392 = vsel %vm116, %v2374, 0
    %2394 = vmatprep.subr.mxu0 0.0
    %2395 = vmatpush1.msra.mxu0 0.0
    %2396 = vmatprep.subr.mxu0 0.0
    %2397 = vmatpush1.msra.mxu0 0.0
    %2398 = vmatprep.subr.mxu0 0.0
    %2399 = vmatpush1.msra.mxu0 0.0
    %2400 = vmatprep.subr.mxu0 0.0
    %2401 = vmatpush1.msra.mxu0 0.0
    %2402 = vmatprep.subr.mxu0 0.0
    %2403 = vmatpush1.msra.mxu0 0.0
    %2404 = vmatprep.subr.mxu0 0.0
    %2405 = vmatpush1.msra.mxu0 0.0
    %2406 = vmatprep.subr.mxu0 0.0
    %2407 = vmatpush1.msra.mxu0 0.0
    %2408 = vmatprep.subr.mxu0 0.0
    %2409 = vmatpush1.msra.mxu0 0.0
    %2410 = vmatprep.subr.mxu0 0.0
    %2411 = vmatpush1.msra.mxu0 0.0
    %2412 = vmatprep.subr.mxu0 0.0
    %2413 = vmatpush1.msra.mxu0 0.0
    %2414 = vmatprep.subr.mxu0 0.0
    %2415 = vmatpush1.msra.mxu0 0.0
    %2416 = vmatprep.subr.mxu0 0.0
    %2417 = vmatpush1.msra.mxu0 0.0
    %2418 = vmatprep.subr.mxu0 0.0
    %2419 = vmatpush1.msra.mxu0 %v2379
    %2420 = vmatprep.subr.mxu0 0.0
    %2421 = vmatpush1.msra.mxu0 %v2378
    %2422 = vmatprep.subr.mxu0 0.0
    %2423 = vmatpush1.msra.mxu0 %v2377
    %2424 = vmatprep.subr.mxu0 0.0
    %2425 = vmatpush1.msra.mxu0 %v2376
    %2426 = vmatprep.subr.mxu0 0.0
    %2427 = vmatpush2.msra.mxu0 0.0
    %2428 = vmatprep.subr.mxu0 0.0
    %2429 = vmatpush2.msra.mxu0 0.0
    %2430 = vmatprep.subr.mxu0 0.0
    %2431 = vmatpush2.msra.mxu0 0.0
    %2432 = vmatprep.subr.mxu0 0.0
    %2433 = vmatpush2.msra.mxu0 0.0
    %2434 = vmatprep.subr.mxu0 0.0
    %2435 = vmatpush2.msra.mxu0 0.0
    %2436 = vmatprep.subr.mxu0 0.0
    %2437 = vmatpush2.msra.mxu0 0.0
    %2438 = vmatprep.subr.mxu0 0.0
    %2439 = vmatpush2.msra.mxu0 0.0
    %2440 = vmatprep.subr.mxu0 0.0
    %2441 = vmatpush2.msra.mxu0 0.0
    %2442 = vmatprep.subr.mxu0 0.0
    %2443 = vmatpush2.msra.mxu0 0.0
    %2444 = vmatprep.subr.mxu0 0.0
    %2445 = vmatpush2.msra.mxu0 0.0
    %2446 = vmatprep.subr.mxu0 0.0
    %2447 = vmatpush2.msra.mxu0 0.0
    %2448 = vmatprep.subr.mxu0 0.0
    %2449 = vmatpush2.msra.mxu0 0.0
    %2450 = vmatprep.subr.mxu0 0.0
    %2451 = vmatpush2.msra.mxu0 0.0
    %2452 = vmatprep.subr.mxu0 0.0
    %2453 = vmatpush2.msra.mxu0 0.0
    %2454 = vmatprep.subr.mxu0 0.0
    %2455 = vmatpush2.msra.mxu0 0.0
    %2456 = vmatprep.subr.mxu0 0.0
    %2457 = vmatpush2.msra.mxu0 0.0
    %2458 = vmatprep.mubr.f32.mxu0 0.0
    %2459 = vmatmul.mubr.f32.gmra.mxu0 %v2389
    %v2460 = vpop.f32.mrf.mxu0
    %v2461 = vadd.f32 %v2386, %v2460
    %v2462 = vpop.f32.mrf.mxu0
    %2463 = vmatprep.mubr.f32.mxu0 0.0
    %2464 = vmatmul.mubr.f32.gmra.mxu0 %v2392
    %v2465 = vpop.f32.mrf.mxu0
    %v2466 = vadd.f32 %v2386, %v2465
    %v2467 = vpop.f32.mrf.mxu0
    %2468 = vdwg.mxu0
    %v2469 = vadd.f32 %v1427, %v2461
    %v2470 = vadd.f32 %v1428, %v2466
    %s2471 = scalar_lea.vmem %s6, 1
    %v2472 = vld [vmem:[%s2471] sm:$0x1]
    %s2473 = scalar_lea.vmem %s7, 1
    %v2474 = vld [vmem:[%s2473] sm:$0x1]
    %v2475 = vsel %vm116, %v2469, 0.0
    %2476 = vadd.xlane.f32.xlu0 %v2475
    %v2477 = vpop.xlane.xlu0 %2476
    %v2478 = vsel %vm116, %v2470, 0.0
    %2479 = vadd.xlane.f32.xlu0 %v2478
    %v2480 = vpop.xlane.xlu0 %2479
    %v2481 = vmul.f32 %v2477, %v1155
    %v2482 = vmul.f32 %v2480, %v1155
    %v2483 = vsub.f32 %v2469, %v2481
    %v2484 = vsub.f32 %v2470, %v2482
    %v2485 = vmul.f32 %v2483, %v2483
    %v2486 = vmul.f32 %v2484, %v2484
    %v2487 = vsel %vm116, %v2485, 0.0
    %2488 = vadd.xlane.f32.xlu0 %v2487
    %v2489 = vpop.xlane.xlu0 %2488
    %v2490 = vsel %vm116, %v2486, 0.0
    %2491 = vadd.xlane.f32.xlu0 %v2490
    %v2492 = vpop.xlane.xlu0 %2491
    %v2493 = vmul.f32 %v2489, %v1155
    %v2494 = vmul.f32 %v2492, %v1155
    %v2495 = vadd.f32 %v2493, 1e-05
    %v2496 = vadd.f32 %v2494, 1e-05
    %v2497 = vrsqrt.pop %v2495
    %v2498 = vrsqrt.pop %v2496
    %v2499 = vmul.f32 %v2483, %v2497
    %v2500 = vmul.f32 %v2484, %v2498
    %v2502 = vlaneseq
    %v2503 = vshrl.u32 %v2502, 7
    %v2504 = vsub.s32 0, %v2503
    %v2505 = vrot.slane %v2472, %v2504
    %v2507 = vmul.f32 %v2499, %v2505
    %v2508 = vmul.f32 %v2500, %v2505
    %v2510 = vlaneseq
    %v2511 = vshrl.u32 %v2510, 7
    %v2512 = vsub.s32 0, %v2511
    %v2513 = vrot.slane %v2474, %v2512
    %v2515 = vadd.f32 %v2507, %v2513
    %v2516 = vadd.f32 %v2508, %v2513
    %s2517 = scalar_lea.vmem %s8, 32
    %v2518 = vld [vmem:[%s2517] sm:$0xff]
    %v2519 = vld [vmem:[%s2517 + $0x8] sm:$0xff]
    %v2520 = vld [vmem:[%s2517 + $0x10] sm:$0xff]
    %v2521 = vld [vmem:[%s2517 + $0x18] sm:$0xff]
    %s2522 = scalar_lea.vmem %s9, 1
    %v2523 = vld [vmem:[%s2522] sm:$0x1]
    %v2525 = vlaneseq
    %v2526 = vshrl.u32 %v2525, 7
    %v2527 = vsub.s32 0, %v2526
    %v2528 = vrot.slane %v2523, %v2527
    %v2531 = vsel %vm116, %v2515, 0
    %v2534 = vsel %vm116, %v2516, 0
    %2536 = vmatprep.subr.mxu0 0.0
    %2537 = vmatpush1.msra.mxu0 0.0
    %2538 = vmatprep.subr.mxu0 0.0
    %2539 = vmatpush1.msra.mxu0 0.0
    %2540 = vmatprep.subr.mxu0 0.0
    %2541 = vmatpush1.msra.mxu0 0.0
    %2542 = vmatprep.subr.mxu0 0.0
    %2543 = vmatpush1.msra.mxu0 0.0
    %2544 = vmatprep.subr.mxu0 0.0
    %2545 = vmatpush1.msra.mxu0 0.0
    %2546 = vmatprep.subr.mxu0 0.0
    %2547 = vmatpush1.msra.mxu0 0.0
    %2548 = vmatprep.subr.mxu0 0.0
    %2549 = vmatpush1.msra.mxu0 0.0
    %2550 = vmatprep.subr.mxu0 0.0
    %2551 = vmatpush1.msra.mxu0 0.0
    %2552 = vmatprep.subr.mxu0 0.0
    %2553 = vmatpush1.msra.mxu0 0.0
    %2554 = vmatprep.subr.mxu0 0.0
    %2555 = vmatpush1.msra.mxu0 0.0
    %2556 = vmatprep.subr.mxu0 0.0
    %2557 = vmatpush1.msra.mxu0 0.0
    %2558 = vmatprep.subr.mxu0 0.0
    %2559 = vmatpush1.msra.mxu0 0.0
    %2560 = vmatprep.subr.mxu0 0.0
    %2561 = vmatpush1.msra.mxu0 %v2521
    %2562 = vmatprep.subr.mxu0 0.0
    %2563 = vmatpush1.msra.mxu0 %v2520
    %2564 = vmatprep.subr.mxu0 0.0
    %2565 = vmatpush1.msra.mxu0 %v2519
    %2566 = vmatprep.subr.mxu0 0.0
    %2567 = vmatpush1.msra.mxu0 %v2518
    %2568 = vmatprep.subr.mxu0 0.0
    %2569 = vmatpush2.msra.mxu0 0.0
    %2570 = vmatprep.subr.mxu0 0.0
    %2571 = vmatpush2.msra.mxu0 0.0
    %2572 = vmatprep.subr.mxu0 0.0
    %2573 = vmatpush2.msra.mxu0 0.0
    %2574 = vmatprep.subr.mxu0 0.0
    %2575 = vmatpush2.msra.mxu0 0.0
    %2576 = vmatprep.subr.mxu0 0.0
    %2577 = vmatpush2.msra.mxu0 0.0
    %2578 = vmatprep.subr.mxu0 0.0
    %2579 = vmatpush2.msra.mxu0 0.0
    %2580 = vmatprep.subr.mxu0 0.0
    %2581 = vmatpush2.msra.mxu0 0.0
    %2582 = vmatprep.subr.mxu0 0.0
    %2583 = vmatpush2.msra.mxu0 0.0
    %2584 = vmatprep.subr.mxu0 0.0
    %2585 = vmatpush2.msra.mxu0 0.0
    %2586 = vmatprep.subr.mxu0 0.0
    %2587 = vmatpush2.msra.mxu0 0.0
    %2588 = vmatprep.subr.mxu0 0.0
    %2589 = vmatpush2.msra.mxu0 0.0
    %2590 = vmatprep.subr.mxu0 0.0
    %2591 = vmatpush2.msra.mxu0 0.0
    %2592 = vmatprep.subr.mxu0 0.0
    %2593 = vmatpush2.msra.mxu0 0.0
    %2594 = vmatprep.subr.mxu0 0.0
    %2595 = vmatpush2.msra.mxu0 0.0
    %2596 = vmatprep.subr.mxu0 0.0
    %2597 = vmatpush2.msra.mxu0 0.0
    %2598 = vmatprep.subr.mxu0 0.0
    %2599 = vmatpush2.msra.mxu0 0.0
    %2600 = vmatprep.mubr.f32.mxu0 0.0
    %2601 = vmatmul.mubr.f32.gmra.mxu0 %v2531
    %v2602 = vpop.f32.mrf.mxu0
    %v2603 = vadd.f32 %v2528, %v2602
    %v2604 = vpop.f32.mrf.mxu0
    %2605 = vmatprep.mubr.f32.mxu0 0.0
    %2606 = vmatmul.mubr.f32.gmra.mxu0 %v2534
    %v2607 = vpop.f32.mrf.mxu0
    %v2608 = vadd.f32 %v2528, %v2607
    %v2609 = vpop.f32.mrf.mxu0
    %2610 = vdwg.mxu0
    %v2611 = vmax.f32 %v2603, 0.0
    %v2612 = vmax.f32 %v2608, 0.0
    %s2613 = scalar_lea.vmem %s10, 64
    %v2614 = vld [vmem:[%s2613] sm:$0xff]
    %v2615 = vld [vmem:[%s2613 + $0x8] sm:$0xff]
    %v2616 = vld [vmem:[%s2613 + $0x10] sm:$0xff]
    %v2617 = vld [vmem:[%s2613 + $0x18] sm:$0xff]
    %v2618 = vld [vmem:[%s2613 + $0x20] sm:$0xff]
    %v2619 = vld [vmem:[%s2613 + $0x28] sm:$0xff]
    %v2620 = vld [vmem:[%s2613 + $0x30] sm:$0xff]
    %v2621 = vld [vmem:[%s2613 + $0x38] sm:$0xff]
    %s2622 = scalar_lea.vmem %s11, 1
    %v2623 = vld [vmem:[%s2622] sm:$0x1]
    %v2625 = vlaneseq
    %v2626 = vshrl.u32 %v2625, 7
    %v2627 = vsub.s32 0, %v2626
    %v2628 = vrot.slane %v2623, %v2627
    %v2631 = vsel %vm1301, %v2611, 0
    %v2634 = vsel %vm1301, %v2612, 0
    %2636 = vmatprep.subr.mxu0 0.0
    %2637 = vmatpush1.msra.mxu0 0.0
    %2638 = vmatprep.subr.mxu0 0.0
    %2639 = vmatpush1.msra.mxu0 0.0
    %2640 = vmatprep.subr.mxu0 0.0
    %2641 = vmatpush1.msra.mxu0 0.0
    %2642 = vmatprep.subr.mxu0 0.0
    %2643 = vmatpush1.msra.mxu0 0.0
    %2644 = vmatprep.subr.mxu0 0.0
    %2645 = vmatpush1.msra.mxu0 0.0
    %2646 = vmatprep.subr.mxu0 0.0
    %2647 = vmatpush1.msra.mxu0 0.0
    %2648 = vmatprep.subr.mxu0 0.0
    %2649 = vmatpush1.msra.mxu0 0.0
    %2650 = vmatprep.subr.mxu0 0.0
    %2651 = vmatpush1.msra.mxu0 0.0
    %2652 = vmatprep.subr.mxu0 0.0
    %2653 = vmatpush1.msra.mxu0 %v2621
    %2654 = vmatprep.subr.mxu0 0.0
    %2655 = vmatpush1.msra.mxu0 %v2620
    %2656 = vmatprep.subr.mxu0 0.0
    %2657 = vmatpush1.msra.mxu0 %v2619
    %2658 = vmatprep.subr.mxu0 0.0
    %2659 = vmatpush1.msra.mxu0 %v2618
    %2660 = vmatprep.subr.mxu0 0.0
    %2661 = vmatpush1.msra.mxu0 %v2617
    %2662 = vmatprep.subr.mxu0 0.0
    %2663 = vmatpush1.msra.mxu0 %v2616
    %2664 = vmatprep.subr.mxu0 0.0
    %2665 = vmatpush1.msra.mxu0 %v2615
    %2666 = vmatprep.subr.mxu0 0.0
    %2667 = vmatpush1.msra.mxu0 %v2614
    %2668 = vmatprep.subr.mxu0 0.0
    %2669 = vmatpush2.msra.mxu0 0.0
    %2670 = vmatprep.subr.mxu0 0.0
    %2671 = vmatpush2.msra.mxu0 0.0
    %2672 = vmatprep.subr.mxu0 0.0
    %2673 = vmatpush2.msra.mxu0 0.0
    %2674 = vmatprep.subr.mxu0 0.0
    %2675 = vmatpush2.msra.mxu0 0.0
    %2676 = vmatprep.subr.mxu0 0.0
    %2677 = vmatpush2.msra.mxu0 0.0
    %2678 = vmatprep.subr.mxu0 0.0
    %2679 = vmatpush2.msra.mxu0 0.0
    %2680 = vmatprep.subr.mxu0 0.0
    %2681 = vmatpush2.msra.mxu0 0.0
    %2682 = vmatprep.subr.mxu0 0.0
    %2683 = vmatpush2.msra.mxu0 0.0
    %2684 = vmatprep.subr.mxu0 0.0
    %2685 = vmatpush2.msra.mxu0 0.0
    %2686 = vmatprep.subr.mxu0 0.0
    %2687 = vmatpush2.msra.mxu0 0.0
    %2688 = vmatprep.subr.mxu0 0.0
    %2689 = vmatpush2.msra.mxu0 0.0
    %2690 = vmatprep.subr.mxu0 0.0
    %2691 = vmatpush2.msra.mxu0 0.0
    %2692 = vmatprep.subr.mxu0 0.0
    %2693 = vmatpush2.msra.mxu0 0.0
    %2694 = vmatprep.subr.mxu0 0.0
    %2695 = vmatpush2.msra.mxu0 0.0
    %2696 = vmatprep.subr.mxu0 0.0
    %2697 = vmatpush2.msra.mxu0 0.0
    %2698 = vmatprep.subr.mxu0 0.0
    %2699 = vmatpush2.msra.mxu0 0.0
    %2700 = vmatprep.mubr.f32.mxu0 0.0
    %2701 = vmatmul.mubr.f32.gmra.mxu0 %v2631
    %v2702 = vpop.f32.mrf.mxu0
    %v2703 = vadd.f32 %v2628, %v2702
    %v2704 = vpop.f32.mrf.mxu0
    %2705 = vmatprep.mubr.f32.mxu0 0.0
    %2706 = vmatmul.mubr.f32.gmra.mxu0 %v2634
    %v2707 = vpop.f32.mrf.mxu0
    %v2708 = vadd.f32 %v2628, %v2707
    %v2709 = vpop.f32.mrf.mxu0
    %2710 = vdwg.mxu0
    %v2711 = vadd.f32 %v2515, %v2703
    %v2712 = vadd.f32 %v2516, %v2708
    %s2713 = scalar_lea.vmem %s12, 1
    %v2714 = vld [vmem:[%s2713] sm:$0x1]
    %s2715 = scalar_lea.vmem %s13, 1
    %v2716 = vld [vmem:[%s2715] sm:$0x1]
    %v2717 = vsel %vm116, %v2711, 0.0
    %2718 = vadd.xlane.f32.xlu0 %v2717
    %v2719 = vpop.xlane.xlu0 %2718
    %v2720 = vsel %vm116, %v2712, 0.0
    %2721 = vadd.xlane.f32.xlu0 %v2720
    %v2722 = vpop.xlane.xlu0 %2721
    %v2723 = vmul.f32 %v2719, %v1155
    %v2724 = vmul.f32 %v2722, %v1155
    %v2725 = vsub.f32 %v2711, %v2723
    %v2726 = vsub.f32 %v2712, %v2724
    %v2727 = vmul.f32 %v2725, %v2725
    %v2728 = vmul.f32 %v2726, %v2726
    %v2729 = vsel %vm116, %v2727, 0.0
    %2730 = vadd.xlane.f32.xlu0 %v2729
    %v2731 = vpop.xlane.xlu0 %2730
    %v2732 = vsel %vm116, %v2728, 0.0
    %2733 = vadd.xlane.f32.xlu0 %v2732
    %v2734 = vpop.xlane.xlu0 %2733
    %v2735 = vmul.f32 %v2731, %v1155
    %v2736 = vmul.f32 %v2734, %v1155
    %v2737 = vadd.f32 %v2735, 1e-05
    %v2738 = vadd.f32 %v2736, 1e-05
    %v2739 = vrsqrt.pop %v2737
    %v2740 = vrsqrt.pop %v2738
    %v2741 = vmul.f32 %v2725, %v2739
    %v2742 = vmul.f32 %v2726, %v2740
    %v2744 = vlaneseq
    %v2745 = vshrl.u32 %v2744, 7
    %v2746 = vsub.s32 0, %v2745
    %v2747 = vrot.slane %v2714, %v2746
    %v2749 = vmul.f32 %v2741, %v2747
    %v2750 = vmul.f32 %v2742, %v2747
    %v2752 = vlaneseq
    %v2753 = vshrl.u32 %v2752, 7
    %v2754 = vsub.s32 0, %v2753
    %v2755 = vrot.slane %v2716, %v2754
    %v2757 = vadd.f32 %v2749, %v2755
    %v2758 = vadd.f32 %v2750, %v2755
    %v2759 = vld [vmem:[%s14] sm:$0x1]
    %v2760 = vld [vmem:[%s15] sm:$0x1]
    %v2761 = vsel %vm116, %v2757, 0.0
    %2762 = vadd.xlane.f32.xlu0 %v2761
    %v2763 = vpop.xlane.xlu0 %2762
    %v2764 = vsel %vm116, %v2758, 0.0
    %2765 = vadd.xlane.f32.xlu0 %v2764
    %v2766 = vpop.xlane.xlu0 %2765
    %v2767 = vmul.f32 %v2763, %v1155
    %v2768 = vmul.f32 %v2766, %v1155
    %v2769 = vsub.f32 %v2757, %v2767
    %v2770 = vsub.f32 %v2758, %v2768
    %v2771 = vmul.f32 %v2769, %v2769
    %v2772 = vmul.f32 %v2770, %v2770
    %v2773 = vsel %vm116, %v2771, 0.0
    %2774 = vadd.xlane.f32.xlu0 %v2773
    %v2775 = vpop.xlane.xlu0 %2774
    %v2776 = vsel %vm116, %v2772, 0.0
    %2777 = vadd.xlane.f32.xlu0 %v2776
    %v2778 = vpop.xlane.xlu0 %2777
    %v2779 = vmul.f32 %v2775, %v1155
    %v2780 = vmul.f32 %v2778, %v1155
    %v2781 = vadd.f32 %v2779, 1e-05
    %v2782 = vadd.f32 %v2780, 1e-05
    %v2783 = vrsqrt.pop %v2781
    %v2784 = vrsqrt.pop %v2782
    %v2785 = vmul.f32 %v2769, %v2783
    %v2786 = vmul.f32 %v2770, %v2784
    %v2788 = vlaneseq
    %v2789 = vshrl.u32 %v2788, 7
    %v2790 = vsub.s32 0, %v2789
    %v2791 = vrot.slane %v2759, %v2790
    %v2793 = vmul.f32 %v2785, %v2791
    %v2794 = vmul.f32 %v2786, %v2791
    %v2796 = vlaneseq
    %v2797 = vshrl.u32 %v2796, 7
    %v2798 = vsub.s32 0, %v2797
    %v2799 = vrot.slane %v2760, %v2798
    %v2801 = vadd.f32 %v2793, %v2799
    %v2802 = vadd.f32 %v2794, %v2799
    %2803 = vst.msk [vmem:[#allocation3] sm:$0xff] %vm116, %v2801
    %2804 = vst.msk [vmem:[#allocation3 + $0x8] sm:$0xff] %vm116, %v2802
    // Predicated region
    $region66: #{transformer_encoder.1} parent=1 // pred_check
      _
    $region67: #{transformer_encoder.1} parent=1 // pred_check_branch
      %2806 = sbr.rel (0) target = $region69
    $region68: #{transformer_encoder.1} parent=1 // pred_region
      %s2808 = ssub.s32 256, 256
      %2809 = vsyncadd [#allocation4], %s2808
      %s2810 = sshll.u32 [#allocation3], 4
      %s2811 = int_to_ptr.vmem [resolvable:$true] %s2810
      %2816 = dma.vmem_to_hbm [thread:$0]  %s2811, 256, %s16, [#allocation4], 128, 128, 8
    $region69: #{transformer_encoder.1} parent=1 // pred_fallthru
      _
    // Predicated region
    $region70: #{transformer_encoder.1} parent=1 // pred_check
      _
    $region71: #{transformer_encoder.1} parent=1 // pred_check_branch
      %2818 = sbr.rel (0) target = $region73
    $region72: #{transformer_encoder.1} parent=1 // pred_region
      %2819 = dma.done [#allocation4], 256
    $region73: #{transformer_encoder.1} parent=1 // pred_fallthru
      _
    %2820 = vsyncpa [#allocation4], 1

</llo_original>
